<compile_context>
chip_gen: v6e
topology: v6e:2x2x1
jax: 0.10.0
libtpu: 0.0.40
codegen_flags: <defaults>
</compile_context>

<pallas_src>
import functools

import jax
import jax.numpy as jnp
from jax import lax
from jax.experimental import pallas as pl
from jax.experimental.pallas import tpu as pltpu

EPS = 1e-5   # torch InstanceNorm2d default eps
PADL = 8     # sublane-aligned column offset of the image inside the padded scratch


def _residual_block_kernel(H, W, C, x_ref, w1_ref, p1_ref, w2_ref, p2_ref,
                           o_ref, xpad_ref):
    """One full ResidualBlock for one batch element.

    x_ref   : (1, H, W, C)      f32   input block
    w1_ref  : (3, 3*C, C)       bf16  conv1 weights, kx taps concatenated along Cin
    p1_ref  : (2, C)            f32   rows = [gamma1, beta1]
    w2_ref  : (3, 3*C, C)       bf16  conv2 weights
    p2_ref  : (2, C)            f32   rows = [gamma2, beta2]
    o_ref   : (1, H, W, C)      f32   output block
    xpad_ref: (H+2, Ws, C)      f32   zero-padded scratch (image at cols [PADL, PADL+W))
    """
    K = 3
    HW = H * W

    # Zero the scratch each grid step (border must be zero; interior is
    # overwritten below).  ~70 vregs -> negligible.
    xpad_ref[...] = jnp.zeros_like(xpad_ref)

    def conv3x3(w_ref):
        acc = jnp.zeros((HW, C), jnp.float32)
        for ky in range(K):
            # Concatenate the 3 horizontal taps along channels -> (H, W, 3C).
            # Conceptual padded col b maps to scratch col b + (PADL - 1).
            xcat = jnp.concatenate(
                [xpad_ref[ky:ky + H, PADL - 1 + kx:PADL - 1 + kx + W, :]
                 for kx in range(K)],
                axis=-1)
            # (H, W) collapse is layout-free because W % 8 == 0; bf16 on the MXU,
            # f32 accumulation.
            acc = acc + jnp.dot(
                xcat.reshape(HW, K * C).astype(jnp.bfloat16),
                w_ref[ky],
                preferred_element_type=jnp.float32)
        return acc

    def instance_norm(acc, p_ref):
        # Biased variance over H*W (torch InstanceNorm2d), folded into one FMA.
        # NOTE: the conv bias is exactly cancelled by the mean subtraction, so
        # it is intentionally never added (matches torch numerics).
        mean = jnp.mean(acc, axis=0, keepdims=True)
        var = jnp.mean(jnp.square(acc - mean), axis=0, keepdims=True)
        scale = p_ref[0:1, :] * lax.rsqrt(var + EPS)
        shift = p_ref[1:2, :] - mean * scale
        return acc * scale + shift

    x = x_ref[0]                                        # (H, W, C) f32

    # conv1 + IN1 + ReLU   (aligned store: col offset PADL is a sublane multiple)
    xpad_ref[1:H + 1, PADL:PADL + W, :] = x
    h = instance_norm(conv3x3(w1_ref), p1_ref)
    h = jnp.maximum(h, 0.0)

    # conv2 + IN2 + residual (intermediate stays in VMEM, re-padded in place)
    xpad_ref[1:H + 1, PADL:PADL + W, :] = h.reshape(H, W, C)
    y = instance_norm(conv3x3(w2_ref), p2_ref)
    y = y + x.reshape(HW, C)

    o_ref[...] = y.reshape(1, H, W, C).astype(o_ref.dtype)


def residual_block_nhwc(x, w1, g1, be1, w2, g2, be2):
    """x: (N, H, W, C) f32; w*: HWIO (3, 3, C, C); g*/be*: (C,) InstanceNorm affine."""
    N, H, W, C = x.shape
    K = 3
    assert W % 8 == 0 and C % 128 == 0, "W must be a multiple of 8, C of 128"
    Ws = PADL + W + 8                                   # padded scratch width (tile-aligned)

    # (K, K, Cin, Cout) -> (K, K*Cin, Cout): row kx*Cin + cin matches the
    # channel-concatenated taps built in the kernel.  bf16 for the MXU.
    wc1 = w1.reshape(K, K * C, C).astype(jnp.bfloat16)
    wc2 = w2.reshape(K, K * C, C).astype(jnp.bfloat16)
    p1 = jnp.stack([g1, be1]).astype(jnp.float32)       # (2, C)
    p2 = jnp.stack([g2, be2]).astype(jnp.float32)

    kernel = functools.partial(_residual_block_kernel, H, W, C)
    return pl.pallas_call(
        kernel,
        out_shape=jax.ShapeDtypeStruct((N, H, W, C), jnp.float32),
        grid_spec=pltpu.PrefetchScalarGridSpec(
            num_scalar_prefetch=0,
            grid=(N,),
            in_specs=[
                pl.BlockSpec((1, H, W, C), lambda n: (n, 0, 0, 0)),
                pl.BlockSpec((K, K * C, C), lambda n: (0, 0, 0)),
                pl.BlockSpec((2, C), lambda n: (0, 0)),
                pl.BlockSpec((K, K * C, C), lambda n: (0, 0, 0)),
                pl.BlockSpec((2, C), lambda n: (0, 0)),
            ],
            out_specs=pl.BlockSpec((1, H, W, C), lambda n: (n, 0, 0, 0)),
            scratch_shapes=[pltpu.VMEM((H + 2, Ws, C), jnp.float32)],
        ),
        compiler_params=pltpu.CompilerParams(
            dimension_semantics=("parallel",)),
    )(x, wc1, p1, wc2, p2)


def residual_block(x_nchw, params):
    """PyTorch-layout entry point (NCHW in / NCHW out).

    params['b1'] / params['b2'] (conv biases) exist for parity with torch but are
    not passed to the kernel: InstanceNorm's mean subtraction cancels them exactly.
    """
    x = jnp.transpose(x_nchw, (0, 2, 3, 1)).astype(jnp.float32)   # NCHW -> NHWC
    y = residual_block_nhwc(x, params["w1"], params["g1"], params["be1"],
                            params["w2"], params["g2"], params["be2"])
    return jnp.transpose(y, (0, 3, 1, 2))                          # NHWC -> NCHW


# ---------------------------------------------------------------------------
# Pure-JAX reference (f32, includes the conv biases) for correctness checking.
# ---------------------------------------------------------------------------
def residual_block_ref(x_nchw, params):
    x = jnp.transpose(x_nchw, (0, 2, 3, 1)).astype(jnp.float32)
    dn = ("NHWC", "HWIO", "NHWC")

    def conv(v, w, b):
        return lax.conv_general_dilated(v, w, (1, 1), "SAME",
                                        dimension_numbers=dn) + b

    def inorm(v, g, b):
        mean = jnp.mean(v, axis=(1, 2), keepdims=True)
        var = jnp.mean(jnp.square(v - mean), axis=(1, 2), keepdims=True)
        return (v - mean) * lax.rsqrt(var + EPS) * g + b

    h = jnp.maximum(
        inorm(conv(x, params["w1"], params["b1"]), params["g1"], params["be1"]),
        0.0)
    y = inorm(conv(h, params["w2"], params["b2"]), params["g2"], params["be2"]) + x
    return jnp.transpose(y, (0, 3, 1, 2))


def init_params(key, C):
    K = 3
    ks = jax.random.split(key, 8)

    def conv_w(k):
        # torch Conv2d weight (Cout, Cin, K, K) -> HWIO (K, K, Cin, Cout), fan_in scaled
        w = jax.random.normal(k, (C, C, K, K), jnp.float32) / jnp.sqrt(C * K * K)
        return jnp.transpose(w, (2, 3, 1, 0))

    return dict(
        w1=conv_w(ks[0]),
        b1=0.1 * jax.random.normal(ks[1], (C,), jnp.float32),
        g1=1.0 + 0.1 * jax.random.normal(ks[2], (C,), jnp.float32),
        be1=0.1 * jax.random.normal(ks[3], (C,), jnp.float32),
        w2=conv_w(ks[4]),
        b2=0.1 * jax.random.normal(ks[5], (C,), jnp.float32),
        g2=1.0 + 0.1 * jax.random.normal(ks[6], (C,), jnp.float32),
        be2=0.1 * jax.random.normal(ks[7], (C,), jnp.float32),
    )


if __name__ == "__main__":
    key = jax.random.PRNGKey(0)
    pkey, xkey = jax.random.split(key)

    N, C, H, W = 2, 128, 16, 16          # small but lane/sublane friendly shapes
    params = init_params(pkey, C)
    x = jax.random.normal(xkey, (N, C, H, W), jnp.float32)   # NCHW, like PyTorch

    fwd = jax.jit(residual_block)
    y = jax.block_until_ready(fwd(x, params))
    assert y.shape == (N, C, H, W), y.shape
    assert bool(jnp.all(jnp.isfinite(y)))

    # Correctness vs f32 reference (bf16 MXU inputs -> loose-ish tolerance).
    y_ref = residual_block_ref(x, params)
    max_err = float(jnp.max(jnp.abs(y - y_ref)))
    assert max_err < 1e-1, max_err

    print("KERNEL_OK")
</pallas_src>

<mosaic_0001>
module attributes {stable_mosaic.version = 11 : i64} {
  func.func @_residual_block_kernel(%arg0: i32, %arg1: memref<1x16x16x128xf32, #tpu.memory_space<vmem>>, %arg2: memref<3x384x128xbf16, #tpu.memory_space<vmem>>, %arg3: memref<2x128xf32, #tpu.memory_space<vmem>>, %arg4: memref<3x384x128xbf16, #tpu.memory_space<vmem>>, %arg5: memref<2x128xf32, #tpu.memory_space<vmem>>, %arg6: memref<1x16x16x128xf32, #tpu.memory_space<vmem>>, %arg7: memref<18x32x128xf32, #tpu.memory_space<vmem>>) attributes {dimension_semantics = [#tpu.dimension_semantics<parallel>], iteration_bounds = array<i64: 2>, scalar_prefetch = 0 : i64, scratch_operands = 1 : i64, tpu.core_type = #tpu.core_type<tc>, window_params = [{transform_indices = @transform_0, window_bounds = array<i64: 1, 16, 16, 128>}, {pipeline_mode = #tpu.pipeline_mode<synchronous>, transform_indices = @transform_1, window_bounds = array<i64: 3, 384, 128>}, {pipeline_mode = #tpu.pipeline_mode<synchronous>, transform_indices = @transform_2, window_bounds = array<i64: 2, 128>}, {pipeline_mode = #tpu.pipeline_mode<synchronous>, transform_indices = @transform_3, window_bounds = array<i64: 3, 384, 128>}, {pipeline_mode = #tpu.pipeline_mode<synchronous>, transform_indices = @transform_4, window_bounds = array<i64: 2, 128>}, {transform_indices = @transform_5, window_bounds = array<i64: 1, 16, 16, 128>}]} {
    %cst = arith.constant 0.000000e+00 : f32
    %0 = vector.broadcast %cst : f32 to vector<18x32x128xf32>
    %c0 = arith.constant 0 : index
    %c0_0 = arith.constant 0 : index
    %c0_1 = arith.constant 0 : index
    %1 = vector.load %arg7[%c0, %c0_0, %c0_1] : memref<18x32x128xf32, #tpu.memory_space<vmem>>, vector<18x32x128xf32>
    tpu.vector_store %arg7[%c0, %c0_0, %c0_1], %0 {strides = array<i32>} : memref<18x32x128xf32, #tpu.memory_space<vmem>>, vector<18x32x128xf32>,
    %c0_2 = arith.constant 0 : index
    %c0_3 = arith.constant 0 : index
    %c0_4 = arith.constant 0 : index
    %c0_5 = arith.constant 0 : index
    %2 = vector.load %arg1[%c0_2, %c0_3, %c0_4, %c0_5] : memref<1x16x16x128xf32, #tpu.memory_space<vmem>>, vector<1x16x16x128xf32>
    %3 = vector.shape_cast %2 : vector<1x16x16x128xf32> to vector<16x16x128xf32>
    %c1 = arith.constant 1 : index
    %c8 = arith.constant 8 : index
    %c0_6 = arith.constant 0 : index
    %4 = vector.load %arg7[%c1, %c8, %c0_6] : memref<18x32x128xf32, #tpu.memory_space<vmem>>, vector<16x16x128xf32>
    tpu.vector_store %arg7[%c1, %c8, %c0_6], %3 {strides = array<i32>} : memref<18x32x128xf32, #tpu.memory_space<vmem>>, vector<16x16x128xf32>,
    %cst_7 = arith.constant 0.000000e+00 : f32
    %5 = vector.broadcast %cst_7 : f32 to vector<256x128xf32>
    %c0_8 = arith.constant 0 : index
    %c7 = arith.constant 7 : index
    %c0_9 = arith.constant 0 : index
    %6 = vector.load %arg7[%c0_8, %c7, %c0_9] : memref<18x32x128xf32, #tpu.memory_space<vmem>>, vector<16x16x128xf32>
    %c0_10 = arith.constant 0 : index
    %c8_11 = arith.constant 8 : index
    %c0_12 = arith.constant 0 : index
    %7 = vector.load %arg7[%c0_10, %c8_11, %c0_12] : memref<18x32x128xf32, #tpu.memory_space<vmem>>, vector<16x16x128xf32>
    %c0_13 = arith.constant 0 : index
    %c9 = arith.constant 9 : index
    %c0_14 = arith.constant 0 : index
    %8 = vector.load %arg7[%c0_13, %c9, %c0_14] : memref<18x32x128xf32, #tpu.memory_space<vmem>>, vector<16x16x128xf32>
    %9 = tpu.concatenate %6, %7, %8 in 2 : vector<16x16x128xf32>, vector<16x16x128xf32>, vector<16x16x128xf32> -> vector<16x16x384xf32>
    %10 = vector.shape_cast %9 : vector<16x16x384xf32> to vector<256x384xf32>
    %11 = arith.truncf %10 : vector<256x384xf32> to vector<256x384xbf16>
    %c0_15 = arith.constant 0 : index
    %c0_16 = arith.constant 0 : index
    %c0_17 = arith.constant 0 : index
    %12 = vector.load %arg2[%c0_15, %c0_16, %c0_17] : memref<3x384x128xbf16, #tpu.memory_space<vmem>>, vector<1x384x128xbf16>
    %13 = vector.shape_cast %12 : vector<1x384x128xbf16> to vector<384x128xbf16>
    %cst_18 = arith.constant dense<0.000000e+00> : vector<256x128xf32>
    %14 = tpu.matmul %11, %13, %cst_18 {dimension_numbers = #tpu.dot_dimension_numbers<[1], [0], [0], [1], [0, 0, 1, 1], [], []>} : vector<256x384xbf16>, vector<384x128xbf16>, vector<256x128xf32> -> vector<256x128xf32>
    %15 = arith.addf %5, %14 : vector<256x128xf32>
    %c1_19 = arith.constant 1 : index
    %c7_20 = arith.constant 7 : index
    %c0_21 = arith.constant 0 : index
    %16 = vector.load %arg7[%c1_19, %c7_20, %c0_21] : memref<18x32x128xf32, #tpu.memory_space<vmem>>, vector<16x16x128xf32>
    %c1_22 = arith.constant 1 : index
    %c8_23 = arith.constant 8 : index
    %c0_24 = arith.constant 0 : index
    %17 = vector.load %arg7[%c1_22, %c8_23, %c0_24] : memref<18x32x128xf32, #tpu.memory_space<vmem>>, vector<16x16x128xf32>
    %c1_25 = arith.constant 1 : index
    %c9_26 = arith.constant 9 : index
    %c0_27 = arith.constant 0 : index
    %18 = vector.load %arg7[%c1_25, %c9_26, %c0_27] : memref<18x32x128xf32, #tpu.memory_space<vmem>>, vector<16x16x128xf32>
    %19 = tpu.concatenate %16, %17, %18 in 2 : vector<16x16x128xf32>, vector<16x16x128xf32>, vector<16x16x128xf32> -> vector<16x16x384xf32>
    %20 = vector.shape_cast %19 : vector<16x16x384xf32> to vector<256x384xf32>
    %21 = arith.truncf %20 : vector<256x384xf32> to vector<256x384xbf16>
    %c1_28 = arith.constant 1 : index
    %c0_29 = arith.constant 0 : index
    %c0_30 = arith.constant 0 : index
    %22 = vector.load %arg2[%c1_28, %c0_29, %c0_30] : memref<3x384x128xbf16, #tpu.memory_space<vmem>>, vector<1x384x128xbf16>
    %23 = vector.shape_cast %22 : vector<1x384x128xbf16> to vector<384x128xbf16>
    %cst_31 = arith.constant dense<0.000000e+00> : vector<256x128xf32>
    %24 = tpu.matmul %21, %23, %cst_31 {dimension_numbers = #tpu.dot_dimension_numbers<[1], [0], [0], [1], [0, 0, 1, 1], [], []>} : vector<256x384xbf16>, vector<384x128xbf16>, vector<256x128xf32> -> vector<256x128xf32>
    %25 = arith.addf %15, %24 : vector<256x128xf32>
    %c2 = arith.constant 2 : index
    %c7_32 = arith.constant 7 : index
    %c0_33 = arith.constant 0 : index
    %26 = vector.load %arg7[%c2, %c7_32, %c0_33] : memref<18x32x128xf32, #tpu.memory_space<vmem>>, vector<16x16x128xf32>
    %c2_34 = arith.constant 2 : index
    %c8_35 = arith.constant 8 : index
    %c0_36 = arith.constant 0 : index
    %27 = vector.load %arg7[%c2_34, %c8_35, %c0_36] : memref<18x32x128xf32, #tpu.memory_space<vmem>>, vector<16x16x128xf32>
    %c2_37 = arith.constant 2 : index
    %c9_38 = arith.constant 9 : index
    %c0_39 = arith.constant 0 : index
    %28 = vector.load %arg7[%c2_37, %c9_38, %c0_39] : memref<18x32x128xf32, #tpu.memory_space<vmem>>, vector<16x16x128xf32>
    %29 = tpu.concatenate %26, %27, %28 in 2 : vector<16x16x128xf32>, vector<16x16x128xf32>, vector<16x16x128xf32> -> vector<16x16x384xf32>
    %30 = vector.shape_cast %29 : vector<16x16x384xf32> to vector<256x384xf32>
    %31 = arith.truncf %30 : vector<256x384xf32> to vector<256x384xbf16>
    %c2_40 = arith.constant 2 : index
    %c0_41 = arith.constant 0 : index
    %c0_42 = arith.constant 0 : index
    %32 = vector.load %arg2[%c2_40, %c0_41, %c0_42] : memref<3x384x128xbf16, #tpu.memory_space<vmem>>, vector<1x384x128xbf16>
    %33 = vector.shape_cast %32 : vector<1x384x128xbf16> to vector<384x128xbf16>
    %cst_43 = arith.constant dense<0.000000e+00> : vector<256x128xf32>
    %34 = tpu.matmul %31, %33, %cst_43 {dimension_numbers = #tpu.dot_dimension_numbers<[1], [0], [0], [1], [0, 0, 1, 1], [], []>} : vector<256x384xbf16>, vector<384x128xbf16>, vector<256x128xf32> -> vector<256x128xf32>
    %35 = arith.addf %25, %34 : vector<256x128xf32>
    %cst_44 = arith.constant dense<0.000000e+00> : vector<128xf32>
    %36 = vector.multi_reduction <add>, %35, %cst_44 [0] : vector<256x128xf32> to vector<128xf32>
    %37 = vector.shape_cast %36 : vector<128xf32> to vector<1x128xf32>
    %cst_45 = arith.constant 2.560000e+02 : f32
    %38 = vector.broadcast %cst_45 : f32 to vector<1x128xf32>
    %39 = arith.divf %37, %38 : vector<1x128xf32>
    %40 = vector.broadcast %39 : vector<1x128xf32> to vector<256x128xf32>
    %41 = arith.subf %35, %40 : vector<256x128xf32>
    %42 = arith.mulf %41, %41 : vector<256x128xf32>
    %cst_46 = arith.constant dense<0.000000e+00> : vector<128xf32>
    %43 = vector.multi_reduction <add>, %42, %cst_46 [0] : vector<256x128xf32> to vector<128xf32>
    %44 = vector.shape_cast %43 : vector<128xf32> to vector<1x128xf32>
    %cst_47 = arith.constant 2.560000e+02 : f32
    %45 = vector.broadcast %cst_47 : f32 to vector<1x128xf32>
    %46 = arith.divf %44, %45 : vector<1x128xf32>
    %c0_48 = arith.constant 0 : index
    %c0_49 = arith.constant 0 : index
    %47 = vector.load %arg3[%c0_48, %c0_49] : memref<2x128xf32, #tpu.memory_space<vmem>>, vector<1x128xf32>
    %cst_50 = arith.constant 9.99999974E-6 : f32
    %48 = vector.broadcast %cst_50 : f32 to vector<1x128xf32>
    %49 = arith.addf %46, %48 : vector<1x128xf32>
    %50 = math.rsqrt %49 : vector<1x128xf32>
    %51 = arith.mulf %47, %50 : vector<1x128xf32>
    %c1_51 = arith.constant 1 : index
    %c0_52 = arith.constant 0 : index
    %52 = vector.load %arg3[%c1_51, %c0_52] : memref<2x128xf32, #tpu.memory_space<vmem>>, vector<1x128xf32>
    %53 = arith.mulf %39, %51 : vector<1x128xf32>
    %54 = arith.subf %52, %53 : vector<1x128xf32>
    %55 = vector.broadcast %51 : vector<1x128xf32> to vector<256x128xf32>
    %56 = arith.mulf %35, %55 : vector<256x128xf32>
    %57 = vector.broadcast %54 : vector<1x128xf32> to vector<256x128xf32>
    %58 = arith.addf %56, %57 : vector<256x128xf32>
    %cst_53 = arith.constant 0.000000e+00 : f32
    %59 = vector.broadcast %cst_53 : f32 to vector<256x128xf32>
    %60 = arith.maximumf %58, %59 : vector<256x128xf32>
    %61 = vector.shape_cast %60 : vector<256x128xf32> to vector<16x16x128xf32>
    %c1_54 = arith.constant 1 : index
    %c8_55 = arith.constant 8 : index
    %c0_56 = arith.constant 0 : index
    %62 = vector.load %arg7[%c1_54, %c8_55, %c0_56] : memref<18x32x128xf32, #tpu.memory_space<vmem>>, vector<16x16x128xf32>
    tpu.vector_store %arg7[%c1_54, %c8_55, %c0_56], %61 {strides = array<i32>} : memref<18x32x128xf32, #tpu.memory_space<vmem>>, vector<16x16x128xf32>,
    %cst_57 = arith.constant 0.000000e+00 : f32
    %63 = vector.broadcast %cst_57 : f32 to vector<256x128xf32>
    %c0_58 = arith.constant 0 : index
    %c7_59 = arith.constant 7 : index
    %c0_60 = arith.constant 0 : index
    %64 = vector.load %arg7[%c0_58, %c7_59, %c0_60] : memref<18x32x128xf32, #tpu.memory_space<vmem>>, vector<16x16x128xf32>
    %c0_61 = arith.constant 0 : index
    %c8_62 = arith.constant 8 : index
    %c0_63 = arith.constant 0 : index
    %65 = vector.load %arg7[%c0_61, %c8_62, %c0_63] : memref<18x32x128xf32, #tpu.memory_space<vmem>>, vector<16x16x128xf32>
    %c0_64 = arith.constant 0 : index
    %c9_65 = arith.constant 9 : index
    %c0_66 = arith.constant 0 : index
    %66 = vector.load %arg7[%c0_64, %c9_65, %c0_66] : memref<18x32x128xf32, #tpu.memory_space<vmem>>, vector<16x16x128xf32>
    %67 = tpu.concatenate %64, %65, %66 in 2 : vector<16x16x128xf32>, vector<16x16x128xf32>, vector<16x16x128xf32> -> vector<16x16x384xf32>
    %68 = vector.shape_cast %67 : vector<16x16x384xf32> to vector<256x384xf32>
    %69 = arith.truncf %68 : vector<256x384xf32> to vector<256x384xbf16>
    %c0_67 = arith.constant 0 : index
    %c0_68 = arith.constant 0 : index
    %c0_69 = arith.constant 0 : index
    %70 = vector.load %arg4[%c0_67, %c0_68, %c0_69] : memref<3x384x128xbf16, #tpu.memory_space<vmem>>, vector<1x384x128xbf16>
    %71 = vector.shape_cast %70 : vector<1x384x128xbf16> to vector<384x128xbf16>
    %cst_70 = arith.constant dense<0.000000e+00> : vector<256x128xf32>
    %72 = tpu.matmul %69, %71, %cst_70 {dimension_numbers = #tpu.dot_dimension_numbers<[1], [0], [0], [1], [0, 0, 1, 1], [], []>} : vector<256x384xbf16>, vector<384x128xbf16>, vector<256x128xf32> -> vector<256x128xf32>
    %73 = arith.addf %63, %72 : vector<256x128xf32>
    %c1_71 = arith.constant 1 : index
    %c7_72 = arith.constant 7 : index
    %c0_73 = arith.constant 0 : index
    %74 = vector.load %arg7[%c1_71, %c7_72, %c0_73] : memref<18x32x128xf32, #tpu.memory_space<vmem>>, vector<16x16x128xf32>
    %c1_74 = arith.constant 1 : index
    %c8_75 = arith.constant 8 : index
    %c0_76 = arith.constant 0 : index
    %75 = vector.load %arg7[%c1_74, %c8_75, %c0_76] : memref<18x32x128xf32, #tpu.memory_space<vmem>>, vector<16x16x128xf32>
    %c1_77 = arith.constant 1 : index
    %c9_78 = arith.constant 9 : index
    %c0_79 = arith.constant 0 : index
    %76 = vector.load %arg7[%c1_77, %c9_78, %c0_79] : memref<18x32x128xf32, #tpu.memory_space<vmem>>, vector<16x16x128xf32>
    %77 = tpu.concatenate %74, %75, %76 in 2 : vector<16x16x128xf32>, vector<16x16x128xf32>, vector<16x16x128xf32> -> vector<16x16x384xf32>
    %78 = vector.shape_cast %77 : vector<16x16x384xf32> to vector<256x384xf32>
    %79 = arith.truncf %78 : vector<256x384xf32> to vector<256x384xbf16>
    %c1_80 = arith.constant 1 : index
    %c0_81 = arith.constant 0 : index
    %c0_82 = arith.constant 0 : index
    %80 = vector.load %arg4[%c1_80, %c0_81, %c0_82] : memref<3x384x128xbf16, #tpu.memory_space<vmem>>, vector<1x384x128xbf16>
    %81 = vector.shape_cast %80 : vector<1x384x128xbf16> to vector<384x128xbf16>
    %cst_83 = arith.constant dense<0.000000e+00> : vector<256x128xf32>
    %82 = tpu.matmul %79, %81, %cst_83 {dimension_numbers = #tpu.dot_dimension_numbers<[1], [0], [0], [1], [0, 0, 1, 1], [], []>} : vector<256x384xbf16>, vector<384x128xbf16>, vector<256x128xf32> -> vector<256x128xf32>
    %83 = arith.addf %73, %82 : vector<256x128xf32>
    %c2_84 = arith.constant 2 : index
    %c7_85 = arith.constant 7 : index
    %c0_86 = arith.constant 0 : index
    %84 = vector.load %arg7[%c2_84, %c7_85, %c0_86] : memref<18x32x128xf32, #tpu.memory_space<vmem>>, vector<16x16x128xf32>
    %c2_87 = arith.constant 2 : index
    %c8_88 = arith.constant 8 : index
    %c0_89 = arith.constant 0 : index
    %85 = vector.load %arg7[%c2_87, %c8_88, %c0_89] : memref<18x32x128xf32, #tpu.memory_space<vmem>>, vector<16x16x128xf32>
    %c2_90 = arith.constant 2 : index
    %c9_91 = arith.constant 9 : index
    %c0_92 = arith.constant 0 : index
    %86 = vector.load %arg7[%c2_90, %c9_91, %c0_92] : memref<18x32x128xf32, #tpu.memory_space<vmem>>, vector<16x16x128xf32>
    %87 = tpu.concatenate %84, %85, %86 in 2 : vector<16x16x128xf32>, vector<16x16x128xf32>, vector<16x16x128xf32> -> vector<16x16x384xf32>
    %88 = vector.shape_cast %87 : vector<16x16x384xf32> to vector<256x384xf32>
    %89 = arith.truncf %88 : vector<256x384xf32> to vector<256x384xbf16>
    %c2_93 = arith.constant 2 : index
    %c0_94 = arith.constant 0 : index
    %c0_95 = arith.constant 0 : index
    %90 = vector.load %arg4[%c2_93, %c0_94, %c0_95] : memref<3x384x128xbf16, #tpu.memory_space<vmem>>, vector<1x384x128xbf16>
    %91 = vector.shape_cast %90 : vector<1x384x128xbf16> to vector<384x128xbf16>
    %cst_96 = arith.constant dense<0.000000e+00> : vector<256x128xf32>
    %92 = tpu.matmul %89, %91, %cst_96 {dimension_numbers = #tpu.dot_dimension_numbers<[1], [0], [0], [1], [0, 0, 1, 1], [], []>} : vector<256x384xbf16>, vector<384x128xbf16>, vector<256x128xf32> -> vector<256x128xf32>
    %93 = arith.addf %83, %92 : vector<256x128xf32>
    %cst_97 = arith.constant dense<0.000000e+00> : vector<128xf32>
    %94 = vector.multi_reduction <add>, %93, %cst_97 [0] : vector<256x128xf32> to vector<128xf32>
    %95 = vector.shape_cast %94 : vector<128xf32> to vector<1x128xf32>
    %cst_98 = arith.constant 2.560000e+02 : f32
    %96 = vector.broadcast %cst_98 : f32 to vector<1x128xf32>
    %97 = arith.divf %95, %96 : vector<1x128xf32>
    %98 = vector.broadcast %97 : vector<1x128xf32> to vector<256x128xf32>
    %99 = arith.subf %93, %98 : vector<256x128xf32>
    %100 = arith.mulf %99, %99 : vector<256x128xf32>
    %cst_99 = arith.constant dense<0.000000e+00> : vector<128xf32>
    %101 = vector.multi_reduction <add>, %100, %cst_99 [0] : vector<256x128xf32> to vector<128xf32>
    %102 = vector.shape_cast %101 : vector<128xf32> to vector<1x128xf32>
    %cst_100 = arith.constant 2.560000e+02 : f32
    %103 = vector.broadcast %cst_100 : f32 to vector<1x128xf32>
    %104 = arith.divf %102, %103 : vector<1x128xf32>
    %c0_101 = arith.constant 0 : index
    %c0_102 = arith.constant 0 : index
    %105 = vector.load %arg5[%c0_101, %c0_102] : memref<2x128xf32, #tpu.memory_space<vmem>>, vector<1x128xf32>
    %cst_103 = arith.constant 9.99999974E-6 : f32
    %106 = vector.broadcast %cst_103 : f32 to vector<1x128xf32>
    %107 = arith.addf %104, %106 : vector<1x128xf32>
    %108 = math.rsqrt %107 : vector<1x128xf32>
    %109 = arith.mulf %105, %108 : vector<1x128xf32>
    %c1_104 = arith.constant 1 : index
    %c0_105 = arith.constant 0 : index
    %110 = vector.load %arg5[%c1_104, %c0_105] : memref<2x128xf32, #tpu.memory_space<vmem>>, vector<1x128xf32>
    %111 = arith.mulf %97, %109 : vector<1x128xf32>
    %112 = arith.subf %110, %111 : vector<1x128xf32>
    %113 = vector.broadcast %109 : vector<1x128xf32> to vector<256x128xf32>
    %114 = arith.mulf %93, %113 : vector<256x128xf32>
    %115 = vector.broadcast %112 : vector<1x128xf32> to vector<256x128xf32>
    %116 = arith.addf %114, %115 : vector<256x128xf32>
    %117 = vector.shape_cast %3 : vector<16x16x128xf32> to vector<256x128xf32>
    %118 = arith.addf %116, %117 : vector<256x128xf32>
    %119 = vector.shape_cast %118 : vector<256x128xf32> to vector<1x16x16x128xf32>
    %c0_106 = arith.constant 0 : index
    %c0_107 = arith.constant 0 : index
    %c0_108 = arith.constant 0 : index
    %c0_109 = arith.constant 0 : index
    %120 = vector.load %arg6[%c0_106, %c0_107, %c0_108, %c0_109] : memref<1x16x16x128xf32, #tpu.memory_space<vmem>>, vector<1x16x16x128xf32>
    tpu.vector_store %arg6[%c0_106, %c0_107, %c0_108, %c0_109], %119 {strides = array<i32>} : memref<1x16x16x128xf32, #tpu.memory_space<vmem>>, vector<1x16x16x128xf32>,
    return
  }
  func.func @transform_0(%arg0: i32) -> (i32, i32, i32, i32) {
    %c0_i32 = arith.constant 0 : i32
    %c0_i32_0 = arith.constant 0 : i32
    %c0_i32_1 = arith.constant 0 : i32
    %c0_i32_2 = arith.constant 0 : i32
    return %arg0, %c0_i32, %c0_i32_0, %c0_i32_1 : i32, i32, i32, i32
  }
  func.func @transform_1(%arg0: i32) -> (i32, i32, i32) {
    %c0_i32 = arith.constant 0 : i32
    %c0_i32_0 = arith.constant 0 : i32
    %c0_i32_1 = arith.constant 0 : i32
    %c0_i32_2 = arith.constant 0 : i32
    return %c0_i32, %c0_i32_0, %c0_i32_1 : i32, i32, i32
  }
  func.func @transform_2(%arg0: i32) -> (i32, i32) {
    %c0_i32 = arith.constant 0 : i32
    %c0_i32_0 = arith.constant 0 : i32
    %c0_i32_1 = arith.constant 0 : i32
    return %c0_i32, %c0_i32_0 : i32, i32
  }
  func.func @transform_3(%arg0: i32) -> (i32, i32, i32) {
    %c0_i32 = arith.constant 0 : i32
    %c0_i32_0 = arith.constant 0 : i32
    %c0_i32_1 = arith.constant 0 : i32
    %c0_i32_2 = arith.constant 0 : i32
    return %c0_i32, %c0_i32_0, %c0_i32_1 : i32, i32, i32
  }
  func.func @transform_4(%arg0: i32) -> (i32, i32) {
    %c0_i32 = arith.constant 0 : i32
    %c0_i32_0 = arith.constant 0 : i32
    %c0_i32_1 = arith.constant 0 : i32
    return %c0_i32, %c0_i32_0 : i32, i32
  }
  func.func @transform_5(%arg0: i32) -> (i32, i32, i32, i32) {
    %c0_i32 = arith.constant 0 : i32
    %c0_i32_0 = arith.constant 0 : i32
    %c0_i32_1 = arith.constant 0 : i32
    %c0_i32_2 = arith.constant 0 : i32
    return %arg0, %c0_i32, %c0_i32_0, %c0_i32_1 : i32, i32, i32, i32
  }
}

</mosaic_0001>

<llo_original>
// kernel: residual_block.1
$region0: #{residual_block.1}
  #allocation0 [shape = 'u32[]', space=smem, size = 0x4, offset = 0x4, fixed_abs, tag = 'smem constant byte address 0x4 - core index']
  #allocation1 [shape = 'u32[144,128]{1,0:T(1,128)}', space=vmem, size = 0x12000, scoped, tag = 'internal scratch']
  #allocation2 [shape = 'f32[18,32,128]{2,1,0:T(8,128)}', space=vmem, size = 0x48000, scoped, tag = 'scratch operand']
  %s0 = inlined_call_operand.vmem [shape: f32[2,16,16,128], index: 0, kind: input, shape index: {}]
  %s1 = inlined_call_operand.vmem [shape: bf16[3,384,128], index: 1, kind: input, shape index: {}]
  %s2 = inlined_call_operand.vmem [shape: f32[2,128], index: 2, kind: input, shape index: {}]
  %s3 = inlined_call_operand.vmem [shape: bf16[3,384,128], index: 3, kind: input, shape index: {}]
  %s4 = inlined_call_operand.vmem [shape: f32[2,128], index: 4, kind: input, shape index: {}]
  %s5 = inlined_call_operand.hbm [shape: f32[2,16,16,128], index: 5, kind: output, shape index: {}]
  %s6 = sld [smem:[#allocation0]]
  $region53: #{residual_block.1} parent=0
    _
  %s8 = ssub.s32 1, %s6
  %s9 = scalar_select 0, %s8, %s6
  $region1: #{residual_block.1} parent=0
    #allocation3 [shape = 'u8[262144]{0}', space=vmem, size = 0x40000, scoped, tag = 'output window, operand 0']
    #allocation4 [shape = 's32[2]{0}', space=sflag, size = 0x8, scoped, tag = 'scoped memory for residual_block.1']
    %10 = vsyncpa [#allocation4], 0
    %s11 = scalar_lea.sflag [#allocation4], 1
    %12 = vsyncpa %s11, 0
    loop: start=0, step=1, limit=4
    $region2: #{residual_block.1} parent=1 // loop_pre_header
      _
    $region3: #{residual_block.1} parent=1 // loop_header
      %s14 = sphi 0, %s18
      %p15 = scmp.ge.s32.totalorder %s14, 4
      %s24 = sphi 0, %s26
      %s27 = sphi 0, %s24
      %s28 = sphi 0, %s27
      %s44 = sphi 0, %s28
      %s48 = sphi 0, %s48
      %s50 = sphi 0, %s48
      %s51 = sphi 0, %s50
      %s65 = sphi 0, %s51
      %s69 = sphi 0, %s69
      %s71 = sphi 0, %s69
      %s72 = sphi 0, %s71
      %s86 = sphi 0, %s72
      %s90 = sphi 0, %s90
      %s92 = sphi 0, %s90
      %s93 = sphi 0, %s92
      %s107 = sphi 0, %s93
      %s111 = sphi 0, %s111
      %s113 = sphi 0, %s111
      %s114 = sphi 0, %s113
      %s128 = sphi 0, %s114
      %s134 = sphi 0, %s136
      %s137 = sphi 0, %s134
      %s138 = sphi 0, %s137
      %s154 = sphi 0, %s138
    $region4: #{residual_block.1} parent=1 // loop_header_branch
      %17 = sbr.rel (%p15) target = $region8
    $region5: #{residual_block.1} parent=1 // loop_body
      %s19 = ssub.s32 %s14, 1
      %s20 = ssub.s32 %s14, 2
      %s21 = sadd.s32 %s14, 1
      %s22 = ssub.s32 %s14, %s21
      %p23 = scmp.eq.s32.totalorder %s22, 0
      %s25 = sadd.s32 %s24, 1
      %s26 = scalar_select %p23, %s24, %s25
      %p29 = pneg %p23
      %p30 = scmp.eq.s32.totalorder %s14, 1
      %p31 = por %p29, %p30
      %p32 = scmp.ne.s32.totalorder %s24, %s27
      %p33 = scmp.eq.s32.totalorder %s14, 0
      %p34 = por %p32, %p33
      %p35 = scmp.ne.s32.totalorder %s24, %s27
      %p36 = scmp.eq.s32.totalorder %s19, 1
      %p37 = por %p35, %p36
      %p38 = scmp.ne.s32.totalorder %s27, %s28
      %p39 = scmp.eq.s32.totalorder %s19, 0
      %p40 = por %p38, %p39
      %p41 = scmp.ne.s32.totalorder %s27, %s28
      %p42 = scmp.eq.s32.totalorder %s20, 1
      %p43 = por %p41, %p42
      %p45 = scmp.ne.s32.totalorder %s28, %s44
      %p46 = scmp.eq.s32.totalorder %s20, 0
      %p47 = por %p45, %p46
      %s49 = sadd.s32 %s48, 1
      %p52 = scmp.eq.s32.totalorder %s14, 1
      %p53 = scmp.ne.s32.totalorder %s48, %s50
      %p54 = scmp.eq.s32.totalorder %s14, 0
      %p55 = por %p53, %p54
      %p56 = scmp.ne.s32.totalorder %s48, %s50
      %p57 = scmp.eq.s32.totalorder %s19, 1
      %p58 = por %p56, %p57
      %p59 = scmp.ne.s32.totalorder %s50, %s51
      %p60 = scmp.eq.s32.totalorder %s19, 0
      %p61 = por %p59, %p60
      %p62 = scmp.ne.s32.totalorder %s50, %s51
      %p63 = scmp.eq.s32.totalorder %s20, 1
      %p64 = por %p62, %p63
      %p66 = scmp.ne.s32.totalorder %s51, %s65
      %p67 = scmp.eq.s32.totalorder %s20, 0
      %p68 = por %p66, %p67
      %s70 = sadd.s32 %s69, 1
      %p73 = scmp.eq.s32.totalorder %s14, 1
      %p74 = scmp.ne.s32.totalorder %s69, %s71
      %p75 = scmp.eq.s32.totalorder %s14, 0
      %p76 = por %p74, %p75
      %p77 = scmp.ne.s32.totalorder %s69, %s71
      %p78 = scmp.eq.s32.totalorder %s19, 1
      %p79 = por %p77, %p78
      %p80 = scmp.ne.s32.totalorder %s71, %s72
      %p81 = scmp.eq.s32.totalorder %s19, 0
      %p82 = por %p80, %p81
      %p83 = scmp.ne.s32.totalorder %s71, %s72
      %p84 = scmp.eq.s32.totalorder %s20, 1
      %p85 = por %p83, %p84
      %p87 = scmp.ne.s32.totalorder %s72, %s86
      %p88 = scmp.eq.s32.totalorder %s20, 0
      %p89 = por %p87, %p88
      %s91 = sadd.s32 %s90, 1
      %p94 = scmp.eq.s32.totalorder %s14, 1
      %p95 = scmp.ne.s32.totalorder %s90, %s92
      %p96 = scmp.eq.s32.totalorder %s14, 0
      %p97 = por %p95, %p96
      %p98 = scmp.ne.s32.totalorder %s90, %s92
      %p99 = scmp.eq.s32.totalorder %s19, 1
      %p100 = por %p98, %p99
      %p101 = scmp.ne.s32.totalorder %s92, %s93
      %p102 = scmp.eq.s32.totalorder %s19, 0
      %p103 = por %p101, %p102
      %p104 = scmp.ne.s32.totalorder %s92, %s93
      %p105 = scmp.eq.s32.totalorder %s20, 1
      %p106 = por %p104, %p105
      %p108 = scmp.ne.s32.totalorder %s93, %s107
      %p109 = scmp.eq.s32.totalorder %s20, 0
      %p110 = por %p108, %p109
      %s112 = sadd.s32 %s111, 1
      %p115 = scmp.eq.s32.totalorder %s14, 1
      %p116 = scmp.ne.s32.totalorder %s111, %s113
      %p117 = scmp.eq.s32.totalorder %s14, 0
      %p118 = por %p116, %p117
      %p119 = scmp.ne.s32.totalorder %s111, %s113
      %p120 = scmp.eq.s32.totalorder %s19, 1
      %p121 = por %p119, %p120
      %p122 = scmp.ne.s32.totalorder %s113, %s114
      %p123 = scmp.eq.s32.totalorder %s19, 0
      %p124 = por %p122, %p123
      %p125 = scmp.ne.s32.totalorder %s113, %s114
      %p126 = scmp.eq.s32.totalorder %s20, 1
      %p127 = por %p125, %p126
      %p129 = scmp.ne.s32.totalorder %s114, %s128
      %p130 = scmp.eq.s32.totalorder %s20, 0
      %p131 = por %p129, %p130
      %s132 = ssub.s32 %s14, %s21
      %p133 = scmp.eq.s32.totalorder %s132, 0
      %s135 = sadd.s32 %s134, 1
      %s136 = scalar_select %p133, %s134, %s135
      %p139 = pneg %p133
      %p140 = scmp.eq.s32.totalorder %s14, 1
      %p141 = por %p139, %p140
      %p142 = scmp.ne.s32.totalorder %s134, %s137
      %p143 = scmp.eq.s32.totalorder %s14, 0
      %p144 = por %p142, %p143
      %p145 = scmp.ne.s32.totalorder %s134, %s137
      %p146 = scmp.eq.s32.totalorder %s19, 1
      %p147 = por %p145, %p146
      %p148 = scmp.ne.s32.totalorder %s137, %s138
      %p149 = scmp.eq.s32.totalorder %s19, 0
      %p150 = por %p148, %p149
      %p151 = scmp.ne.s32.totalorder %s137, %s138
      %p152 = scmp.eq.s32.totalorder %s20, 1
      %p153 = por %p151, %p152
      %p155 = scmp.ne.s32.totalorder %s138, %s154
      %p156 = scmp.eq.s32.totalorder %s20, 0
      %p157 = por %p155, %p156
      %p158 = scmp.le.s32.totalorder 1, %s14
      %p159 = scmp.lt.s32.totalorder %s14, 3
      %p160 = pnand %p158, %p159
      %p161 = pneg %p160
      // Predicated region
      $region9: #{residual_block.1} parent=5 // pred_check
        _
      $region10: #{residual_block.1} parent=5 // pred_check_branch
        %163 = sbr.rel (%p160) target = $region12
      $region11: #{residual_block.1} parent=5 // pred_region
        %s164 = ssub.s32 %s14, 1
        // Predicated region
        $region13: #{residual_block.1} parent=11 // pred_check
          %p165 = pneg %p61
        $region14: #{residual_block.1} parent=11 // pred_check_branch
          %167 = sbr.rel (%p165) target = $region16
        $region15: #{residual_block.1} parent=11 // pred_region
          _
        $region16: #{residual_block.1} parent=11 // pred_fallthru
          _
        // Predicated region
        $region17: #{residual_block.1} parent=11 // pred_check
          %p168 = pneg %p82
        $region18: #{residual_block.1} parent=11 // pred_check_branch
          %170 = sbr.rel (%p168) target = $region20
        $region19: #{residual_block.1} parent=11 // pred_region
          _
        $region20: #{residual_block.1} parent=11 // pred_fallthru
          _
        // Predicated region
        $region21: #{residual_block.1} parent=11 // pred_check
          %p171 = pneg %p103
        $region22: #{residual_block.1} parent=11 // pred_check_branch
          %173 = sbr.rel (%p171) target = $region24
        $region23: #{residual_block.1} parent=11 // pred_region
          _
        $region24: #{residual_block.1} parent=11 // pred_fallthru
          _
        // Predicated region
        $region25: #{residual_block.1} parent=11 // pred_check
          %p174 = pneg %p124
        $region26: #{residual_block.1} parent=11 // pred_check_branch
          %176 = sbr.rel (%p174) target = $region28
        $region27: #{residual_block.1} parent=11 // pred_region
          _
        $region28: #{residual_block.1} parent=11 // pred_fallthru
          _
      $region12: #{residual_block.1} parent=5 // pred_fallthru
        _
      %p177 = scmp.lt.s32.totalorder %s14, 2
      // Predicated region
      $region29: #{residual_block.1} parent=5 // pred_check
        %p178 = pneg %p177
      $region30: #{residual_block.1} parent=5 // pred_check_branch
        %180 = sbr.rel (%p178) target = $region32
      $region31: #{residual_block.1} parent=5 // pred_region
        // Predicated region
        $region33: #{residual_block.1} parent=31 // pred_check
          %p181 = pneg %p34
        $region34: #{residual_block.1} parent=31 // pred_check_branch
          %183 = sbr.rel (%p181) target = $region36
        $region35: #{residual_block.1} parent=31 // pred_region
          %p184 = scmp.lt.s32.totalorder %s14, 1
          %s185 = scalar_select %p184, %s14, 1
          %s186 = smul.addr %s185, 32
          %s187 = smul.addr %s186, 8
          %s188 = scalar_lea.vmem %s0, %s187
        $region36: #{residual_block.1} parent=31 // pred_fallthru
          _
      $region32: #{residual_block.1} parent=5 // pred_fallthru
        _
      %p189 = scmp.le.s32.totalorder 1, %s14
      %p190 = scmp.lt.s32.totalorder %s14, 3
      %p191 = pnand %p189, %p190
      %p192 = pneg %p191
      // Predicated region
      $region37: #{residual_block.1} parent=5 // pred_check
        _
      $region38: #{residual_block.1} parent=5 // pred_check_branch
        %194 = sbr.rel (%p191) target = $region40
      $region39: #{residual_block.1} parent=5 // pred_region
        %s195 = ssub.s32 %s14, 1
        %p196 = scmp.lt.s32.totalorder %s19, 1
        %s197 = scalar_select %p196, %s19, 1
        %s198 = smul.addr %s197, 32
        %s199 = smul.addr %s198, 8
        %s200 = scalar_lea.vmem %s0, %s199
        %p201 = pneg %p40
        %p202 = pneg %p37
        %p203 = pneg %p61
        %p204 = pneg %p58
        %p205 = pneg %p82
        %p206 = pneg %p79
        %p207 = pneg %p103
        %p208 = pneg %p100
        %p209 = pneg %p124
        %p210 = pneg %p121
        %p211 = pneg %p150
        %p212 = pneg %p147
        %s213 = sand.u32 %s137, 1
        %s214 = scalar_lea.sflag [#allocation4], %s213
        %s215 = sand.u32 %s137, 1
        %s216 = smul.addr %s215, 256
        %s217 = scalar_lea.vmem [#allocation3], %s216
        %p218 = scmp.lt.s32.totalorder %s19, 1
        %s219 = scalar_select %p218, %s19, 1
        %s220 = smul.addr %s219, 32
        %s221 = smul.addr %s220, 8
        %s222 = scalar_lea.vmem %s0, %s221
        %224 = vst [vmem:[#allocation2] sm:$0xff] 0.0
        %225 = vst [vmem:[#allocation2 + $0x8] sm:$0xff] 0.0
        %226 = vst [vmem:[#allocation2 + $0x10] sm:$0xff] 0.0
        %227 = vst [vmem:[#allocation2 + $0x18] sm:$0xff] 0.0
        %228 = vst [vmem:[#allocation2 + $0x20] sm:$0xff] 0.0
        %229 = vst [vmem:[#allocation2 + $0x28] sm:$0xff] 0.0
        %230 = vst [vmem:[#allocation2 + $0x30] sm:$0xff] 0.0
        %231 = vst [vmem:[#allocation2 + $0x38] sm:$0xff] 0.0
        %232 = vst [vmem:[#allocation2 + $0x40] sm:$0xff] 0.0
        %233 = vst [vmem:[#allocation2 + $0x48] sm:$0xff] 0.0
        %234 = vst [vmem:[#allocation2 + $0x50] sm:$0xff] 0.0
        %235 = vst [vmem:[#allocation2 + $0x58] sm:$0xff] 0.0
        %236 = vst [vmem:[#allocation2 + $0x60] sm:$0xff] 0.0
        %237 = vst [vmem:[#allocation2 + $0x68] sm:$0xff] 0.0
        %238 = vst [vmem:[#allocation2 + $0x70] sm:$0xff] 0.0
        %239 = vst [vmem:[#allocation2 + $0x78] sm:$0xff] 0.0
        %240 = vst [vmem:[#allocation2 + $0x80] sm:$0xff] 0.0
        %241 = vst [vmem:[#allocation2 + $0x88] sm:$0xff] 0.0
        %242 = vst [vmem:[#allocation2 + $0x90] sm:$0xff] 0.0
        %243 = vst [vmem:[#allocation2 + $0x98] sm:$0xff] 0.0
        %244 = vst [vmem:[#allocation2 + $0xa0] sm:$0xff] 0.0
        %245 = vst [vmem:[#allocation2 + $0xa8] sm:$0xff] 0.0
        %246 = vst [vmem:[#allocation2 + $0xb0] sm:$0xff] 0.0
        %247 = vst [vmem:[#allocation2 + $0xb8] sm:$0xff] 0.0
        %248 = vst [vmem:[#allocation2 + $0xc0] sm:$0xff] 0.0
        %249 = vst [vmem:[#allocation2 + $0xc8] sm:$0xff] 0.0
        %250 = vst [vmem:[#allocation2 + $0xd0] sm:$0xff] 0.0
        %251 = vst [vmem:[#allocation2 + $0xd8] sm:$0xff] 0.0
        %252 = vst [vmem:[#allocation2 + $0xe0] sm:$0xff] 0.0
        %253 = vst [vmem:[#allocation2 + $0xe8] sm:$0xff] 0.0
        %254 = vst [vmem:[#allocation2 + $0xf0] sm:$0xff] 0.0
        %255 = vst [vmem:[#allocation2 + $0xf8] sm:$0xff] 0.0
        %256 = vst [vmem:[#allocation2 + $0x100] sm:$0xff] 0.0
        %257 = vst [vmem:[#allocation2 + $0x108] sm:$0xff] 0.0
        %258 = vst [vmem:[#allocation2 + $0x110] sm:$0xff] 0.0
        %259 = vst [vmem:[#allocation2 + $0x118] sm:$0xff] 0.0
        %260 = vst [vmem:[#allocation2 + $0x120] sm:$0xff] 0.0
        %261 = vst [vmem:[#allocation2 + $0x128] sm:$0xff] 0.0
        %262 = vst [vmem:[#allocation2 + $0x130] sm:$0xff] 0.0
        %263 = vst [vmem:[#allocation2 + $0x138] sm:$0xff] 0.0
        %264 = vst [vmem:[#allocation2 + $0x140] sm:$0xff] 0.0
        %265 = vst [vmem:[#allocation2 + $0x148] sm:$0xff] 0.0
        %266 = vst [vmem:[#allocation2 + $0x150] sm:$0xff] 0.0
        %267 = vst [vmem:[#allocation2 + $0x158] sm:$0xff] 0.0
        %268 = vst [vmem:[#allocation2 + $0x160] sm:$0xff] 0.0
        %269 = vst [vmem:[#allocation2 + $0x168] sm:$0xff] 0.0
        %270 = vst [vmem:[#allocation2 + $0x170] sm:$0xff] 0.0
        %271 = vst [vmem:[#allocation2 + $0x178] sm:$0xff] 0.0
        %272 = vst [vmem:[#allocation2 + $0x180] sm:$0xff] 0.0
        %273 = vst [vmem:[#allocation2 + $0x188] sm:$0xff] 0.0
        %274 = vst [vmem:[#allocation2 + $0x190] sm:$0xff] 0.0
        %275 = vst [vmem:[#allocation2 + $0x198] sm:$0xff] 0.0
        %276 = vst [vmem:[#allocation2 + $0x1a0] sm:$0xff] 0.0
        %277 = vst [vmem:[#allocation2 + $0x1a8] sm:$0xff] 0.0
        %278 = vst [vmem:[#allocation2 + $0x1b0] sm:$0xff] 0.0
        %279 = vst [vmem:[#allocation2 + $0x1b8] sm:$0xff] 0.0
        %280 = vst [vmem:[#allocation2 + $0x1c0] sm:$0xff] 0.0
        %281 = vst [vmem:[#allocation2 + $0x1c8] sm:$0xff] 0.0
        %282 = vst [vmem:[#allocation2 + $0x1d0] sm:$0xff] 0.0
        %283 = vst [vmem:[#allocation2 + $0x1d8] sm:$0xff] 0.0
        %284 = vst [vmem:[#allocation2 + $0x1e0] sm:$0xff] 0.0
        %285 = vst [vmem:[#allocation2 + $0x1e8] sm:$0xff] 0.0
        %286 = vst [vmem:[#allocation2 + $0x1f0] sm:$0xff] 0.0
        %287 = vst [vmem:[#allocation2 + $0x1f8] sm:$0xff] 0.0
        %288 = vst [vmem:[#allocation2 + $0x200] sm:$0xff] 0.0
        %289 = vst [vmem:[#allocation2 + $0x208] sm:$0xff] 0.0
        %290 = vst [vmem:[#allocation2 + $0x210] sm:$0xff] 0.0
        %291 = vst [vmem:[#allocation2 + $0x218] sm:$0xff] 0.0
        %292 = vst [vmem:[#allocation2 + $0x220] sm:$0xff] 0.0
        %293 = vst [vmem:[#allocation2 + $0x228] sm:$0xff] 0.0
        %294 = vst [vmem:[#allocation2 + $0x230] sm:$0xff] 0.0
        %295 = vst [vmem:[#allocation2 + $0x238] sm:$0xff] 0.0
        %v296 = vld [vmem:[%s222] sm:$0xff]
        %v297 = vld [vmem:[%s222 + $0x8] sm:$0xff]
        %v298 = vld [vmem:[%s222 + $0x10] sm:$0xff]
        %v299 = vld [vmem:[%s222 + $0x18] sm:$0xff]
        %v300 = vld [vmem:[%s222 + $0x20] sm:$0xff]
        %v301 = vld [vmem:[%s222 + $0x28] sm:$0xff]
        %v302 = vld [vmem:[%s222 + $0x30] sm:$0xff]
        %v303 = vld [vmem:[%s222 + $0x38] sm:$0xff]
        %v304 = vld [vmem:[%s222 + $0x40] sm:$0xff]
        %v305 = vld [vmem:[%s222 + $0x48] sm:$0xff]
        %v306 = vld [vmem:[%s222 + $0x50] sm:$0xff]
        %v307 = vld [vmem:[%s222 + $0x58] sm:$0xff]
        %v308 = vld [vmem:[%s222 + $0x60] sm:$0xff]
        %v309 = vld [vmem:[%s222 + $0x68] sm:$0xff]
        %v310 = vld [vmem:[%s222 + $0x70] sm:$0xff]
        %v311 = vld [vmem:[%s222 + $0x78] sm:$0xff]
        %v312 = vld [vmem:[%s222 + $0x80] sm:$0xff]
        %v313 = vld [vmem:[%s222 + $0x88] sm:$0xff]
        %v314 = vld [vmem:[%s222 + $0x90] sm:$0xff]
        %v315 = vld [vmem:[%s222 + $0x98] sm:$0xff]
        %v316 = vld [vmem:[%s222 + $0xa0] sm:$0xff]
        %v317 = vld [vmem:[%s222 + $0xa8] sm:$0xff]
        %v318 = vld [vmem:[%s222 + $0xb0] sm:$0xff]
        %v319 = vld [vmem:[%s222 + $0xb8] sm:$0xff]
        %v320 = vld [vmem:[%s222 + $0xc0] sm:$0xff]
        %v321 = vld [vmem:[%s222 + $0xc8] sm:$0xff]
        %v322 = vld [vmem:[%s222 + $0xd0] sm:$0xff]
        %v323 = vld [vmem:[%s222 + $0xd8] sm:$0xff]
        %v324 = vld [vmem:[%s222 + $0xe0] sm:$0xff]
        %v325 = vld [vmem:[%s222 + $0xe8] sm:$0xff]
        %v326 = vld [vmem:[%s222 + $0xf0] sm:$0xff]
        %v327 = vld [vmem:[%s222 + $0xf8] sm:$0xff]
        %s328 = scalar_lea.vmem [#allocation2], 32
        %329 = vst [vmem:[%s328 + $0x8] sm:$0xff] %v296
        %330 = vst [vmem:[%s328 + $0x10] sm:$0xff] %v297
        %331 = vst [vmem:[%s328 + $0x28] sm:$0xff] %v298
        %332 = vst [vmem:[%s328 + $0x30] sm:$0xff] %v299
        %333 = vst [vmem:[%s328 + $0x48] sm:$0xff] %v300
        %334 = vst [vmem:[%s328 + $0x50] sm:$0xff] %v301
        %335 = vst [vmem:[%s328 + $0x68] sm:$0xff] %v302
        %336 = vst [vmem:[%s328 + $0x70] sm:$0xff] %v303
        %337 = vst [vmem:[%s328 + $0x88] sm:$0xff] %v304
        %338 = vst [vmem:[%s328 + $0x90] sm:$0xff] %v305
        %339 = vst [vmem:[%s328 + $0xa8] sm:$0xff] %v306
        %340 = vst [vmem:[%s328 + $0xb0] sm:$0xff] %v307
        %341 = vst [vmem:[%s328 + $0xc8] sm:$0xff] %v308
        %342 = vst [vmem:[%s328 + $0xd0] sm:$0xff] %v309
        %343 = vst [vmem:[%s328 + $0xe8] sm:$0xff] %v310
        %344 = vst [vmem:[%s328 + $0xf0] sm:$0xff] %v311
        %345 = vst [vmem:[%s328 + $0x108] sm:$0xff] %v312
        %346 = vst [vmem:[%s328 + $0x110] sm:$0xff] %v313
        %347 = vst [vmem:[%s328 + $0x128] sm:$0xff] %v314
        %348 = vst [vmem:[%s328 + $0x130] sm:$0xff] %v315
        %349 = vst [vmem:[%s328 + $0x148] sm:$0xff] %v316
        %350 = vst [vmem:[%s328 + $0x150] sm:$0xff] %v317
        %351 = vst [vmem:[%s328 + $0x168] sm:$0xff] %v318
        %352 = vst [vmem:[%s328 + $0x170] sm:$0xff] %v319
        %353 = vst [vmem:[%s328 + $0x188] sm:$0xff] %v320
        %354 = vst [vmem:[%s328 + $0x190] sm:$0xff] %v321
        %355 = vst [vmem:[%s328 + $0x1a8] sm:$0xff] %v322
        %356 = vst [vmem:[%s328 + $0x1b0] sm:$0xff] %v323
        %357 = vst [vmem:[%s328 + $0x1c8] sm:$0xff] %v324
        %358 = vst [vmem:[%s328 + $0x1d0] sm:$0xff] %v325
        %359 = vst [vmem:[%s328 + $0x1e8] sm:$0xff] %v326
        %360 = vst [vmem:[%s328 + $0x1f0] sm:$0xff] %v327
        %v361 = vld [vmem:[#allocation2 + $0x7] sm:$0xff]
        %v362 = vld [vmem:[#allocation2 + $0xf] sm:$0xff]
        %v363 = vld [vmem:[#allocation2 + $0x27] sm:$0xff]
        %v364 = vld [vmem:[#allocation2 + $0x2f] sm:$0xff]
        %v365 = vld [vmem:[#allocation2 + $0x47] sm:$0xff]
        %v366 = vld [vmem:[#allocation2 + $0x4f] sm:$0xff]
        %v367 = vld [vmem:[#allocation2 + $0x67] sm:$0xff]
        %v368 = vld [vmem:[#allocation2 + $0x6f] sm:$0xff]
        %v369 = vld [vmem:[#allocation2 + $0x87] sm:$0xff]
        %v370 = vld [vmem:[#allocation2 + $0x8f] sm:$0xff]
        %v371 = vld [vmem:[#allocation2 + $0xa7] sm:$0xff]
        %v372 = vld [vmem:[#allocation2 + $0xaf] sm:$0xff]
        %v373 = vld [vmem:[#allocation2 + $0xc7] sm:$0xff]
        %v374 = vld [vmem:[#allocation2 + $0xcf] sm:$0xff]
        %v375 = vld [vmem:[#allocation2 + $0xe7] sm:$0xff]
        %v376 = vld [vmem:[#allocation2 + $0xef] sm:$0xff]
        %v377 = vld [vmem:[#allocation2 + $0x107] sm:$0xff]
        %v378 = vld [vmem:[#allocation2 + $0x10f] sm:$0xff]
        %v379 = vld [vmem:[#allocation2 + $0x127] sm:$0xff]
        %v380 = vld [vmem:[#allocation2 + $0x12f] sm:$0xff]
        %v381 = vld [vmem:[#allocation2 + $0x147] sm:$0xff]
        %v382 = vld [vmem:[#allocation2 + $0x14f] sm:$0xff]
        %v383 = vld [vmem:[#allocation2 + $0x167] sm:$0xff]
        %v384 = vld [vmem:[#allocation2 + $0x16f] sm:$0xff]
        %v385 = vld [vmem:[#allocation2 + $0x187] sm:$0xff]
        %v386 = vld [vmem:[#allocation2 + $0x18f] sm:$0xff]
        %v387 = vld [vmem:[#allocation2 + $0x1a7] sm:$0xff]
        %v388 = vld [vmem:[#allocation2 + $0x1af] sm:$0xff]
        %v389 = vld [vmem:[#allocation2 + $0x1c7] sm:$0xff]
        %v390 = vld [vmem:[#allocation2 + $0x1cf] sm:$0xff]
        %v391 = vld [vmem:[#allocation2 + $0x1e7] sm:$0xff]
        %v392 = vld [vmem:[#allocation2 + $0x1ef] sm:$0xff]
        %v393 = vld [vmem:[#allocation2 + $0x8] sm:$0xff]
        %v394 = vld [vmem:[#allocation2 + $0x10] sm:$0xff]
        %v395 = vld [vmem:[#allocation2 + $0x28] sm:$0xff]
        %v396 = vld [vmem:[#allocation2 + $0x30] sm:$0xff]
        %v397 = vld [vmem:[#allocation2 + $0x48] sm:$0xff]
        %v398 = vld [vmem:[#allocation2 + $0x50] sm:$0xff]
        %v399 = vld [vmem:[#allocation2 + $0x68] sm:$0xff]
        %v400 = vld [vmem:[#allocation2 + $0x70] sm:$0xff]
        %v401 = vld [vmem:[#allocation2 + $0x88] sm:$0xff]
        %v402 = vld [vmem:[#allocation2 + $0x90] sm:$0xff]
        %v403 = vld [vmem:[#allocation2 + $0xa8] sm:$0xff]
        %v404 = vld [vmem:[#allocation2 + $0xb0] sm:$0xff]
        %v405 = vld [vmem:[#allocation2 + $0xc8] sm:$0xff]
        %v406 = vld [vmem:[#allocation2 + $0xd0] sm:$0xff]
        %v407 = vld [vmem:[#allocation2 + $0xe8] sm:$0xff]
        %v408 = vld [vmem:[#allocation2 + $0xf0] sm:$0xff]
        %v409 = vld [vmem:[#allocation2 + $0x108] sm:$0xff]
        %v410 = vld [vmem:[#allocation2 + $0x110] sm:$0xff]
        %v411 = vld [vmem:[#allocation2 + $0x128] sm:$0xff]
        %v412 = vld [vmem:[#allocation2 + $0x130] sm:$0xff]
        %v413 = vld [vmem:[#allocation2 + $0x148] sm:$0xff]
        %v414 = vld [vmem:[#allocation2 + $0x150] sm:$0xff]
        %v415 = vld [vmem:[#allocation2 + $0x168] sm:$0xff]
        %v416 = vld [vmem:[#allocation2 + $0x170] sm:$0xff]
        %v417 = vld [vmem:[#allocation2 + $0x188] sm:$0xff]
        %v418 = vld [vmem:[#allocation2 + $0x190] sm:$0xff]
        %v419 = vld [vmem:[#allocation2 + $0x1a8] sm:$0xff]
        %v420 = vld [vmem:[#allocation2 + $0x1b0] sm:$0xff]
        %v421 = vld [vmem:[#allocation2 + $0x1c8] sm:$0xff]
        %v422 = vld [vmem:[#allocation2 + $0x1d0] sm:$0xff]
        %v423 = vld [vmem:[#allocation2 + $0x1e8] sm:$0xff]
        %v424 = vld [vmem:[#allocation2 + $0x1f0] sm:$0xff]
        %v425 = vld [vmem:[#allocation2 + $0x9] sm:$0xff]
        %v426 = vld [vmem:[#allocation2 + $0x11] sm:$0xff]
        %v427 = vld [vmem:[#allocation2 + $0x29] sm:$0xff]
        %v428 = vld [vmem:[#allocation2 + $0x31] sm:$0xff]
        %v429 = vld [vmem:[#allocation2 + $0x49] sm:$0xff]
        %v430 = vld [vmem:[#allocation2 + $0x51] sm:$0xff]
        %v431 = vld [vmem:[#allocation2 + $0x69] sm:$0xff]
        %v432 = vld [vmem:[#allocation2 + $0x71] sm:$0xff]
        %v433 = vld [vmem:[#allocation2 + $0x89] sm:$0xff]
        %v434 = vld [vmem:[#allocation2 + $0x91] sm:$0xff]
        %v435 = vld [vmem:[#allocation2 + $0xa9] sm:$0xff]
        %v436 = vld [vmem:[#allocation2 + $0xb1] sm:$0xff]
        %v437 = vld [vmem:[#allocation2 + $0xc9] sm:$0xff]
        %v438 = vld [vmem:[#allocation2 + $0xd1] sm:$0xff]
        %v439 = vld [vmem:[#allocation2 + $0xe9] sm:$0xff]
        %v440 = vld [vmem:[#allocation2 + $0xf1] sm:$0xff]
        %v441 = vld [vmem:[#allocation2 + $0x109] sm:$0xff]
        %v442 = vld [vmem:[#allocation2 + $0x111] sm:$0xff]
        %v443 = vld [vmem:[#allocation2 + $0x129] sm:$0xff]
        %v444 = vld [vmem:[#allocation2 + $0x131] sm:$0xff]
        %v445 = vld [vmem:[#allocation2 + $0x149] sm:$0xff]
        %v446 = vld [vmem:[#allocation2 + $0x151] sm:$0xff]
        %v447 = vld [vmem:[#allocation2 + $0x169] sm:$0xff]
        %v448 = vld [vmem:[#allocation2 + $0x171] sm:$0xff]
        %v449 = vld [vmem:[#allocation2 + $0x189] sm:$0xff]
        %v450 = vld [vmem:[#allocation2 + $0x191] sm:$0xff]
        %v451 = vld [vmem:[#allocation2 + $0x1a9] sm:$0xff]
        %v452 = vld [vmem:[#allocation2 + $0x1b1] sm:$0xff]
        %v453 = vld [vmem:[#allocation2 + $0x1c9] sm:$0xff]
        %v454 = vld [vmem:[#allocation2 + $0x1d1] sm:$0xff]
        %v455 = vld [vmem:[#allocation2 + $0x1e9] sm:$0xff]
        %v456 = vld [vmem:[#allocation2 + $0x1f1] sm:$0xff]
        %v457 = vpack.c.bf16 %v362, %v361
        %v458 = vpack.c.bf16 %v394, %v393
        %v459 = vpack.c.bf16 %v426, %v425
        %v460 = vpack.c.bf16 %v364, %v363
        %v461 = vpack.c.bf16 %v396, %v395
        %v462 = vpack.c.bf16 %v428, %v427
        %v463 = vpack.c.bf16 %v366, %v365
        %v464 = vpack.c.bf16 %v398, %v397
        %v465 = vpack.c.bf16 %v430, %v429
        %v466 = vpack.c.bf16 %v368, %v367
        %v467 = vpack.c.bf16 %v400, %v399
        %v468 = vpack.c.bf16 %v432, %v431
        %v469 = vpack.c.bf16 %v370, %v369
        %v470 = vpack.c.bf16 %v402, %v401
        %v471 = vpack.c.bf16 %v434, %v433
        %v472 = vpack.c.bf16 %v372, %v371
        %v473 = vpack.c.bf16 %v404, %v403
        %v474 = vpack.c.bf16 %v436, %v435
        %v475 = vpack.c.bf16 %v374, %v373
        %v476 = vpack.c.bf16 %v406, %v405
        %v477 = vpack.c.bf16 %v438, %v437
        %v478 = vpack.c.bf16 %v376, %v375
        %v479 = vpack.c.bf16 %v408, %v407
        %v480 = vpack.c.bf16 %v440, %v439
        %v481 = vpack.c.bf16 %v378, %v377
        %v482 = vpack.c.bf16 %v410, %v409
        %v483 = vpack.c.bf16 %v442, %v441
        %v484 = vpack.c.bf16 %v380, %v379
        %v485 = vpack.c.bf16 %v412, %v411
        %v486 = vpack.c.bf16 %v444, %v443
        %v487 = vpack.c.bf16 %v382, %v381
        %v488 = vpack.c.bf16 %v414, %v413
        %v489 = vpack.c.bf16 %v446, %v445
        %v490 = vpack.c.bf16 %v384, %v383
        %v491 = vpack.c.bf16 %v416, %v415
        %v492 = vpack.c.bf16 %v448, %v447
        %v493 = vpack.c.bf16 %v386, %v385
        %v494 = vpack.c.bf16 %v418, %v417
        %v495 = vpack.c.bf16 %v450, %v449
        %v496 = vpack.c.bf16 %v388, %v387
        %v497 = vpack.c.bf16 %v420, %v419
        %v498 = vpack.c.bf16 %v452, %v451
        %v499 = vpack.c.bf16 %v390, %v389
        %v500 = vpack.c.bf16 %v422, %v421
        %v501 = vpack.c.bf16 %v454, %v453
        %v502 = vpack.c.bf16 %v392, %v391
        %v503 = vpack.c.bf16 %v424, %v423
        %v504 = vpack.c.bf16 %v456, %v455
        %v505 = vld [vmem:[%s1] sm:$0xf]
        %v506 = vld [vmem:[%s1 + $0x4] sm:$0xf]
        %v507 = vld [vmem:[%s1 + $0x8] sm:$0xf]
        %v508 = vld [vmem:[%s1 + $0xc] sm:$0xf]
        %v509 = vld [vmem:[%s1 + $0x10] sm:$0xf]
        %v510 = vld [vmem:[%s1 + $0x14] sm:$0xf]
        %v511 = vld [vmem:[%s1 + $0x18] sm:$0xf]
        %v512 = vld [vmem:[%s1 + $0x1c] sm:$0xf]
        %v513 = vld [vmem:[%s1 + $0x20] sm:$0xf]
        %v514 = vld [vmem:[%s1 + $0x24] sm:$0xf]
        %v515 = vld [vmem:[%s1 + $0x28] sm:$0xf]
        %v516 = vld [vmem:[%s1 + $0x2c] sm:$0xf]
        %v517 = vld [vmem:[%s1 + $0x30] sm:$0xf]
        %v518 = vld [vmem:[%s1 + $0x34] sm:$0xf]
        %v519 = vld [vmem:[%s1 + $0x38] sm:$0xf]
        %v520 = vld [vmem:[%s1 + $0x3c] sm:$0xf]
        %v521 = vld [vmem:[%s1 + $0x40] sm:$0xf]
        %v522 = vld [vmem:[%s1 + $0x44] sm:$0xf]
        %v523 = vld [vmem:[%s1 + $0x48] sm:$0xf]
        %v524 = vld [vmem:[%s1 + $0x4c] sm:$0xf]
        %v525 = vld [vmem:[%s1 + $0x50] sm:$0xf]
        %v526 = vld [vmem:[%s1 + $0x54] sm:$0xf]
        %v527 = vld [vmem:[%s1 + $0x58] sm:$0xf]
        %v528 = vld [vmem:[%s1 + $0x5c] sm:$0xf]
        %v529 = vld [vmem:[%s1 + $0x60] sm:$0xf]
        %v530 = vld [vmem:[%s1 + $0x64] sm:$0xf]
        %v531 = vld [vmem:[%s1 + $0x68] sm:$0xf]
        %v532 = vld [vmem:[%s1 + $0x6c] sm:$0xf]
        %v533 = vld [vmem:[%s1 + $0x70] sm:$0xf]
        %v534 = vld [vmem:[%s1 + $0x74] sm:$0xf]
        %v535 = vld [vmem:[%s1 + $0x78] sm:$0xf]
        %v536 = vld [vmem:[%s1 + $0x7c] sm:$0xf]
        %v537 = vld [vmem:[%s1 + $0x80] sm:$0xf]
        %v538 = vld [vmem:[%s1 + $0x84] sm:$0xf]
        %v539 = vld [vmem:[%s1 + $0x88] sm:$0xf]
        %v540 = vld [vmem:[%s1 + $0x8c] sm:$0xf]
        %v541 = vld [vmem:[%s1 + $0x90] sm:$0xf]
        %v542 = vld [vmem:[%s1 + $0x94] sm:$0xf]
        %v543 = vld [vmem:[%s1 + $0x98] sm:$0xf]
        %v544 = vld [vmem:[%s1 + $0x9c] sm:$0xf]
        %v545 = vld [vmem:[%s1 + $0xa0] sm:$0xf]
        %v546 = vld [vmem:[%s1 + $0xa4] sm:$0xf]
        %v547 = vld [vmem:[%s1 + $0xa8] sm:$0xf]
        %v548 = vld [vmem:[%s1 + $0xac] sm:$0xf]
        %v549 = vld [vmem:[%s1 + $0xb0] sm:$0xf]
        %v550 = vld [vmem:[%s1 + $0xb4] sm:$0xf]
        %v551 = vld [vmem:[%s1 + $0xb8] sm:$0xf]
        %v552 = vld [vmem:[%s1 + $0xbc] sm:$0xf]
        %v553 = vld [vmem:[%s328 + $0x7] sm:$0xff]
        %v554 = vld [vmem:[%s328 + $0xf] sm:$0xff]
        %v555 = vld [vmem:[%s328 + $0x27] sm:$0xff]
        %v556 = vld [vmem:[%s328 + $0x2f] sm:$0xff]
        %v557 = vld [vmem:[%s328 + $0x47] sm:$0xff]
        %v558 = vld [vmem:[%s328 + $0x4f] sm:$0xff]
        %v559 = vld [vmem:[%s328 + $0x67] sm:$0xff]
        %v560 = vld [vmem:[%s328 + $0x6f] sm:$0xff]
        %v561 = vld [vmem:[%s328 + $0x87] sm:$0xff]
        %v562 = vld [vmem:[%s328 + $0x8f] sm:$0xff]
        %v563 = vld [vmem:[%s328 + $0xa7] sm:$0xff]
        %v564 = vld [vmem:[%s328 + $0xaf] sm:$0xff]
        %v565 = vld [vmem:[%s328 + $0xc7] sm:$0xff]
        %v566 = vld [vmem:[%s328 + $0xcf] sm:$0xff]
        %v567 = vld [vmem:[%s328 + $0xe7] sm:$0xff]
        %v568 = vld [vmem:[%s328 + $0xef] sm:$0xff]
        %v569 = vld [vmem:[%s328 + $0x107] sm:$0xff]
        %v570 = vld [vmem:[%s328 + $0x10f] sm:$0xff]
        %v571 = vld [vmem:[%s328 + $0x127] sm:$0xff]
        %v572 = vld [vmem:[%s328 + $0x12f] sm:$0xff]
        %v573 = vld [vmem:[%s328 + $0x147] sm:$0xff]
        %v574 = vld [vmem:[%s328 + $0x14f] sm:$0xff]
        %v575 = vld [vmem:[%s328 + $0x167] sm:$0xff]
        %v576 = vld [vmem:[%s328 + $0x16f] sm:$0xff]
        %v577 = vld [vmem:[%s328 + $0x187] sm:$0xff]
        %v578 = vld [vmem:[%s328 + $0x18f] sm:$0xff]
        %v579 = vld [vmem:[%s328 + $0x1a7] sm:$0xff]
        %v580 = vld [vmem:[%s328 + $0x1af] sm:$0xff]
        %v581 = vld [vmem:[%s328 + $0x1c7] sm:$0xff]
        %v582 = vld [vmem:[%s328 + $0x1cf] sm:$0xff]
        %v583 = vld [vmem:[%s328 + $0x1e7] sm:$0xff]
        %v584 = vld [vmem:[%s328 + $0x1ef] sm:$0xff]
        %v585 = vld [vmem:[%s328 + $0x8] sm:$0xff]
        %v586 = vld [vmem:[%s328 + $0x10] sm:$0xff]
        %v587 = vld [vmem:[%s328 + $0x28] sm:$0xff]
        %v588 = vld [vmem:[%s328 + $0x30] sm:$0xff]
        %v589 = vld [vmem:[%s328 + $0x48] sm:$0xff]
        %v590 = vld [vmem:[%s328 + $0x50] sm:$0xff]
        %v591 = vld [vmem:[%s328 + $0x68] sm:$0xff]
        %v592 = vld [vmem:[%s328 + $0x70] sm:$0xff]
        %v593 = vld [vmem:[%s328 + $0x88] sm:$0xff]
        %v594 = vld [vmem:[%s328 + $0x90] sm:$0xff]
        %v595 = vld [vmem:[%s328 + $0xa8] sm:$0xff]
        %v596 = vld [vmem:[%s328 + $0xb0] sm:$0xff]
        %v597 = vld [vmem:[%s328 + $0xc8] sm:$0xff]
        %v598 = vld [vmem:[%s328 + $0xd0] sm:$0xff]
        %v599 = vld [vmem:[%s328 + $0xe8] sm:$0xff]
        %v600 = vld [vmem:[%s328 + $0xf0] sm:$0xff]
        %v601 = vld [vmem:[%s328 + $0x108] sm:$0xff]
        %v602 = vld [vmem:[%s328 + $0x110] sm:$0xff]
        %v603 = vld [vmem:[%s328 + $0x128] sm:$0xff]
        %v604 = vld [vmem:[%s328 + $0x130] sm:$0xff]
        %v605 = vld [vmem:[%s328 + $0x148] sm:$0xff]
        %v606 = vld [vmem:[%s328 + $0x150] sm:$0xff]
        %v607 = vld [vmem:[%s328 + $0x168] sm:$0xff]
        %v608 = vld [vmem:[%s328 + $0x170] sm:$0xff]
        %v609 = vld [vmem:[%s328 + $0x188] sm:$0xff]
        %v610 = vld [vmem:[%s328 + $0x190] sm:$0xff]
        %v611 = vld [vmem:[%s328 + $0x1a8] sm:$0xff]
        %v612 = vld [vmem:[%s328 + $0x1b0] sm:$0xff]
        %v613 = vld [vmem:[%s328 + $0x1c8] sm:$0xff]
        %v614 = vld [vmem:[%s328 + $0x1d0] sm:$0xff]
        %v615 = vld [vmem:[%s328 + $0x1e8] sm:$0xff]
        %v616 = vld [vmem:[%s328 + $0x1f0] sm:$0xff]
        %v617 = vld [vmem:[%s328 + $0x9] sm:$0xff]
        %v618 = vld [vmem:[%s328 + $0x11] sm:$0xff]
        %v619 = vld [vmem:[%s328 + $0x29] sm:$0xff]
        %v620 = vld [vmem:[%s328 + $0x31] sm:$0xff]
        %v621 = vld [vmem:[%s328 + $0x49] sm:$0xff]
        %v622 = vld [vmem:[%s328 + $0x51] sm:$0xff]
        %v623 = vld [vmem:[%s328 + $0x69] sm:$0xff]
        %v624 = vld [vmem:[%s328 + $0x71] sm:$0xff]
        %v625 = vld [vmem:[%s328 + $0x89] sm:$0xff]
        %v626 = vld [vmem:[%s328 + $0x91] sm:$0xff]
        %v627 = vld [vmem:[%s328 + $0xa9] sm:$0xff]
        %v628 = vld [vmem:[%s328 + $0xb1] sm:$0xff]
        %v629 = vld [vmem:[%s328 + $0xc9] sm:$0xff]
        %v630 = vld [vmem:[%s328 + $0xd1] sm:$0xff]
        %v631 = vld [vmem:[%s328 + $0xe9] sm:$0xff]
        %v632 = vld [vmem:[%s328 + $0xf1] sm:$0xff]
        %v633 = vld [vmem:[%s328 + $0x109] sm:$0xff]
        %v634 = vld [vmem:[%s328 + $0x111] sm:$0xff]
        %v635 = vld [vmem:[%s328 + $0x129] sm:$0xff]
        %v636 = vld [vmem:[%s328 + $0x131] sm:$0xff]
        %v637 = vld [vmem:[%s328 + $0x149] sm:$0xff]
        %v638 = vld [vmem:[%s328 + $0x151] sm:$0xff]
        %v639 = vld [vmem:[%s328 + $0x169] sm:$0xff]
        %v640 = vld [vmem:[%s328 + $0x171] sm:$0xff]
        %v641 = vld [vmem:[%s328 + $0x189] sm:$0xff]
        %v642 = vld [vmem:[%s328 + $0x191] sm:$0xff]
        %v643 = vld [vmem:[%s328 + $0x1a9] sm:$0xff]
        %v644 = vld [vmem:[%s328 + $0x1b1] sm:$0xff]
        %v645 = vld [vmem:[%s328 + $0x1c9] sm:$0xff]
        %v646 = vld [vmem:[%s328 + $0x1d1] sm:$0xff]
        %v647 = vld [vmem:[%s328 + $0x1e9] sm:$0xff]
        %v648 = vld [vmem:[%s328 + $0x1f1] sm:$0xff]
        %v649 = vpack.c.bf16 %v554, %v553
        %v650 = vpack.c.bf16 %v586, %v585
        %v651 = vpack.c.bf16 %v618, %v617
        %v652 = vpack.c.bf16 %v556, %v555
        %v653 = vpack.c.bf16 %v588, %v587
        %v654 = vpack.c.bf16 %v620, %v619
        %v655 = vpack.c.bf16 %v558, %v557
        %v656 = vpack.c.bf16 %v590, %v589
        %v657 = vpack.c.bf16 %v622, %v621
        %v658 = vpack.c.bf16 %v560, %v559
        %v659 = vpack.c.bf16 %v592, %v591
        %v660 = vpack.c.bf16 %v624, %v623
        %v661 = vpack.c.bf16 %v562, %v561
        %v662 = vpack.c.bf16 %v594, %v593
        %v663 = vpack.c.bf16 %v626, %v625
        %v664 = vpack.c.bf16 %v564, %v563
        %v665 = vpack.c.bf16 %v596, %v595
        %v666 = vpack.c.bf16 %v628, %v627
        %v667 = vpack.c.bf16 %v566, %v565
        %v668 = vpack.c.bf16 %v598, %v597
        %v669 = vpack.c.bf16 %v630, %v629
        %v670 = vpack.c.bf16 %v568, %v567
        %v671 = vpack.c.bf16 %v600, %v599
        %v672 = vpack.c.bf16 %v632, %v631
        %v673 = vpack.c.bf16 %v570, %v569
        %v674 = vpack.c.bf16 %v602, %v601
        %v675 = vpack.c.bf16 %v634, %v633
        %v676 = vpack.c.bf16 %v572, %v571
        %v677 = vpack.c.bf16 %v604, %v603
        %v678 = vpack.c.bf16 %v636, %v635
        %v679 = vpack.c.bf16 %v574, %v573
        %v680 = vpack.c.bf16 %v606, %v605
        %v681 = vpack.c.bf16 %v638, %v637
        %v682 = vpack.c.bf16 %v576, %v575
        %v683 = vpack.c.bf16 %v608, %v607
        %v684 = vpack.c.bf16 %v640, %v639
        %v685 = vpack.c.bf16 %v578, %v577
        %v686 = vpack.c.bf16 %v610, %v609
        %v687 = vpack.c.bf16 %v642, %v641
        %v688 = vpack.c.bf16 %v580, %v579
        %v689 = vpack.c.bf16 %v612, %v611
        %v690 = vpack.c.bf16 %v644, %v643
        %v691 = vpack.c.bf16 %v582, %v581
        %v692 = vpack.c.bf16 %v614, %v613
        %v693 = vpack.c.bf16 %v646, %v645
        %v694 = vpack.c.bf16 %v584, %v583
        %v695 = vpack.c.bf16 %v616, %v615
        %v696 = vpack.c.bf16 %v648, %v647
        %s697 = scalar_lea.vmem %s1, 192
        %v698 = vld [vmem:[%s697] sm:$0xf]
        %v699 = vld [vmem:[%s697 + $0x4] sm:$0xf]
        %v700 = vld [vmem:[%s697 + $0x8] sm:$0xf]
        %v701 = vld [vmem:[%s697 + $0xc] sm:$0xf]
        %v702 = vld [vmem:[%s697 + $0x10] sm:$0xf]
        %v703 = vld [vmem:[%s697 + $0x14] sm:$0xf]
        %v704 = vld [vmem:[%s697 + $0x18] sm:$0xf]
        %v705 = vld [vmem:[%s697 + $0x1c] sm:$0xf]
        %v706 = vld [vmem:[%s697 + $0x20] sm:$0xf]
        %v707 = vld [vmem:[%s697 + $0x24] sm:$0xf]
        %v708 = vld [vmem:[%s697 + $0x28] sm:$0xf]
        %v709 = vld [vmem:[%s697 + $0x2c] sm:$0xf]
        %v710 = vld [vmem:[%s697 + $0x30] sm:$0xf]
        %v711 = vld [vmem:[%s697 + $0x34] sm:$0xf]
        %v712 = vld [vmem:[%s697 + $0x38] sm:$0xf]
        %v713 = vld [vmem:[%s697 + $0x3c] sm:$0xf]
        %v714 = vld [vmem:[%s697 + $0x40] sm:$0xf]
        %v715 = vld [vmem:[%s697 + $0x44] sm:$0xf]
        %v716 = vld [vmem:[%s697 + $0x48] sm:$0xf]
        %v717 = vld [vmem:[%s697 + $0x4c] sm:$0xf]
        %v718 = vld [vmem:[%s697 + $0x50] sm:$0xf]
        %v719 = vld [vmem:[%s697 + $0x54] sm:$0xf]
        %v720 = vld [vmem:[%s697 + $0x58] sm:$0xf]
        %v721 = vld [vmem:[%s697 + $0x5c] sm:$0xf]
        %v722 = vld [vmem:[%s697 + $0x60] sm:$0xf]
        %v723 = vld [vmem:[%s697 + $0x64] sm:$0xf]
        %v724 = vld [vmem:[%s697 + $0x68] sm:$0xf]
        %v725 = vld [vmem:[%s697 + $0x6c] sm:$0xf]
        %v726 = vld [vmem:[%s697 + $0x70] sm:$0xf]
        %v727 = vld [vmem:[%s697 + $0x74] sm:$0xf]
        %v728 = vld [vmem:[%s697 + $0x78] sm:$0xf]
        %v729 = vld [vmem:[%s697 + $0x7c] sm:$0xf]
        %v730 = vld [vmem:[%s697 + $0x80] sm:$0xf]
        %v731 = vld [vmem:[%s697 + $0x84] sm:$0xf]
        %v732 = vld [vmem:[%s697 + $0x88] sm:$0xf]
        %v733 = vld [vmem:[%s697 + $0x8c] sm:$0xf]
        %v734 = vld [vmem:[%s697 + $0x90] sm:$0xf]
        %v735 = vld [vmem:[%s697 + $0x94] sm:$0xf]
        %v736 = vld [vmem:[%s697 + $0x98] sm:$0xf]
        %v737 = vld [vmem:[%s697 + $0x9c] sm:$0xf]
        %v738 = vld [vmem:[%s697 + $0xa0] sm:$0xf]
        %v739 = vld [vmem:[%s697 + $0xa4] sm:$0xf]
        %v740 = vld [vmem:[%s697 + $0xa8] sm:$0xf]
        %v741 = vld [vmem:[%s697 + $0xac] sm:$0xf]
        %v742 = vld [vmem:[%s697 + $0xb0] sm:$0xf]
        %v743 = vld [vmem:[%s697 + $0xb4] sm:$0xf]
        %v744 = vld [vmem:[%s697 + $0xb8] sm:$0xf]
        %v745 = vld [vmem:[%s697 + $0xbc] sm:$0xf]
        %v794 = vunpack.c.l.b16 %v698
        %v795 = vunpack.c.l.b16 %v699
        %v796 = vunpack.c.l.b16 %v700
        %v797 = vunpack.c.l.b16 %v701
        %v798 = vunpack.c.l.b16 %v702
        %v799 = vunpack.c.l.b16 %v703
        %v800 = vunpack.c.l.b16 %v704
        %v801 = vunpack.c.l.b16 %v705
        %v802 = vunpack.c.l.b16 %v706
        %v803 = vunpack.c.l.b16 %v707
        %v804 = vunpack.c.l.b16 %v708
        %v805 = vunpack.c.l.b16 %v709
        %v806 = vunpack.c.l.b16 %v710
        %v807 = vunpack.c.l.b16 %v711
        %v808 = vunpack.c.l.b16 %v712
        %v809 = vunpack.c.l.b16 %v713
        %v810 = vunpack.c.l.b16 %v714
        %v811 = vunpack.c.l.b16 %v715
        %v812 = vunpack.c.l.b16 %v716
        %v813 = vunpack.c.l.b16 %v717
        %v814 = vunpack.c.l.b16 %v718
        %v815 = vunpack.c.l.b16 %v719
        %v816 = vunpack.c.l.b16 %v720
        %v817 = vunpack.c.l.b16 %v721
        %v818 = vunpack.c.l.b16 %v722
        %v819 = vunpack.c.l.b16 %v723
        %v820 = vunpack.c.l.b16 %v724
        %v821 = vunpack.c.l.b16 %v725
        %v822 = vunpack.c.l.b16 %v726
        %v823 = vunpack.c.l.b16 %v727
        %v824 = vunpack.c.l.b16 %v728
        %v825 = vunpack.c.l.b16 %v729
        %v826 = vunpack.c.l.b16 %v730
        %v827 = vunpack.c.l.b16 %v731
        %v828 = vunpack.c.l.b16 %v732
        %v829 = vunpack.c.l.b16 %v733
        %v830 = vunpack.c.l.b16 %v734
        %v831 = vunpack.c.l.b16 %v735
        %v832 = vunpack.c.l.b16 %v736
        %v833 = vunpack.c.l.b16 %v737
        %v834 = vunpack.c.l.b16 %v738
        %v835 = vunpack.c.l.b16 %v739
        %v836 = vunpack.c.l.b16 %v740
        %v837 = vunpack.c.l.b16 %v741
        %v838 = vunpack.c.l.b16 %v742
        %v839 = vunpack.c.l.b16 %v743
        %v840 = vunpack.c.l.b16 %v744
        %v841 = vunpack.c.l.b16 %v745
        %v842 = vpack.c.b16 %v795, %v794
        %v843 = vpack.c.b16 %v797, %v796
        %v844 = vpack.c.b16 %v799, %v798
        %v845 = vpack.c.b16 %v801, %v800
        %v846 = vpack.c.b16 %v803, %v802
        %v847 = vpack.c.b16 %v805, %v804
        %v848 = vpack.c.b16 %v807, %v806
        %v849 = vpack.c.b16 %v809, %v808
        %v850 = vpack.c.b16 %v811, %v810
        %v851 = vpack.c.b16 %v813, %v812
        %v852 = vpack.c.b16 %v815, %v814
        %v853 = vpack.c.b16 %v817, %v816
        %v854 = vpack.c.b16 %v819, %v818
        %v855 = vpack.c.b16 %v821, %v820
        %v856 = vpack.c.b16 %v823, %v822
        %v857 = vpack.c.b16 %v825, %v824
        %v858 = vpack.c.b16 %v827, %v826
        %v859 = vpack.c.b16 %v829, %v828
        %v860 = vpack.c.b16 %v831, %v830
        %v861 = vpack.c.b16 %v833, %v832
        %v862 = vpack.c.b16 %v835, %v834
        %v863 = vpack.c.b16 %v837, %v836
        %v864 = vpack.c.b16 %v839, %v838
        %v865 = vpack.c.b16 %v841, %v840
        %890 = vmatprep.subr.bf16.mxu0 0
        %891 = vmatpush1.bf16.msra.mxu0 %v849
        %892 = vmatprep.subr.bf16.mxu0 0
        %893 = vmatpush1.bf16.msra.mxu0 %v848
        %894 = vmatprep.subr.bf16.mxu0 0
        %895 = vmatpush1.bf16.msra.mxu0 %v847
        %896 = vmatprep.subr.bf16.mxu0 0
        %897 = vmatpush1.bf16.msra.mxu0 %v846
        %898 = vmatprep.subr.bf16.mxu0 0
        %899 = vmatpush1.bf16.msra.mxu0 %v845
        %900 = vmatprep.subr.bf16.mxu0 0
        %901 = vmatpush1.bf16.msra.mxu0 %v844
        %902 = vmatprep.subr.bf16.mxu0 0
        %903 = vmatpush1.bf16.msra.mxu0 %v843
        %904 = vmatprep.subr.bf16.mxu0 0
        %905 = vmatpush1.bf16.msra.mxu0 %v842
        %906 = vmatprep.subr.bf16.mxu0 0
        %907 = vmatpush2.bf16.msra.mxu0 %v857
        %908 = vmatprep.subr.bf16.mxu0 0
        %909 = vmatpush2.bf16.msra.mxu0 %v856
        %910 = vmatprep.subr.bf16.mxu0 0
        %911 = vmatpush2.bf16.msra.mxu0 %v855
        %912 = vmatprep.subr.bf16.mxu0 0
        %913 = vmatpush2.bf16.msra.mxu0 %v854
        %914 = vmatprep.subr.bf16.mxu0 0
        %915 = vmatpush2.bf16.msra.mxu0 %v853
        %916 = vmatprep.subr.bf16.mxu0 0
        %917 = vmatpush2.bf16.msra.mxu0 %v852
        %918 = vmatprep.subr.bf16.mxu0 0
        %919 = vmatpush2.bf16.msra.mxu0 %v851
        %920 = vmatprep.subr.bf16.mxu0 0
        %921 = vmatpush2.bf16.msra.mxu0 %v850
        %922 = vmatprep.mubr.bf16.mxu0 %v650
        %923 = vmatmul.mubr.bf16.gmra.mxu0 %v649
        %v924 = vpop.f32.mrf.mxu0
        %v925 = vadd.f32 0.0, %v924
        %v926 = vpop.f32.mrf.mxu0
        %v927 = vpop.f32.mrf.mxu0
        %v928 = vadd.f32 0.0, %v927
        %v929 = vpop.f32.mrf.mxu0
        %930 = vmatprep.mubr.bf16.mxu0 %v653
        %931 = vmatmul.mubr.bf16.gmra.mxu0 %v652
        %v932 = vpop.f32.mrf.mxu0
        %v933 = vadd.f32 0.0, %v932
        %v934 = vpop.f32.mrf.mxu0
        %v935 = vpop.f32.mrf.mxu0
        %v936 = vadd.f32 0.0, %v935
        %v937 = vpop.f32.mrf.mxu0
        %938 = vmatprep.mubr.bf16.mxu0 %v656
        %939 = vmatmul.mubr.bf16.gmra.mxu0 %v655
        %v940 = vpop.f32.mrf.mxu0
        %v941 = vadd.f32 0.0, %v940
        %v942 = vpop.f32.mrf.mxu0
        %v943 = vpop.f32.mrf.mxu0
        %v944 = vadd.f32 0.0, %v943
        %v945 = vpop.f32.mrf.mxu0
        %946 = vmatprep.mubr.bf16.mxu0 %v659
        %947 = vmatmul.mubr.bf16.gmra.mxu0 %v658
        %v948 = vpop.f32.mrf.mxu0
        %v949 = vadd.f32 0.0, %v948
        %v950 = vpop.f32.mrf.mxu0
        %v951 = vpop.f32.mrf.mxu0
        %v952 = vadd.f32 0.0, %v951
        %v953 = vpop.f32.mrf.mxu0
        %954 = vmatprep.mubr.bf16.mxu0 %v662
        %955 = vmatmul.mubr.bf16.gmra.mxu0 %v661
        %v956 = vpop.f32.mrf.mxu0
        %v957 = vadd.f32 0.0, %v956
        %v958 = vpop.f32.mrf.mxu0
        %v959 = vpop.f32.mrf.mxu0
        %v960 = vadd.f32 0.0, %v959
        %v961 = vpop.f32.mrf.mxu0
        %962 = vmatprep.mubr.bf16.mxu0 %v665
        %963 = vmatmul.mubr.bf16.gmra.mxu0 %v664
        %v964 = vpop.f32.mrf.mxu0
        %v965 = vadd.f32 0.0, %v964
        %v966 = vpop.f32.mrf.mxu0
        %v967 = vpop.f32.mrf.mxu0
        %v968 = vadd.f32 0.0, %v967
        %v969 = vpop.f32.mrf.mxu0
        %970 = vmatprep.mubr.bf16.mxu0 %v668
        %971 = vmatmul.mubr.bf16.gmra.mxu0 %v667
        %v972 = vpop.f32.mrf.mxu0
        %v973 = vadd.f32 0.0, %v972
        %v974 = vpop.f32.mrf.mxu0
        %v975 = vpop.f32.mrf.mxu0
        %v976 = vadd.f32 0.0, %v975
        %v977 = vpop.f32.mrf.mxu0
        %978 = vmatprep.mubr.bf16.mxu0 %v671
        %979 = vmatmul.mubr.bf16.gmra.mxu0 %v670
        %v980 = vpop.f32.mrf.mxu0
        %v981 = vadd.f32 0.0, %v980
        %v982 = vpop.f32.mrf.mxu0
        %v983 = vpop.f32.mrf.mxu0
        %v984 = vadd.f32 0.0, %v983
        %v985 = vpop.f32.mrf.mxu0
        %986 = vmatprep.mubr.bf16.mxu0 %v674
        %987 = vmatmul.mubr.bf16.gmra.mxu0 %v673
        %v988 = vpop.f32.mrf.mxu0
        %v989 = vadd.f32 0.0, %v988
        %v990 = vpop.f32.mrf.mxu0
        %v991 = vpop.f32.mrf.mxu0
        %v992 = vadd.f32 0.0, %v991
        %v993 = vpop.f32.mrf.mxu0
        %994 = vmatprep.mubr.bf16.mxu0 %v677
        %995 = vmatmul.mubr.bf16.gmra.mxu0 %v676
        %v996 = vpop.f32.mrf.mxu0
        %v997 = vadd.f32 0.0, %v996
        %v998 = vpop.f32.mrf.mxu0
        %v999 = vpop.f32.mrf.mxu0
        %v1000 = vadd.f32 0.0, %v999
        %v1001 = vpop.f32.mrf.mxu0
        %1002 = vmatprep.mubr.bf16.mxu0 %v680
        %1003 = vmatmul.mubr.bf16.gmra.mxu0 %v679
        %v1004 = vpop.f32.mrf.mxu0
        %v1005 = vadd.f32 0.0, %v1004
        %v1006 = vpop.f32.mrf.mxu0
        %v1007 = vpop.f32.mrf.mxu0
        %v1008 = vadd.f32 0.0, %v1007
        %v1009 = vpop.f32.mrf.mxu0
        %1010 = vmatprep.mubr.bf16.mxu0 %v683
        %1011 = vmatmul.mubr.bf16.gmra.mxu0 %v682
        %v1012 = vpop.f32.mrf.mxu0
        %v1013 = vadd.f32 0.0, %v1012
        %v1014 = vpop.f32.mrf.mxu0
        %v1015 = vpop.f32.mrf.mxu0
        %v1016 = vadd.f32 0.0, %v1015
        %v1017 = vpop.f32.mrf.mxu0
        %1018 = vmatprep.mubr.bf16.mxu0 %v686
        %1019 = vmatmul.mubr.bf16.gmra.mxu0 %v685
        %v1020 = vpop.f32.mrf.mxu0
        %v1021 = vadd.f32 0.0, %v1020
        %v1022 = vpop.f32.mrf.mxu0
        %v1023 = vpop.f32.mrf.mxu0
        %v1024 = vadd.f32 0.0, %v1023
        %v1025 = vpop.f32.mrf.mxu0
        %1026 = vmatprep.mubr.bf16.mxu0 %v689
        %1027 = vmatmul.mubr.bf16.gmra.mxu0 %v688
        %v1028 = vpop.f32.mrf.mxu0
        %v1029 = vadd.f32 0.0, %v1028
        %v1030 = vpop.f32.mrf.mxu0
        %v1031 = vpop.f32.mrf.mxu0
        %v1032 = vadd.f32 0.0, %v1031
        %v1033 = vpop.f32.mrf.mxu0
        %1034 = vmatprep.mubr.bf16.mxu0 %v692
        %1035 = vmatmul.mubr.bf16.gmra.mxu0 %v691
        %v1036 = vpop.f32.mrf.mxu0
        %v1037 = vadd.f32 0.0, %v1036
        %v1038 = vpop.f32.mrf.mxu0
        %v1039 = vpop.f32.mrf.mxu0
        %v1040 = vadd.f32 0.0, %v1039
        %v1041 = vpop.f32.mrf.mxu0
        %1042 = vmatprep.mubr.bf16.mxu0 %v695
        %1043 = vmatmul.mubr.bf16.gmra.mxu0 %v694
        %v1044 = vpop.f32.mrf.mxu0
        %v1045 = vadd.f32 0.0, %v1044
        %v1046 = vpop.f32.mrf.mxu0
        %v1047 = vpop.f32.mrf.mxu0
        %v1048 = vadd.f32 0.0, %v1047
        %v1049 = vpop.f32.mrf.mxu0
        %1050 = vdwg.mxu0
        %1051 = vmatprep.subr.bf16.mxu0 0
        %1052 = vmatpush1.bf16.msra.mxu0 %v865
        %1053 = vmatprep.subr.bf16.mxu0 0
        %1054 = vmatpush1.bf16.msra.mxu0 %v864
        %1055 = vmatprep.subr.bf16.mxu0 0
        %1056 = vmatpush1.bf16.msra.mxu0 %v863
        %1057 = vmatprep.subr.bf16.mxu0 0
        %1058 = vmatpush1.bf16.msra.mxu0 %v862
        %1059 = vmatprep.subr.bf16.mxu0 0
        %1060 = vmatpush1.bf16.msra.mxu0 %v861
        %1061 = vmatprep.subr.bf16.mxu0 0
        %1062 = vmatpush1.bf16.msra.mxu0 %v860
        %1063 = vmatprep.subr.bf16.mxu0 0
        %1064 = vmatpush1.bf16.msra.mxu0 %v859
        %1065 = vmatprep.subr.bf16.mxu0 0
        %1066 = vmatpush1.bf16.msra.mxu0 %v858
        %1067 = vmatprep.subr.bf16.mxu0 0
        %1068 = vmatpush2.bf16.msra.mxu0 0
        %1069 = vmatprep.subr.bf16.mxu0 0
        %1070 = vmatpush2.bf16.msra.mxu0 0
        %1071 = vmatprep.subr.bf16.mxu0 0
        %1072 = vmatpush2.bf16.msra.mxu0 0
        %1073 = vmatprep.subr.bf16.mxu0 0
        %1074 = vmatpush2.bf16.msra.mxu0 0
        %1075 = vmatprep.subr.bf16.mxu0 0
        %1076 = vmatpush2.bf16.msra.mxu0 0
        %1077 = vmatprep.subr.bf16.mxu0 0
        %1078 = vmatpush2.bf16.msra.mxu0 0
        %1079 = vmatprep.subr.bf16.mxu0 0
        %1080 = vmatpush2.bf16.msra.mxu0 0
        %1081 = vmatprep.subr.bf16.mxu0 0
        %1082 = vmatpush2.bf16.msra.mxu0 0
        %1083 = vmatprep.mubr.bf16.mxu0 0
        %1084 = vmatmul.mubr.bf16.gmra.mxu0 %v651
        %v1085 = vpop.f32.mrf.mxu0
        %v1086 = vadd.f32 %v925, %v1085
        %v1087 = vpop.f32.mrf.mxu0
        %v1088 = vpop.f32.mrf.mxu0
        %v1089 = vadd.f32 %v928, %v1088
        %v1090 = vpop.f32.mrf.mxu0
        %1091 = vmatprep.mubr.bf16.mxu0 0
        %1092 = vmatmul.mubr.bf16.gmra.mxu0 %v654
        %v1093 = vpop.f32.mrf.mxu0
        %v1094 = vadd.f32 %v933, %v1093
        %v1095 = vpop.f32.mrf.mxu0
        %v1096 = vpop.f32.mrf.mxu0
        %v1097 = vadd.f32 %v936, %v1096
        %v1098 = vpop.f32.mrf.mxu0
        %1099 = vmatprep.mubr.bf16.mxu0 0
        %1100 = vmatmul.mubr.bf16.gmra.mxu0 %v657
        %v1101 = vpop.f32.mrf.mxu0
        %v1102 = vadd.f32 %v941, %v1101
        %v1103 = vpop.f32.mrf.mxu0
        %v1104 = vpop.f32.mrf.mxu0
        %v1105 = vadd.f32 %v944, %v1104
        %v1106 = vpop.f32.mrf.mxu0
        %1107 = vmatprep.mubr.bf16.mxu0 0
        %1108 = vmatmul.mubr.bf16.gmra.mxu0 %v660
        %v1109 = vpop.f32.mrf.mxu0
        %v1110 = vadd.f32 %v949, %v1109
        %v1111 = vpop.f32.mrf.mxu0
        %v1112 = vpop.f32.mrf.mxu0
        %v1113 = vadd.f32 %v952, %v1112
        %v1114 = vpop.f32.mrf.mxu0
        %1115 = vmatprep.mubr.bf16.mxu0 0
        %1116 = vmatmul.mubr.bf16.gmra.mxu0 %v663
        %v1117 = vpop.f32.mrf.mxu0
        %v1118 = vadd.f32 %v957, %v1117
        %v1119 = vpop.f32.mrf.mxu0
        %v1120 = vpop.f32.mrf.mxu0
        %v1121 = vadd.f32 %v960, %v1120
        %v1122 = vpop.f32.mrf.mxu0
        %1123 = vmatprep.mubr.bf16.mxu0 0
        %1124 = vmatmul.mubr.bf16.gmra.mxu0 %v666
        %v1125 = vpop.f32.mrf.mxu0
        %v1126 = vadd.f32 %v965, %v1125
        %v1127 = vpop.f32.mrf.mxu0
        %v1128 = vpop.f32.mrf.mxu0
        %v1129 = vadd.f32 %v968, %v1128
        %v1130 = vpop.f32.mrf.mxu0
        %1131 = vmatprep.mubr.bf16.mxu0 0
        %1132 = vmatmul.mubr.bf16.gmra.mxu0 %v669
        %v1133 = vpop.f32.mrf.mxu0
        %v1134 = vadd.f32 %v973, %v1133
        %v1135 = vpop.f32.mrf.mxu0
        %v1136 = vpop.f32.mrf.mxu0
        %v1137 = vadd.f32 %v976, %v1136
        %v1138 = vpop.f32.mrf.mxu0
        %1139 = vmatprep.mubr.bf16.mxu0 0
        %1140 = vmatmul.mubr.bf16.gmra.mxu0 %v672
        %v1141 = vpop.f32.mrf.mxu0
        %v1142 = vadd.f32 %v981, %v1141
        %v1143 = vpop.f32.mrf.mxu0
        %v1144 = vpop.f32.mrf.mxu0
        %v1145 = vadd.f32 %v984, %v1144
        %v1146 = vpop.f32.mrf.mxu0
        %1147 = vmatprep.mubr.bf16.mxu0 0
        %1148 = vmatmul.mubr.bf16.gmra.mxu0 %v675
        %v1149 = vpop.f32.mrf.mxu0
        %v1150 = vadd.f32 %v989, %v1149
        %v1151 = vpop.f32.mrf.mxu0
        %v1152 = vpop.f32.mrf.mxu0
        %v1153 = vadd.f32 %v992, %v1152
        %v1154 = vpop.f32.mrf.mxu0
        %1155 = vmatprep.mubr.bf16.mxu0 0
        %1156 = vmatmul.mubr.bf16.gmra.mxu0 %v678
        %v1157 = vpop.f32.mrf.mxu0
        %v1158 = vadd.f32 %v997, %v1157
        %v1159 = vpop.f32.mrf.mxu0
        %v1160 = vpop.f32.mrf.mxu0
        %v1161 = vadd.f32 %v1000, %v1160
        %v1162 = vpop.f32.mrf.mxu0
        %1163 = vmatprep.mubr.bf16.mxu0 0
        %1164 = vmatmul.mubr.bf16.gmra.mxu0 %v681
        %v1165 = vpop.f32.mrf.mxu0
        %v1166 = vadd.f32 %v1005, %v1165
        %v1167 = vpop.f32.mrf.mxu0
        %v1168 = vpop.f32.mrf.mxu0
        %v1169 = vadd.f32 %v1008, %v1168
        %v1170 = vpop.f32.mrf.mxu0
        %1171 = vmatprep.mubr.bf16.mxu0 0
        %1172 = vmatmul.mubr.bf16.gmra.mxu0 %v684
        %v1173 = vpop.f32.mrf.mxu0
        %v1174 = vadd.f32 %v1013, %v1173
        %v1175 = vpop.f32.mrf.mxu0
        %v1176 = vpop.f32.mrf.mxu0
        %v1177 = vadd.f32 %v1016, %v1176
        %v1178 = vpop.f32.mrf.mxu0
        %1179 = vmatprep.mubr.bf16.mxu0 0
        %1180 = vmatmul.mubr.bf16.gmra.mxu0 %v687
        %v1181 = vpop.f32.mrf.mxu0
        %v1182 = vadd.f32 %v1021, %v1181
        %v1183 = vpop.f32.mrf.mxu0
        %v1184 = vpop.f32.mrf.mxu0
        %v1185 = vadd.f32 %v1024, %v1184
        %v1186 = vpop.f32.mrf.mxu0
        %1187 = vmatprep.mubr.bf16.mxu0 0
        %1188 = vmatmul.mubr.bf16.gmra.mxu0 %v690
        %v1189 = vpop.f32.mrf.mxu0
        %v1190 = vadd.f32 %v1029, %v1189
        %v1191 = vpop.f32.mrf.mxu0
        %v1192 = vpop.f32.mrf.mxu0
        %v1193 = vadd.f32 %v1032, %v1192
        %v1194 = vpop.f32.mrf.mxu0
        %1195 = vmatprep.mubr.bf16.mxu0 0
        %1196 = vmatmul.mubr.bf16.gmra.mxu0 %v693
        %v1197 = vpop.f32.mrf.mxu0
        %v1198 = vadd.f32 %v1037, %v1197
        %v1199 = vpop.f32.mrf.mxu0
        %v1200 = vpop.f32.mrf.mxu0
        %v1201 = vadd.f32 %v1040, %v1200
        %v1202 = vpop.f32.mrf.mxu0
        %1203 = vmatprep.mubr.bf16.mxu0 0
        %1204 = vmatmul.mubr.bf16.gmra.mxu0 %v696
        %v1205 = vpop.f32.mrf.mxu0
        %v1206 = vadd.f32 %v1045, %v1205
        %v1207 = vpop.f32.mrf.mxu0
        %v1208 = vpop.f32.mrf.mxu0
        %v1209 = vadd.f32 %v1048, %v1208
        %v1210 = vpop.f32.mrf.mxu0
        %1211 = vdwg.mxu0
        %v1260 = vunpack.c.l.b16 %v505
        %v1261 = vunpack.c.l.b16 %v506
        %v1262 = vunpack.c.l.b16 %v507
        %v1263 = vunpack.c.l.b16 %v508
        %v1264 = vunpack.c.l.b16 %v509
        %v1265 = vunpack.c.l.b16 %v510
        %v1266 = vunpack.c.l.b16 %v511
        %v1267 = vunpack.c.l.b16 %v512
        %v1268 = vunpack.c.l.b16 %v513
        %v1269 = vunpack.c.l.b16 %v514
        %v1270 = vunpack.c.l.b16 %v515
        %v1271 = vunpack.c.l.b16 %v516
        %v1272 = vunpack.c.l.b16 %v517
        %v1273 = vunpack.c.l.b16 %v518
        %v1274 = vunpack.c.l.b16 %v519
        %v1275 = vunpack.c.l.b16 %v520
        %v1276 = vunpack.c.l.b16 %v521
        %v1277 = vunpack.c.l.b16 %v522
        %v1278 = vunpack.c.l.b16 %v523
        %v1279 = vunpack.c.l.b16 %v524
        %v1280 = vunpack.c.l.b16 %v525
        %v1281 = vunpack.c.l.b16 %v526
        %v1282 = vunpack.c.l.b16 %v527
        %v1283 = vunpack.c.l.b16 %v528
        %v1284 = vunpack.c.l.b16 %v529
        %v1285 = vunpack.c.l.b16 %v530
        %v1286 = vunpack.c.l.b16 %v531
        %v1287 = vunpack.c.l.b16 %v532
        %v1288 = vunpack.c.l.b16 %v533
        %v1289 = vunpack.c.l.b16 %v534
        %v1290 = vunpack.c.l.b16 %v535
        %v1291 = vunpack.c.l.b16 %v536
        %v1292 = vunpack.c.l.b16 %v537
        %v1293 = vunpack.c.l.b16 %v538
        %v1294 = vunpack.c.l.b16 %v539
        %v1295 = vunpack.c.l.b16 %v540
        %v1296 = vunpack.c.l.b16 %v541
        %v1297 = vunpack.c.l.b16 %v542
        %v1298 = vunpack.c.l.b16 %v543
        %v1299 = vunpack.c.l.b16 %v544
        %v1300 = vunpack.c.l.b16 %v545
        %v1301 = vunpack.c.l.b16 %v546
        %v1302 = vunpack.c.l.b16 %v547
        %v1303 = vunpack.c.l.b16 %v548
        %v1304 = vunpack.c.l.b16 %v549
        %v1305 = vunpack.c.l.b16 %v550
        %v1306 = vunpack.c.l.b16 %v551
        %v1307 = vunpack.c.l.b16 %v552
        %v1308 = vpack.c.b16 %v1261, %v1260
        %v1309 = vpack.c.b16 %v1263, %v1262
        %v1310 = vpack.c.b16 %v1265, %v1264
        %v1311 = vpack.c.b16 %v1267, %v1266
        %v1312 = vpack.c.b16 %v1269, %v1268
        %v1313 = vpack.c.b16 %v1271, %v1270
        %v1314 = vpack.c.b16 %v1273, %v1272
        %v1315 = vpack.c.b16 %v1275, %v1274
        %v1316 = vpack.c.b16 %v1277, %v1276
        %v1317 = vpack.c.b16 %v1279, %v1278
        %v1318 = vpack.c.b16 %v1281, %v1280
        %v1319 = vpack.c.b16 %v1283, %v1282
        %v1320 = vpack.c.b16 %v1285, %v1284
        %v1321 = vpack.c.b16 %v1287, %v1286
        %v1322 = vpack.c.b16 %v1289, %v1288
        %v1323 = vpack.c.b16 %v1291, %v1290
        %v1324 = vpack.c.b16 %v1293, %v1292
        %v1325 = vpack.c.b16 %v1295, %v1294
        %v1326 = vpack.c.b16 %v1297, %v1296
        %v1327 = vpack.c.b16 %v1299, %v1298
        %v1328 = vpack.c.b16 %v1301, %v1300
        %v1329 = vpack.c.b16 %v1303, %v1302
        %v1330 = vpack.c.b16 %v1305, %v1304
        %v1331 = vpack.c.b16 %v1307, %v1306
        %1356 = vmatprep.subr.bf16.mxu0 0
        %1357 = vmatpush1.bf16.msra.mxu0 %v1315
        %1358 = vmatprep.subr.bf16.mxu0 0
        %1359 = vmatpush1.bf16.msra.mxu0 %v1314
        %1360 = vmatprep.subr.bf16.mxu0 0
        %1361 = vmatpush1.bf16.msra.mxu0 %v1313
        %1362 = vmatprep.subr.bf16.mxu0 0
        %1363 = vmatpush1.bf16.msra.mxu0 %v1312
        %1364 = vmatprep.subr.bf16.mxu0 0
        %1365 = vmatpush1.bf16.msra.mxu0 %v1311
        %1366 = vmatprep.subr.bf16.mxu0 0
        %1367 = vmatpush1.bf16.msra.mxu0 %v1310
        %1368 = vmatprep.subr.bf16.mxu0 0
        %1369 = vmatpush1.bf16.msra.mxu0 %v1309
        %1370 = vmatprep.subr.bf16.mxu0 0
        %1371 = vmatpush1.bf16.msra.mxu0 %v1308
        %1372 = vmatprep.subr.bf16.mxu0 0
        %1373 = vmatpush2.bf16.msra.mxu0 %v1323
        %1374 = vmatprep.subr.bf16.mxu0 0
        %1375 = vmatpush2.bf16.msra.mxu0 %v1322
        %1376 = vmatprep.subr.bf16.mxu0 0
        %1377 = vmatpush2.bf16.msra.mxu0 %v1321
        %1378 = vmatprep.subr.bf16.mxu0 0
        %1379 = vmatpush2.bf16.msra.mxu0 %v1320
        %1380 = vmatprep.subr.bf16.mxu0 0
        %1381 = vmatpush2.bf16.msra.mxu0 %v1319
        %1382 = vmatprep.subr.bf16.mxu0 0
        %1383 = vmatpush2.bf16.msra.mxu0 %v1318
        %1384 = vmatprep.subr.bf16.mxu0 0
        %1385 = vmatpush2.bf16.msra.mxu0 %v1317
        %1386 = vmatprep.subr.bf16.mxu0 0
        %1387 = vmatpush2.bf16.msra.mxu0 %v1316
        %1388 = vmatprep.mubr.bf16.mxu0 %v458
        %1389 = vmatmul.mubr.bf16.gmra.mxu0 %v457
        %v1390 = vpop.f32.mrf.mxu0
        %v1391 = vadd.f32 %v1086, %v1390
        %v1392 = vpop.f32.mrf.mxu0
        %v1393 = vpop.f32.mrf.mxu0
        %v1394 = vadd.f32 %v1089, %v1393
        %v1395 = vpop.f32.mrf.mxu0
        %1396 = vmatprep.mubr.bf16.mxu0 %v461
        %1397 = vmatmul.mubr.bf16.gmra.mxu0 %v460
        %v1398 = vpop.f32.mrf.mxu0
        %v1399 = vadd.f32 %v1094, %v1398
        %v1400 = vpop.f32.mrf.mxu0
        %v1401 = vpop.f32.mrf.mxu0
        %v1402 = vadd.f32 %v1097, %v1401
        %v1403 = vpop.f32.mrf.mxu0
        %1404 = vmatprep.mubr.bf16.mxu0 %v464
        %1405 = vmatmul.mubr.bf16.gmra.mxu0 %v463
        %v1406 = vpop.f32.mrf.mxu0
        %v1407 = vadd.f32 %v1102, %v1406
        %v1408 = vpop.f32.mrf.mxu0
        %v1409 = vpop.f32.mrf.mxu0
        %v1410 = vadd.f32 %v1105, %v1409
        %v1411 = vpop.f32.mrf.mxu0
        %1412 = vmatprep.mubr.bf16.mxu0 %v467
        %1413 = vmatmul.mubr.bf16.gmra.mxu0 %v466
        %v1414 = vpop.f32.mrf.mxu0
        %v1415 = vadd.f32 %v1110, %v1414
        %v1416 = vpop.f32.mrf.mxu0
        %v1417 = vpop.f32.mrf.mxu0
        %v1418 = vadd.f32 %v1113, %v1417
        %v1419 = vpop.f32.mrf.mxu0
        %1420 = vmatprep.mubr.bf16.mxu0 %v470
        %1421 = vmatmul.mubr.bf16.gmra.mxu0 %v469
        %v1422 = vpop.f32.mrf.mxu0
        %v1423 = vadd.f32 %v1118, %v1422
        %v1424 = vpop.f32.mrf.mxu0
        %v1425 = vpop.f32.mrf.mxu0
        %v1426 = vadd.f32 %v1121, %v1425
        %v1427 = vpop.f32.mrf.mxu0
        %1428 = vmatprep.mubr.bf16.mxu0 %v473
        %1429 = vmatmul.mubr.bf16.gmra.mxu0 %v472
        %v1430 = vpop.f32.mrf.mxu0
        %v1431 = vadd.f32 %v1126, %v1430
        %v1432 = vpop.f32.mrf.mxu0
        %v1433 = vpop.f32.mrf.mxu0
        %v1434 = vadd.f32 %v1129, %v1433
        %v1435 = vpop.f32.mrf.mxu0
        %1436 = vmatprep.mubr.bf16.mxu0 %v476
        %1437 = vmatmul.mubr.bf16.gmra.mxu0 %v475
        %v1438 = vpop.f32.mrf.mxu0
        %v1439 = vadd.f32 %v1134, %v1438
        %v1440 = vpop.f32.mrf.mxu0
        %v1441 = vpop.f32.mrf.mxu0
        %v1442 = vadd.f32 %v1137, %v1441
        %v1443 = vpop.f32.mrf.mxu0
        %1444 = vmatprep.mubr.bf16.mxu0 %v479
        %1445 = vmatmul.mubr.bf16.gmra.mxu0 %v478
        %v1446 = vpop.f32.mrf.mxu0
        %v1447 = vadd.f32 %v1142, %v1446
        %v1448 = vpop.f32.mrf.mxu0
        %v1449 = vpop.f32.mrf.mxu0
        %v1450 = vadd.f32 %v1145, %v1449
        %v1451 = vpop.f32.mrf.mxu0
        %1452 = vmatprep.mubr.bf16.mxu0 %v482
        %1453 = vmatmul.mubr.bf16.gmra.mxu0 %v481
        %v1454 = vpop.f32.mrf.mxu0
        %v1455 = vadd.f32 %v1150, %v1454
        %v1456 = vpop.f32.mrf.mxu0
        %v1457 = vpop.f32.mrf.mxu0
        %v1458 = vadd.f32 %v1153, %v1457
        %v1459 = vpop.f32.mrf.mxu0
        %1460 = vmatprep.mubr.bf16.mxu0 %v485
        %1461 = vmatmul.mubr.bf16.gmra.mxu0 %v484
        %v1462 = vpop.f32.mrf.mxu0
        %v1463 = vadd.f32 %v1158, %v1462
        %v1464 = vpop.f32.mrf.mxu0
        %v1465 = vpop.f32.mrf.mxu0
        %v1466 = vadd.f32 %v1161, %v1465
        %v1467 = vpop.f32.mrf.mxu0
        %1468 = vmatprep.mubr.bf16.mxu0 %v488
        %1469 = vmatmul.mubr.bf16.gmra.mxu0 %v487
        %v1470 = vpop.f32.mrf.mxu0
        %v1471 = vadd.f32 %v1166, %v1470
        %v1472 = vpop.f32.mrf.mxu0
        %v1473 = vpop.f32.mrf.mxu0
        %v1474 = vadd.f32 %v1169, %v1473
        %v1475 = vpop.f32.mrf.mxu0
        %1476 = vmatprep.mubr.bf16.mxu0 %v491
        %1477 = vmatmul.mubr.bf16.gmra.mxu0 %v490
        %v1478 = vpop.f32.mrf.mxu0
        %v1479 = vadd.f32 %v1174, %v1478
        %v1480 = vpop.f32.mrf.mxu0
        %v1481 = vpop.f32.mrf.mxu0
        %v1482 = vadd.f32 %v1177, %v1481
        %v1483 = vpop.f32.mrf.mxu0
        %1484 = vmatprep.mubr.bf16.mxu0 %v494
        %1485 = vmatmul.mubr.bf16.gmra.mxu0 %v493
        %v1486 = vpop.f32.mrf.mxu0
        %v1487 = vadd.f32 %v1182, %v1486
        %v1488 = vpop.f32.mrf.mxu0
        %v1489 = vpop.f32.mrf.mxu0
        %v1490 = vadd.f32 %v1185, %v1489
        %v1491 = vpop.f32.mrf.mxu0
        %1492 = vmatprep.mubr.bf16.mxu0 %v497
        %1493 = vmatmul.mubr.bf16.gmra.mxu0 %v496
        %v1494 = vpop.f32.mrf.mxu0
        %v1495 = vadd.f32 %v1190, %v1494
        %v1496 = vpop.f32.mrf.mxu0
        %v1497 = vpop.f32.mrf.mxu0
        %v1498 = vadd.f32 %v1193, %v1497
        %v1499 = vpop.f32.mrf.mxu0
        %1500 = vmatprep.mubr.bf16.mxu0 %v500
        %1501 = vmatmul.mubr.bf16.gmra.mxu0 %v499
        %v1502 = vpop.f32.mrf.mxu0
        %v1503 = vadd.f32 %v1198, %v1502
        %v1504 = vpop.f32.mrf.mxu0
        %v1505 = vpop.f32.mrf.mxu0
        %v1506 = vadd.f32 %v1201, %v1505
        %v1507 = vpop.f32.mrf.mxu0
        %1508 = vmatprep.mubr.bf16.mxu0 %v503
        %1509 = vmatmul.mubr.bf16.gmra.mxu0 %v502
        %v1510 = vpop.f32.mrf.mxu0
        %v1511 = vadd.f32 %v1206, %v1510
        %v1512 = vpop.f32.mrf.mxu0
        %v1513 = vpop.f32.mrf.mxu0
        %v1514 = vadd.f32 %v1209, %v1513
        %v1515 = vpop.f32.mrf.mxu0
        %1516 = vdwg.mxu0
        %1517 = vmatprep.subr.bf16.mxu0 0
        %1518 = vmatpush1.bf16.msra.mxu0 %v1331
        %1519 = vmatprep.subr.bf16.mxu0 0
        %1520 = vmatpush1.bf16.msra.mxu0 %v1330
        %1521 = vmatprep.subr.bf16.mxu0 0
        %1522 = vmatpush1.bf16.msra.mxu0 %v1329
        %1523 = vmatprep.subr.bf16.mxu0 0
        %1524 = vmatpush1.bf16.msra.mxu0 %v1328
        %1525 = vmatprep.subr.bf16.mxu0 0
        %1526 = vmatpush1.bf16.msra.mxu0 %v1327
        %1527 = vmatprep.subr.bf16.mxu0 0
        %1528 = vmatpush1.bf16.msra.mxu0 %v1326
        %1529 = vmatprep.subr.bf16.mxu0 0
        %1530 = vmatpush1.bf16.msra.mxu0 %v1325
        %1531 = vmatprep.subr.bf16.mxu0 0
        %1532 = vmatpush1.bf16.msra.mxu0 %v1324
        %1533 = vmatprep.subr.bf16.mxu0 0
        %1534 = vmatpush2.bf16.msra.mxu0 0
        %1535 = vmatprep.subr.bf16.mxu0 0
        %1536 = vmatpush2.bf16.msra.mxu0 0
        %1537 = vmatprep.subr.bf16.mxu0 0
        %1538 = vmatpush2.bf16.msra.mxu0 0
        %1539 = vmatprep.subr.bf16.mxu0 0
        %1540 = vmatpush2.bf16.msra.mxu0 0
        %1541 = vmatprep.subr.bf16.mxu0 0
        %1542 = vmatpush2.bf16.msra.mxu0 0
        %1543 = vmatprep.subr.bf16.mxu0 0
        %1544 = vmatpush2.bf16.msra.mxu0 0
        %1545 = vmatprep.subr.bf16.mxu0 0
        %1546 = vmatpush2.bf16.msra.mxu0 0
        %1547 = vmatprep.subr.bf16.mxu0 0
        %1548 = vmatpush2.bf16.msra.mxu0 0
        %1549 = vmatprep.mubr.bf16.mxu0 0
        %1550 = vmatmul.mubr.bf16.gmra.mxu0 %v459
        %v1551 = vpop.f32.mrf.mxu0
        %v1552 = vadd.f32 %v1391, %v1551
        %v1553 = vpop.f32.mrf.mxu0
        %v1554 = vpop.f32.mrf.mxu0
        %v1555 = vadd.f32 %v1394, %v1554
        %v1556 = vpop.f32.mrf.mxu0
        %1557 = vmatprep.mubr.bf16.mxu0 0
        %1558 = vmatmul.mubr.bf16.gmra.mxu0 %v462
        %v1559 = vpop.f32.mrf.mxu0
        %v1560 = vadd.f32 %v1399, %v1559
        %v1561 = vpop.f32.mrf.mxu0
        %v1562 = vpop.f32.mrf.mxu0
        %v1563 = vadd.f32 %v1402, %v1562
        %v1564 = vpop.f32.mrf.mxu0
        %1565 = vmatprep.mubr.bf16.mxu0 0
        %1566 = vmatmul.mubr.bf16.gmra.mxu0 %v465
        %v1567 = vpop.f32.mrf.mxu0
        %v1568 = vadd.f32 %v1407, %v1567
        %v1569 = vpop.f32.mrf.mxu0
        %v1570 = vpop.f32.mrf.mxu0
        %v1571 = vadd.f32 %v1410, %v1570
        %v1572 = vpop.f32.mrf.mxu0
        %1573 = vmatprep.mubr.bf16.mxu0 0
        %1574 = vmatmul.mubr.bf16.gmra.mxu0 %v468
        %v1575 = vpop.f32.mrf.mxu0
        %v1576 = vadd.f32 %v1415, %v1575
        %v1577 = vpop.f32.mrf.mxu0
        %v1578 = vpop.f32.mrf.mxu0
        %v1579 = vadd.f32 %v1418, %v1578
        %v1580 = vpop.f32.mrf.mxu0
        %1581 = vmatprep.mubr.bf16.mxu0 0
        %1582 = vmatmul.mubr.bf16.gmra.mxu0 %v471
        %v1583 = vpop.f32.mrf.mxu0
        %v1584 = vadd.f32 %v1423, %v1583
        %v1585 = vpop.f32.mrf.mxu0
        %v1586 = vpop.f32.mrf.mxu0
        %v1587 = vadd.f32 %v1426, %v1586
        %v1588 = vpop.f32.mrf.mxu0
        %1589 = vmatprep.mubr.bf16.mxu0 0
        %1590 = vmatmul.mubr.bf16.gmra.mxu0 %v474
        %v1591 = vpop.f32.mrf.mxu0
        %v1592 = vadd.f32 %v1431, %v1591
        %v1593 = vpop.f32.mrf.mxu0
        %v1594 = vpop.f32.mrf.mxu0
        %v1595 = vadd.f32 %v1434, %v1594
        %v1596 = vpop.f32.mrf.mxu0
        %1597 = vmatprep.mubr.bf16.mxu0 0
        %1598 = vmatmul.mubr.bf16.gmra.mxu0 %v477
        %v1599 = vpop.f32.mrf.mxu0
        %v1600 = vadd.f32 %v1439, %v1599
        %v1601 = vpop.f32.mrf.mxu0
        %v1602 = vpop.f32.mrf.mxu0
        %v1603 = vadd.f32 %v1442, %v1602
        %v1604 = vpop.f32.mrf.mxu0
        %1605 = vmatprep.mubr.bf16.mxu0 0
        %1606 = vmatmul.mubr.bf16.gmra.mxu0 %v480
        %v1607 = vpop.f32.mrf.mxu0
        %v1608 = vadd.f32 %v1447, %v1607
        %v1609 = vpop.f32.mrf.mxu0
        %v1610 = vpop.f32.mrf.mxu0
        %v1611 = vadd.f32 %v1450, %v1610
        %v1612 = vpop.f32.mrf.mxu0
        %1613 = vmatprep.mubr.bf16.mxu0 0
        %1614 = vmatmul.mubr.bf16.gmra.mxu0 %v483
        %v1615 = vpop.f32.mrf.mxu0
        %v1616 = vadd.f32 %v1455, %v1615
        %v1617 = vpop.f32.mrf.mxu0
        %v1618 = vpop.f32.mrf.mxu0
        %v1619 = vadd.f32 %v1458, %v1618
        %v1620 = vpop.f32.mrf.mxu0
        %1621 = vmatprep.mubr.bf16.mxu0 0
        %1622 = vmatmul.mubr.bf16.gmra.mxu0 %v486
        %v1623 = vpop.f32.mrf.mxu0
        %v1624 = vadd.f32 %v1463, %v1623
        %v1625 = vpop.f32.mrf.mxu0
        %v1626 = vpop.f32.mrf.mxu0
        %v1627 = vadd.f32 %v1466, %v1626
        %v1628 = vpop.f32.mrf.mxu0
        %1629 = vmatprep.mubr.bf16.mxu0 0
        %1630 = vmatmul.mubr.bf16.gmra.mxu0 %v489
        %v1631 = vpop.f32.mrf.mxu0
        %v1632 = vadd.f32 %v1471, %v1631
        %v1633 = vpop.f32.mrf.mxu0
        %v1634 = vpop.f32.mrf.mxu0
        %v1635 = vadd.f32 %v1474, %v1634
        %v1636 = vpop.f32.mrf.mxu0
        %1637 = vmatprep.mubr.bf16.mxu0 0
        %1638 = vmatmul.mubr.bf16.gmra.mxu0 %v492
        %v1639 = vpop.f32.mrf.mxu0
        %v1640 = vadd.f32 %v1479, %v1639
        %v1641 = vpop.f32.mrf.mxu0
        %v1642 = vpop.f32.mrf.mxu0
        %v1643 = vadd.f32 %v1482, %v1642
        %v1644 = vpop.f32.mrf.mxu0
        %1645 = vmatprep.mubr.bf16.mxu0 0
        %1646 = vmatmul.mubr.bf16.gmra.mxu0 %v495
        %v1647 = vpop.f32.mrf.mxu0
        %v1648 = vadd.f32 %v1487, %v1647
        %v1649 = vpop.f32.mrf.mxu0
        %v1650 = vpop.f32.mrf.mxu0
        %v1651 = vadd.f32 %v1490, %v1650
        %v1652 = vpop.f32.mrf.mxu0
        %1653 = vmatprep.mubr.bf16.mxu0 0
        %1654 = vmatmul.mubr.bf16.gmra.mxu0 %v498
        %v1655 = vpop.f32.mrf.mxu0
        %v1656 = vadd.f32 %v1495, %v1655
        %v1657 = vpop.f32.mrf.mxu0
        %v1658 = vpop.f32.mrf.mxu0
        %v1659 = vadd.f32 %v1498, %v1658
        %v1660 = vpop.f32.mrf.mxu0
        %1661 = vmatprep.mubr.bf16.mxu0 0
        %1662 = vmatmul.mubr.bf16.gmra.mxu0 %v501
        %v1663 = vpop.f32.mrf.mxu0
        %v1664 = vadd.f32 %v1503, %v1663
        %v1665 = vpop.f32.mrf.mxu0
        %v1666 = vpop.f32.mrf.mxu0
        %v1667 = vadd.f32 %v1506, %v1666
        %v1668 = vpop.f32.mrf.mxu0
        %1669 = vmatprep.mubr.bf16.mxu0 0
        %1670 = vmatmul.mubr.bf16.gmra.mxu0 %v504
        %v1671 = vpop.f32.mrf.mxu0
        %v1672 = vadd.f32 %v1511, %v1671
        %v1673 = vpop.f32.mrf.mxu0
        %v1674 = vpop.f32.mrf.mxu0
        %v1675 = vadd.f32 %v1514, %v1674
        %v1676 = vpop.f32.mrf.mxu0
        %1677 = vdwg.mxu0
        %s1678 = scalar_lea.vmem [#allocation2], 64
        %v1679 = vld [vmem:[%s1678 + $0x7] sm:$0xff]
        %v1680 = vld [vmem:[%s1678 + $0xf] sm:$0xff]
        %v1681 = vld [vmem:[%s1678 + $0x27] sm:$0xff]
        %v1682 = vld [vmem:[%s1678 + $0x2f] sm:$0xff]
        %v1683 = vld [vmem:[%s1678 + $0x47] sm:$0xff]
        %v1684 = vld [vmem:[%s1678 + $0x4f] sm:$0xff]
        %v1685 = vld [vmem:[%s1678 + $0x67] sm:$0xff]
        %v1686 = vld [vmem:[%s1678 + $0x6f] sm:$0xff]
        %v1687 = vld [vmem:[%s1678 + $0x87] sm:$0xff]
        %v1688 = vld [vmem:[%s1678 + $0x8f] sm:$0xff]
        %v1689 = vld [vmem:[%s1678 + $0xa7] sm:$0xff]
        %v1690 = vld [vmem:[%s1678 + $0xaf] sm:$0xff]
        %v1691 = vld [vmem:[%s1678 + $0xc7] sm:$0xff]
        %v1692 = vld [vmem:[%s1678 + $0xcf] sm:$0xff]
        %v1693 = vld [vmem:[%s1678 + $0xe7] sm:$0xff]
        %v1694 = vld [vmem:[%s1678 + $0xef] sm:$0xff]
        %v1695 = vld [vmem:[%s1678 + $0x107] sm:$0xff]
        %v1696 = vld [vmem:[%s1678 + $0x10f] sm:$0xff]
        %v1697 = vld [vmem:[%s1678 + $0x127] sm:$0xff]
        %v1698 = vld [vmem:[%s1678 + $0x12f] sm:$0xff]
        %v1699 = vld [vmem:[%s1678 + $0x147] sm:$0xff]
        %v1700 = vld [vmem:[%s1678 + $0x14f] sm:$0xff]
        %v1701 = vld [vmem:[%s1678 + $0x167] sm:$0xff]
        %v1702 = vld [vmem:[%s1678 + $0x16f] sm:$0xff]
        %v1703 = vld [vmem:[%s1678 + $0x187] sm:$0xff]
        %v1704 = vld [vmem:[%s1678 + $0x18f] sm:$0xff]
        %v1705 = vld [vmem:[%s1678 + $0x1a7] sm:$0xff]
        %v1706 = vld [vmem:[%s1678 + $0x1af] sm:$0xff]
        %v1707 = vld [vmem:[%s1678 + $0x1c7] sm:$0xff]
        %v1708 = vld [vmem:[%s1678 + $0x1cf] sm:$0xff]
        %v1709 = vld [vmem:[%s1678 + $0x1e7] sm:$0xff]
        %v1710 = vld [vmem:[%s1678 + $0x1ef] sm:$0xff]
        %v1711 = vld [vmem:[%s1678 + $0x8] sm:$0xff]
        %v1712 = vld [vmem:[%s1678 + $0x10] sm:$0xff]
        %v1713 = vld [vmem:[%s1678 + $0x28] sm:$0xff]
        %v1714 = vld [vmem:[%s1678 + $0x30] sm:$0xff]
        %v1715 = vld [vmem:[%s1678 + $0x48] sm:$0xff]
        %v1716 = vld [vmem:[%s1678 + $0x50] sm:$0xff]
        %v1717 = vld [vmem:[%s1678 + $0x68] sm:$0xff]
        %v1718 = vld [vmem:[%s1678 + $0x70] sm:$0xff]
        %v1719 = vld [vmem:[%s1678 + $0x88] sm:$0xff]
        %v1720 = vld [vmem:[%s1678 + $0x90] sm:$0xff]
        %v1721 = vld [vmem:[%s1678 + $0xa8] sm:$0xff]
        %v1722 = vld [vmem:[%s1678 + $0xb0] sm:$0xff]
        %v1723 = vld [vmem:[%s1678 + $0xc8] sm:$0xff]
        %v1724 = vld [vmem:[%s1678 + $0xd0] sm:$0xff]
        %v1725 = vld [vmem:[%s1678 + $0xe8] sm:$0xff]
        %v1726 = vld [vmem:[%s1678 + $0xf0] sm:$0xff]
        %v1727 = vld [vmem:[%s1678 + $0x108] sm:$0xff]
        %v1728 = vld [vmem:[%s1678 + $0x110] sm:$0xff]
        %v1729 = vld [vmem:[%s1678 + $0x128] sm:$0xff]
        %v1730 = vld [vmem:[%s1678 + $0x130] sm:$0xff]
        %v1731 = vld [vmem:[%s1678 + $0x148] sm:$0xff]
        %v1732 = vld [vmem:[%s1678 + $0x150] sm:$0xff]
        %v1733 = vld [vmem:[%s1678 + $0x168] sm:$0xff]
        %v1734 = vld [vmem:[%s1678 + $0x170] sm:$0xff]
        %v1735 = vld [vmem:[%s1678 + $0x188] sm:$0xff]
        %v1736 = vld [vmem:[%s1678 + $0x190] sm:$0xff]
        %v1737 = vld [vmem:[%s1678 + $0x1a8] sm:$0xff]
        %v1738 = vld [vmem:[%s1678 + $0x1b0] sm:$0xff]
        %v1739 = vld [vmem:[%s1678 + $0x1c8] sm:$0xff]
        %v1740 = vld [vmem:[%s1678 + $0x1d0] sm:$0xff]
        %v1741 = vld [vmem:[%s1678 + $0x1e8] sm:$0xff]
        %v1742 = vld [vmem:[%s1678 + $0x1f0] sm:$0xff]
        %v1743 = vld [vmem:[%s1678 + $0x9] sm:$0xff]
        %v1744 = vld [vmem:[%s1678 + $0x11] sm:$0xff]
        %v1745 = vld [vmem:[%s1678 + $0x29] sm:$0xff]
        %v1746 = vld [vmem:[%s1678 + $0x31] sm:$0xff]
        %v1747 = vld [vmem:[%s1678 + $0x49] sm:$0xff]
        %v1748 = vld [vmem:[%s1678 + $0x51] sm:$0xff]
        %v1749 = vld [vmem:[%s1678 + $0x69] sm:$0xff]
        %v1750 = vld [vmem:[%s1678 + $0x71] sm:$0xff]
        %v1751 = vld [vmem:[%s1678 + $0x89] sm:$0xff]
        %v1752 = vld [vmem:[%s1678 + $0x91] sm:$0xff]
        %v1753 = vld [vmem:[%s1678 + $0xa9] sm:$0xff]
        %v1754 = vld [vmem:[%s1678 + $0xb1] sm:$0xff]
        %v1755 = vld [vmem:[%s1678 + $0xc9] sm:$0xff]
        %v1756 = vld [vmem:[%s1678 + $0xd1] sm:$0xff]
        %v1757 = vld [vmem:[%s1678 + $0xe9] sm:$0xff]
        %v1758 = vld [vmem:[%s1678 + $0xf1] sm:$0xff]
        %v1759 = vld [vmem:[%s1678 + $0x109] sm:$0xff]
        %v1760 = vld [vmem:[%s1678 + $0x111] sm:$0xff]
        %v1761 = vld [vmem:[%s1678 + $0x129] sm:$0xff]
        %v1762 = vld [vmem:[%s1678 + $0x131] sm:$0xff]
        %v1763 = vld [vmem:[%s1678 + $0x149] sm:$0xff]
        %v1764 = vld [vmem:[%s1678 + $0x151] sm:$0xff]
        %v1765 = vld [vmem:[%s1678 + $0x169] sm:$0xff]
        %v1766 = vld [vmem:[%s1678 + $0x171] sm:$0xff]
        %v1767 = vld [vmem:[%s1678 + $0x189] sm:$0xff]
        %v1768 = vld [vmem:[%s1678 + $0x191] sm:$0xff]
        %v1769 = vld [vmem:[%s1678 + $0x1a9] sm:$0xff]
        %v1770 = vld [vmem:[%s1678 + $0x1b1] sm:$0xff]
        %v1771 = vld [vmem:[%s1678 + $0x1c9] sm:$0xff]
        %v1772 = vld [vmem:[%s1678 + $0x1d1] sm:$0xff]
        %v1773 = vld [vmem:[%s1678 + $0x1e9] sm:$0xff]
        %v1774 = vld [vmem:[%s1678 + $0x1f1] sm:$0xff]
        %v1775 = vpack.c.bf16 %v1680, %v1679
        %v1776 = vpack.c.bf16 %v1712, %v1711
        %v1777 = vpack.c.bf16 %v1744, %v1743
        %v1778 = vpack.c.bf16 %v1682, %v1681
        %v1779 = vpack.c.bf16 %v1714, %v1713
        %v1780 = vpack.c.bf16 %v1746, %v1745
        %v1781 = vpack.c.bf16 %v1684, %v1683
        %v1782 = vpack.c.bf16 %v1716, %v1715
        %v1783 = vpack.c.bf16 %v1748, %v1747
        %v1784 = vpack.c.bf16 %v1686, %v1685
        %v1785 = vpack.c.bf16 %v1718, %v1717
        %v1786 = vpack.c.bf16 %v1750, %v1749
        %v1787 = vpack.c.bf16 %v1688, %v1687
        %v1788 = vpack.c.bf16 %v1720, %v1719
        %v1789 = vpack.c.bf16 %v1752, %v1751
        %v1790 = vpack.c.bf16 %v1690, %v1689
        %v1791 = vpack.c.bf16 %v1722, %v1721
        %v1792 = vpack.c.bf16 %v1754, %v1753
        %v1793 = vpack.c.bf16 %v1692, %v1691
        %v1794 = vpack.c.bf16 %v1724, %v1723
        %v1795 = vpack.c.bf16 %v1756, %v1755
        %v1796 = vpack.c.bf16 %v1694, %v1693
        %v1797 = vpack.c.bf16 %v1726, %v1725
        %v1798 = vpack.c.bf16 %v1758, %v1757
        %v1799 = vpack.c.bf16 %v1696, %v1695
        %v1800 = vpack.c.bf16 %v1728, %v1727
        %v1801 = vpack.c.bf16 %v1760, %v1759
        %v1802 = vpack.c.bf16 %v1698, %v1697
        %v1803 = vpack.c.bf16 %v1730, %v1729
        %v1804 = vpack.c.bf16 %v1762, %v1761
        %v1805 = vpack.c.bf16 %v1700, %v1699
        %v1806 = vpack.c.bf16 %v1732, %v1731
        %v1807 = vpack.c.bf16 %v1764, %v1763
        %v1808 = vpack.c.bf16 %v1702, %v1701
        %v1809 = vpack.c.bf16 %v1734, %v1733
        %v1810 = vpack.c.bf16 %v1766, %v1765
        %v1811 = vpack.c.bf16 %v1704, %v1703
        %v1812 = vpack.c.bf16 %v1736, %v1735
        %v1813 = vpack.c.bf16 %v1768, %v1767
        %v1814 = vpack.c.bf16 %v1706, %v1705
        %v1815 = vpack.c.bf16 %v1738, %v1737
        %v1816 = vpack.c.bf16 %v1770, %v1769
        %v1817 = vpack.c.bf16 %v1708, %v1707
        %v1818 = vpack.c.bf16 %v1740, %v1739
        %v1819 = vpack.c.bf16 %v1772, %v1771
        %v1820 = vpack.c.bf16 %v1710, %v1709
        %v1821 = vpack.c.bf16 %v1742, %v1741
        %v1822 = vpack.c.bf16 %v1774, %v1773
        %s1823 = scalar_lea.vmem %s1, 384
        %v1824 = vld [vmem:[%s1823] sm:$0xf]
        %v1825 = vld [vmem:[%s1823 + $0x4] sm:$0xf]
        %v1826 = vld [vmem:[%s1823 + $0x8] sm:$0xf]
        %v1827 = vld [vmem:[%s1823 + $0xc] sm:$0xf]
        %v1828 = vld [vmem:[%s1823 + $0x10] sm:$0xf]
        %v1829 = vld [vmem:[%s1823 + $0x14] sm:$0xf]
        %v1830 = vld [vmem:[%s1823 + $0x18] sm:$0xf]
        %v1831 = vld [vmem:[%s1823 + $0x1c] sm:$0xf]
        %v1832 = vld [vmem:[%s1823 + $0x20] sm:$0xf]
        %v1833 = vld [vmem:[%s1823 + $0x24] sm:$0xf]
        %v1834 = vld [vmem:[%s1823 + $0x28] sm:$0xf]
        %v1835 = vld [vmem:[%s1823 + $0x2c] sm:$0xf]
        %v1836 = vld [vmem:[%s1823 + $0x30] sm:$0xf]
        %v1837 = vld [vmem:[%s1823 + $0x34] sm:$0xf]
        %v1838 = vld [vmem:[%s1823 + $0x38] sm:$0xf]
        %v1839 = vld [vmem:[%s1823 + $0x3c] sm:$0xf]
        %v1840 = vld [vmem:[%s1823 + $0x40] sm:$0xf]
        %v1841 = vld [vmem:[%s1823 + $0x44] sm:$0xf]
        %v1842 = vld [vmem:[%s1823 + $0x48] sm:$0xf]
        %v1843 = vld [vmem:[%s1823 + $0x4c] sm:$0xf]
        %v1844 = vld [vmem:[%s1823 + $0x50] sm:$0xf]
        %v1845 = vld [vmem:[%s1823 + $0x54] sm:$0xf]
        %v1846 = vld [vmem:[%s1823 + $0x58] sm:$0xf]
        %v1847 = vld [vmem:[%s1823 + $0x5c] sm:$0xf]
        %v1848 = vld [vmem:[%s1823 + $0x60] sm:$0xf]
        %v1849 = vld [vmem:[%s1823 + $0x64] sm:$0xf]
        %v1850 = vld [vmem:[%s1823 + $0x68] sm:$0xf]
        %v1851 = vld [vmem:[%s1823 + $0x6c] sm:$0xf]
        %v1852 = vld [vmem:[%s1823 + $0x70] sm:$0xf]
        %v1853 = vld [vmem:[%s1823 + $0x74] sm:$0xf]
        %v1854 = vld [vmem:[%s1823 + $0x78] sm:$0xf]
        %v1855 = vld [vmem:[%s1823 + $0x7c] sm:$0xf]
        %v1856 = vld [vmem:[%s1823 + $0x80] sm:$0xf]
        %v1857 = vld [vmem:[%s1823 + $0x84] sm:$0xf]
        %v1858 = vld [vmem:[%s1823 + $0x88] sm:$0xf]
        %v1859 = vld [vmem:[%s1823 + $0x8c] sm:$0xf]
        %v1860 = vld [vmem:[%s1823 + $0x90] sm:$0xf]
        %v1861 = vld [vmem:[%s1823 + $0x94] sm:$0xf]
        %v1862 = vld [vmem:[%s1823 + $0x98] sm:$0xf]
        %v1863 = vld [vmem:[%s1823 + $0x9c] sm:$0xf]
        %v1864 = vld [vmem:[%s1823 + $0xa0] sm:$0xf]
        %v1865 = vld [vmem:[%s1823 + $0xa4] sm:$0xf]
        %v1866 = vld [vmem:[%s1823 + $0xa8] sm:$0xf]
        %v1867 = vld [vmem:[%s1823 + $0xac] sm:$0xf]
        %v1868 = vld [vmem:[%s1823 + $0xb0] sm:$0xf]
        %v1869 = vld [vmem:[%s1823 + $0xb4] sm:$0xf]
        %v1870 = vld [vmem:[%s1823 + $0xb8] sm:$0xf]
        %v1871 = vld [vmem:[%s1823 + $0xbc] sm:$0xf]
        %v1920 = vunpack.c.l.b16 %v1824
        %v1921 = vunpack.c.l.b16 %v1825
        %v1922 = vunpack.c.l.b16 %v1826
        %v1923 = vunpack.c.l.b16 %v1827
        %v1924 = vunpack.c.l.b16 %v1828
        %v1925 = vunpack.c.l.b16 %v1829
        %v1926 = vunpack.c.l.b16 %v1830
        %v1927 = vunpack.c.l.b16 %v1831
        %v1928 = vunpack.c.l.b16 %v1832
        %v1929 = vunpack.c.l.b16 %v1833
        %v1930 = vunpack.c.l.b16 %v1834
        %v1931 = vunpack.c.l.b16 %v1835
        %v1932 = vunpack.c.l.b16 %v1836
        %v1933 = vunpack.c.l.b16 %v1837
        %v1934 = vunpack.c.l.b16 %v1838
        %v1935 = vunpack.c.l.b16 %v1839
        %v1936 = vunpack.c.l.b16 %v1840
        %v1937 = vunpack.c.l.b16 %v1841
        %v1938 = vunpack.c.l.b16 %v1842
        %v1939 = vunpack.c.l.b16 %v1843
        %v1940 = vunpack.c.l.b16 %v1844
        %v1941 = vunpack.c.l.b16 %v1845
        %v1942 = vunpack.c.l.b16 %v1846
        %v1943 = vunpack.c.l.b16 %v1847
        %v1944 = vunpack.c.l.b16 %v1848
        %v1945 = vunpack.c.l.b16 %v1849
        %v1946 = vunpack.c.l.b16 %v1850
        %v1947 = vunpack.c.l.b16 %v1851
        %v1948 = vunpack.c.l.b16 %v1852
        %v1949 = vunpack.c.l.b16 %v1853
        %v1950 = vunpack.c.l.b16 %v1854
        %v1951 = vunpack.c.l.b16 %v1855
        %v1952 = vunpack.c.l.b16 %v1856
        %v1953 = vunpack.c.l.b16 %v1857
        %v1954 = vunpack.c.l.b16 %v1858
        %v1955 = vunpack.c.l.b16 %v1859
        %v1956 = vunpack.c.l.b16 %v1860
        %v1957 = vunpack.c.l.b16 %v1861
        %v1958 = vunpack.c.l.b16 %v1862
        %v1959 = vunpack.c.l.b16 %v1863
        %v1960 = vunpack.c.l.b16 %v1864
        %v1961 = vunpack.c.l.b16 %v1865
        %v1962 = vunpack.c.l.b16 %v1866
        %v1963 = vunpack.c.l.b16 %v1867
        %v1964 = vunpack.c.l.b16 %v1868
        %v1965 = vunpack.c.l.b16 %v1869
        %v1966 = vunpack.c.l.b16 %v1870
        %v1967 = vunpack.c.l.b16 %v1871
        %v1968 = vpack.c.b16 %v1921, %v1920
        %v1969 = vpack.c.b16 %v1923, %v1922
        %v1970 = vpack.c.b16 %v1925, %v1924
        %v1971 = vpack.c.b16 %v1927, %v1926
        %v1972 = vpack.c.b16 %v1929, %v1928
        %v1973 = vpack.c.b16 %v1931, %v1930
        %v1974 = vpack.c.b16 %v1933, %v1932
        %v1975 = vpack.c.b16 %v1935, %v1934
        %v1976 = vpack.c.b16 %v1937, %v1936
        %v1977 = vpack.c.b16 %v1939, %v1938
        %v1978 = vpack.c.b16 %v1941, %v1940
        %v1979 = vpack.c.b16 %v1943, %v1942
        %v1980 = vpack.c.b16 %v1945, %v1944
        %v1981 = vpack.c.b16 %v1947, %v1946
        %v1982 = vpack.c.b16 %v1949, %v1948
        %v1983 = vpack.c.b16 %v1951, %v1950
        %v1984 = vpack.c.b16 %v1953, %v1952
        %v1985 = vpack.c.b16 %v1955, %v1954
        %v1986 = vpack.c.b16 %v1957, %v1956
        %v1987 = vpack.c.b16 %v1959, %v1958
        %v1988 = vpack.c.b16 %v1961, %v1960
        %v1989 = vpack.c.b16 %v1963, %v1962
        %v1990 = vpack.c.b16 %v1965, %v1964
        %v1991 = vpack.c.b16 %v1967, %v1966
        %2016 = vmatprep.subr.bf16.mxu0 0
        %2017 = vmatpush1.bf16.msra.mxu0 %v1975
        %2018 = vmatprep.subr.bf16.mxu0 0
        %2019 = vmatpush1.bf16.msra.mxu0 %v1974
        %2020 = vmatprep.subr.bf16.mxu0 0
        %2021 = vmatpush1.bf16.msra.mxu0 %v1973
        %2022 = vmatprep.subr.bf16.mxu0 0
        %2023 = vmatpush1.bf16.msra.mxu0 %v1972
        %2024 = vmatprep.subr.bf16.mxu0 0
        %2025 = vmatpush1.bf16.msra.mxu0 %v1971
        %2026 = vmatprep.subr.bf16.mxu0 0
        %2027 = vmatpush1.bf16.msra.mxu0 %v1970
        %2028 = vmatprep.subr.bf16.mxu0 0
        %2029 = vmatpush1.bf16.msra.mxu0 %v1969
        %2030 = vmatprep.subr.bf16.mxu0 0
        %2031 = vmatpush1.bf16.msra.mxu0 %v1968
        %2032 = vmatprep.subr.bf16.mxu0 0
        %2033 = vmatpush2.bf16.msra.mxu0 %v1983
        %2034 = vmatprep.subr.bf16.mxu0 0
        %2035 = vmatpush2.bf16.msra.mxu0 %v1982
        %2036 = vmatprep.subr.bf16.mxu0 0
        %2037 = vmatpush2.bf16.msra.mxu0 %v1981
        %2038 = vmatprep.subr.bf16.mxu0 0
        %2039 = vmatpush2.bf16.msra.mxu0 %v1980
        %2040 = vmatprep.subr.bf16.mxu0 0
        %2041 = vmatpush2.bf16.msra.mxu0 %v1979
        %2042 = vmatprep.subr.bf16.mxu0 0
        %2043 = vmatpush2.bf16.msra.mxu0 %v1978
        %2044 = vmatprep.subr.bf16.mxu0 0
        %2045 = vmatpush2.bf16.msra.mxu0 %v1977
        %2046 = vmatprep.subr.bf16.mxu0 0
        %2047 = vmatpush2.bf16.msra.mxu0 %v1976
        %2048 = vmatprep.mubr.bf16.mxu0 %v1776
        %2049 = vmatmul.mubr.bf16.gmra.mxu0 %v1775
        %v2050 = vpop.f32.mrf.mxu0
        %v2051 = vadd.f32 0.0, %v2050
        %v2052 = vpop.f32.mrf.mxu0
        %v2053 = vpop.f32.mrf.mxu0
        %v2054 = vadd.f32 0.0, %v2053
        %v2055 = vpop.f32.mrf.mxu0
        %2056 = vmatprep.mubr.bf16.mxu0 %v1779
        %2057 = vmatmul.mubr.bf16.gmra.mxu0 %v1778
        %v2058 = vpop.f32.mrf.mxu0
        %v2059 = vadd.f32 0.0, %v2058
        %v2060 = vpop.f32.mrf.mxu0
        %v2061 = vpop.f32.mrf.mxu0
        %v2062 = vadd.f32 0.0, %v2061
        %v2063 = vpop.f32.mrf.mxu0
        %2064 = vmatprep.mubr.bf16.mxu0 %v1782
        %2065 = vmatmul.mubr.bf16.gmra.mxu0 %v1781
        %v2066 = vpop.f32.mrf.mxu0
        %v2067 = vadd.f32 0.0, %v2066
        %v2068 = vpop.f32.mrf.mxu0
        %v2069 = vpop.f32.mrf.mxu0
        %v2070 = vadd.f32 0.0, %v2069
        %v2071 = vpop.f32.mrf.mxu0
        %2072 = vmatprep.mubr.bf16.mxu0 %v1785
        %2073 = vmatmul.mubr.bf16.gmra.mxu0 %v1784
        %v2074 = vpop.f32.mrf.mxu0
        %v2075 = vadd.f32 0.0, %v2074
        %v2076 = vpop.f32.mrf.mxu0
        %v2077 = vpop.f32.mrf.mxu0
        %v2078 = vadd.f32 0.0, %v2077
        %v2079 = vpop.f32.mrf.mxu0
        %2080 = vmatprep.mubr.bf16.mxu0 %v1788
        %2081 = vmatmul.mubr.bf16.gmra.mxu0 %v1787
        %v2082 = vpop.f32.mrf.mxu0
        %v2083 = vadd.f32 0.0, %v2082
        %v2084 = vpop.f32.mrf.mxu0
        %v2085 = vpop.f32.mrf.mxu0
        %v2086 = vadd.f32 0.0, %v2085
        %v2087 = vpop.f32.mrf.mxu0
        %2088 = vmatprep.mubr.bf16.mxu0 %v1791
        %2089 = vmatmul.mubr.bf16.gmra.mxu0 %v1790
        %v2090 = vpop.f32.mrf.mxu0
        %v2091 = vadd.f32 0.0, %v2090
        %v2092 = vpop.f32.mrf.mxu0
        %v2093 = vpop.f32.mrf.mxu0
        %v2094 = vadd.f32 0.0, %v2093
        %v2095 = vpop.f32.mrf.mxu0
        %2096 = vmatprep.mubr.bf16.mxu0 %v1794
        %2097 = vmatmul.mubr.bf16.gmra.mxu0 %v1793
        %v2098 = vpop.f32.mrf.mxu0
        %v2099 = vadd.f32 0.0, %v2098
        %v2100 = vpop.f32.mrf.mxu0
        %v2101 = vpop.f32.mrf.mxu0
        %v2102 = vadd.f32 0.0, %v2101
        %v2103 = vpop.f32.mrf.mxu0
        %2104 = vmatprep.mubr.bf16.mxu0 %v1797
        %2105 = vmatmul.mubr.bf16.gmra.mxu0 %v1796
        %v2106 = vpop.f32.mrf.mxu0
        %v2107 = vadd.f32 0.0, %v2106
        %v2108 = vpop.f32.mrf.mxu0
        %v2109 = vpop.f32.mrf.mxu0
        %v2110 = vadd.f32 0.0, %v2109
        %v2111 = vpop.f32.mrf.mxu0
        %2112 = vmatprep.mubr.bf16.mxu0 %v1800
        %2113 = vmatmul.mubr.bf16.gmra.mxu0 %v1799
        %v2114 = vpop.f32.mrf.mxu0
        %v2115 = vadd.f32 0.0, %v2114
        %v2116 = vpop.f32.mrf.mxu0
        %v2117 = vpop.f32.mrf.mxu0
        %v2118 = vadd.f32 0.0, %v2117
        %v2119 = vpop.f32.mrf.mxu0
        %2120 = vmatprep.mubr.bf16.mxu0 %v1803
        %2121 = vmatmul.mubr.bf16.gmra.mxu0 %v1802
        %v2122 = vpop.f32.mrf.mxu0
        %v2123 = vadd.f32 0.0, %v2122
        %v2124 = vpop.f32.mrf.mxu0
        %v2125 = vpop.f32.mrf.mxu0
        %v2126 = vadd.f32 0.0, %v2125
        %v2127 = vpop.f32.mrf.mxu0
        %2128 = vmatprep.mubr.bf16.mxu0 %v1806
        %2129 = vmatmul.mubr.bf16.gmra.mxu0 %v1805
        %v2130 = vpop.f32.mrf.mxu0
        %v2131 = vadd.f32 0.0, %v2130
        %v2132 = vpop.f32.mrf.mxu0
        %v2133 = vpop.f32.mrf.mxu0
        %v2134 = vadd.f32 0.0, %v2133
        %v2135 = vpop.f32.mrf.mxu0
        %2136 = vmatprep.mubr.bf16.mxu0 %v1809
        %2137 = vmatmul.mubr.bf16.gmra.mxu0 %v1808
        %v2138 = vpop.f32.mrf.mxu0
        %v2139 = vadd.f32 0.0, %v2138
        %v2140 = vpop.f32.mrf.mxu0
        %v2141 = vpop.f32.mrf.mxu0
        %v2142 = vadd.f32 0.0, %v2141
        %v2143 = vpop.f32.mrf.mxu0
        %2144 = vmatprep.mubr.bf16.mxu0 %v1812
        %2145 = vmatmul.mubr.bf16.gmra.mxu0 %v1811
        %v2146 = vpop.f32.mrf.mxu0
        %v2147 = vadd.f32 0.0, %v2146
        %v2148 = vpop.f32.mrf.mxu0
        %v2149 = vpop.f32.mrf.mxu0
        %v2150 = vadd.f32 0.0, %v2149
        %v2151 = vpop.f32.mrf.mxu0
        %2152 = vmatprep.mubr.bf16.mxu0 %v1815
        %2153 = vmatmul.mubr.bf16.gmra.mxu0 %v1814
        %v2154 = vpop.f32.mrf.mxu0
        %v2155 = vadd.f32 0.0, %v2154
        %v2156 = vpop.f32.mrf.mxu0
        %v2157 = vpop.f32.mrf.mxu0
        %v2158 = vadd.f32 0.0, %v2157
        %v2159 = vpop.f32.mrf.mxu0
        %2160 = vmatprep.mubr.bf16.mxu0 %v1818
        %2161 = vmatmul.mubr.bf16.gmra.mxu0 %v1817
        %v2162 = vpop.f32.mrf.mxu0
        %v2163 = vadd.f32 0.0, %v2162
        %v2164 = vpop.f32.mrf.mxu0
        %v2165 = vpop.f32.mrf.mxu0
        %v2166 = vadd.f32 0.0, %v2165
        %v2167 = vpop.f32.mrf.mxu0
        %2168 = vmatprep.mubr.bf16.mxu0 %v1821
        %2169 = vmatmul.mubr.bf16.gmra.mxu0 %v1820
        %v2170 = vpop.f32.mrf.mxu0
        %v2171 = vadd.f32 0.0, %v2170
        %v2172 = vpop.f32.mrf.mxu0
        %v2173 = vpop.f32.mrf.mxu0
        %v2174 = vadd.f32 0.0, %v2173
        %v2175 = vpop.f32.mrf.mxu0
        %2176 = vdwg.mxu0
        %2177 = vmatprep.subr.bf16.mxu0 0
        %2178 = vmatpush1.bf16.msra.mxu0 %v1991
        %2179 = vmatprep.subr.bf16.mxu0 0
        %2180 = vmatpush1.bf16.msra.mxu0 %v1990
        %2181 = vmatprep.subr.bf16.mxu0 0
        %2182 = vmatpush1.bf16.msra.mxu0 %v1989
        %2183 = vmatprep.subr.bf16.mxu0 0
        %2184 = vmatpush1.bf16.msra.mxu0 %v1988
        %2185 = vmatprep.subr.bf16.mxu0 0
        %2186 = vmatpush1.bf16.msra.mxu0 %v1987
        %2187 = vmatprep.subr.bf16.mxu0 0
        %2188 = vmatpush1.bf16.msra.mxu0 %v1986
        %2189 = vmatprep.subr.bf16.mxu0 0
        %2190 = vmatpush1.bf16.msra.mxu0 %v1985
        %2191 = vmatprep.subr.bf16.mxu0 0
        %2192 = vmatpush1.bf16.msra.mxu0 %v1984
        %2193 = vmatprep.subr.bf16.mxu0 0
        %2194 = vmatpush2.bf16.msra.mxu0 0
        %2195 = vmatprep.subr.bf16.mxu0 0
        %2196 = vmatpush2.bf16.msra.mxu0 0
        %2197 = vmatprep.subr.bf16.mxu0 0
        %2198 = vmatpush2.bf16.msra.mxu0 0
        %2199 = vmatprep.subr.bf16.mxu0 0
        %2200 = vmatpush2.bf16.msra.mxu0 0
        %2201 = vmatprep.subr.bf16.mxu0 0
        %2202 = vmatpush2.bf16.msra.mxu0 0
        %2203 = vmatprep.subr.bf16.mxu0 0
        %2204 = vmatpush2.bf16.msra.mxu0 0
        %2205 = vmatprep.subr.bf16.mxu0 0
        %2206 = vmatpush2.bf16.msra.mxu0 0
        %2207 = vmatprep.subr.bf16.mxu0 0
        %2208 = vmatpush2.bf16.msra.mxu0 0
        %2209 = vmatprep.mubr.bf16.mxu0 0
        %2210 = vmatmul.mubr.bf16.gmra.mxu0 %v1777
        %v2211 = vpop.f32.mrf.mxu0
        %v2212 = vadd.f32 %v2051, %v2211
        %v2213 = vpop.f32.mrf.mxu0
        %v2214 = vpop.f32.mrf.mxu0
        %v2215 = vadd.f32 %v2054, %v2214
        %v2216 = vpop.f32.mrf.mxu0
        %2217 = vmatprep.mubr.bf16.mxu0 0
        %2218 = vmatmul.mubr.bf16.gmra.mxu0 %v1780
        %v2219 = vpop.f32.mrf.mxu0
        %v2220 = vadd.f32 %v2059, %v2219
        %v2221 = vpop.f32.mrf.mxu0
        %v2222 = vpop.f32.mrf.mxu0
        %v2223 = vadd.f32 %v2062, %v2222
        %v2224 = vpop.f32.mrf.mxu0
        %2225 = vmatprep.mubr.bf16.mxu0 0
        %2226 = vmatmul.mubr.bf16.gmra.mxu0 %v1783
        %v2227 = vpop.f32.mrf.mxu0
        %v2228 = vadd.f32 %v2067, %v2227
        %v2229 = vpop.f32.mrf.mxu0
        %v2230 = vpop.f32.mrf.mxu0
        %v2231 = vadd.f32 %v2070, %v2230
        %v2232 = vpop.f32.mrf.mxu0
        %2233 = vmatprep.mubr.bf16.mxu0 0
        %2234 = vmatmul.mubr.bf16.gmra.mxu0 %v1786
        %v2235 = vpop.f32.mrf.mxu0
        %v2236 = vadd.f32 %v2075, %v2235
        %v2237 = vpop.f32.mrf.mxu0
        %v2238 = vpop.f32.mrf.mxu0
        %v2239 = vadd.f32 %v2078, %v2238
        %v2240 = vpop.f32.mrf.mxu0
        %2241 = vmatprep.mubr.bf16.mxu0 0
        %2242 = vmatmul.mubr.bf16.gmra.mxu0 %v1789
        %v2243 = vpop.f32.mrf.mxu0
        %v2244 = vadd.f32 %v2083, %v2243
        %v2245 = vpop.f32.mrf.mxu0
        %v2246 = vpop.f32.mrf.mxu0
        %v2247 = vadd.f32 %v2086, %v2246
        %v2248 = vpop.f32.mrf.mxu0
        %2249 = vmatprep.mubr.bf16.mxu0 0
        %2250 = vmatmul.mubr.bf16.gmra.mxu0 %v1792
        %v2251 = vpop.f32.mrf.mxu0
        %v2252 = vadd.f32 %v2091, %v2251
        %v2253 = vpop.f32.mrf.mxu0
        %v2254 = vpop.f32.mrf.mxu0
        %v2255 = vadd.f32 %v2094, %v2254
        %v2256 = vpop.f32.mrf.mxu0
        %2257 = vmatprep.mubr.bf16.mxu0 0
        %2258 = vmatmul.mubr.bf16.gmra.mxu0 %v1795
        %v2259 = vpop.f32.mrf.mxu0
        %v2260 = vadd.f32 %v2099, %v2259
        %v2261 = vpop.f32.mrf.mxu0
        %v2262 = vpop.f32.mrf.mxu0
        %v2263 = vadd.f32 %v2102, %v2262
        %v2264 = vpop.f32.mrf.mxu0
        %2265 = vmatprep.mubr.bf16.mxu0 0
        %2266 = vmatmul.mubr.bf16.gmra.mxu0 %v1798
        %v2267 = vpop.f32.mrf.mxu0
        %v2268 = vadd.f32 %v2107, %v2267
        %v2269 = vpop.f32.mrf.mxu0
        %v2270 = vpop.f32.mrf.mxu0
        %v2271 = vadd.f32 %v2110, %v2270
        %v2272 = vpop.f32.mrf.mxu0
        %2273 = vmatprep.mubr.bf16.mxu0 0
        %2274 = vmatmul.mubr.bf16.gmra.mxu0 %v1801
        %v2275 = vpop.f32.mrf.mxu0
        %v2276 = vadd.f32 %v2115, %v2275
        %v2277 = vpop.f32.mrf.mxu0
        %v2278 = vpop.f32.mrf.mxu0
        %v2279 = vadd.f32 %v2118, %v2278
        %v2280 = vpop.f32.mrf.mxu0
        %2281 = vmatprep.mubr.bf16.mxu0 0
        %2282 = vmatmul.mubr.bf16.gmra.mxu0 %v1804
        %v2283 = vpop.f32.mrf.mxu0
        %v2284 = vadd.f32 %v2123, %v2283
        %v2285 = vpop.f32.mrf.mxu0
        %v2286 = vpop.f32.mrf.mxu0
        %v2287 = vadd.f32 %v2126, %v2286
        %v2288 = vpop.f32.mrf.mxu0
        %2289 = vmatprep.mubr.bf16.mxu0 0
        %2290 = vmatmul.mubr.bf16.gmra.mxu0 %v1807
        %v2291 = vpop.f32.mrf.mxu0
        %v2292 = vadd.f32 %v2131, %v2291
        %v2293 = vpop.f32.mrf.mxu0
        %v2294 = vpop.f32.mrf.mxu0
        %v2295 = vadd.f32 %v2134, %v2294
        %v2296 = vpop.f32.mrf.mxu0
        %2297 = vmatprep.mubr.bf16.mxu0 0
        %2298 = vmatmul.mubr.bf16.gmra.mxu0 %v1810
        %v2299 = vpop.f32.mrf.mxu0
        %v2300 = vadd.f32 %v2139, %v2299
        %v2301 = vpop.f32.mrf.mxu0
        %v2302 = vpop.f32.mrf.mxu0
        %v2303 = vadd.f32 %v2142, %v2302
        %v2304 = vpop.f32.mrf.mxu0
        %2305 = vmatprep.mubr.bf16.mxu0 0
        %2306 = vmatmul.mubr.bf16.gmra.mxu0 %v1813
        %v2307 = vpop.f32.mrf.mxu0
        %v2308 = vadd.f32 %v2147, %v2307
        %v2309 = vpop.f32.mrf.mxu0
        %v2310 = vpop.f32.mrf.mxu0
        %v2311 = vadd.f32 %v2150, %v2310
        %v2312 = vpop.f32.mrf.mxu0
        %2313 = vmatprep.mubr.bf16.mxu0 0
        %2314 = vmatmul.mubr.bf16.gmra.mxu0 %v1816
        %v2315 = vpop.f32.mrf.mxu0
        %v2316 = vadd.f32 %v2155, %v2315
        %v2317 = vpop.f32.mrf.mxu0
        %v2318 = vpop.f32.mrf.mxu0
        %v2319 = vadd.f32 %v2158, %v2318
        %v2320 = vpop.f32.mrf.mxu0
        %2321 = vmatprep.mubr.bf16.mxu0 0
        %2322 = vmatmul.mubr.bf16.gmra.mxu0 %v1819
        %v2323 = vpop.f32.mrf.mxu0
        %v2324 = vadd.f32 %v2163, %v2323
        %v2325 = vpop.f32.mrf.mxu0
        %v2326 = vpop.f32.mrf.mxu0
        %v2327 = vadd.f32 %v2166, %v2326
        %v2328 = vpop.f32.mrf.mxu0
        %2329 = vmatprep.mubr.bf16.mxu0 0
        %2330 = vmatmul.mubr.bf16.gmra.mxu0 %v1822
        %v2331 = vpop.f32.mrf.mxu0
        %v2332 = vadd.f32 %v2171, %v2331
        %v2333 = vpop.f32.mrf.mxu0
        %v2334 = vpop.f32.mrf.mxu0
        %v2335 = vadd.f32 %v2174, %v2334
        %v2336 = vpop.f32.mrf.mxu0
        %2337 = vdwg.mxu0
        %v2338 = vadd.f32 %v1552, %v2212
        %v2339 = vadd.f32 %v1555, %v2215
        %v2340 = vadd.f32 %v1560, %v2220
        %v2341 = vadd.f32 %v1563, %v2223
        %v2342 = vadd.f32 %v1568, %v2228
        %v2343 = vadd.f32 %v1571, %v2231
        %v2344 = vadd.f32 %v1576, %v2236
        %v2345 = vadd.f32 %v1579, %v2239
        %v2346 = vadd.f32 %v1584, %v2244
        %v2347 = vadd.f32 %v1587, %v2247
        %v2348 = vadd.f32 %v1592, %v2252
        %v2349 = vadd.f32 %v1595, %v2255
        %v2350 = vadd.f32 %v1600, %v2260
        %v2351 = vadd.f32 %v1603, %v2263
        %v2352 = vadd.f32 %v1608, %v2268
        %v2353 = vadd.f32 %v1611, %v2271
        %v2354 = vadd.f32 %v1616, %v2276
        %v2355 = vadd.f32 %v1619, %v2279
        %v2356 = vadd.f32 %v1624, %v2284
        %v2357 = vadd.f32 %v1627, %v2287
        %v2358 = vadd.f32 %v1632, %v2292
        %v2359 = vadd.f32 %v1635, %v2295
        %v2360 = vadd.f32 %v1640, %v2300
        %v2361 = vadd.f32 %v1643, %v2303
        %v2362 = vadd.f32 %v1648, %v2308
        %v2363 = vadd.f32 %v1651, %v2311
        %v2364 = vadd.f32 %v1656, %v2316
        %v2365 = vadd.f32 %v1659, %v2319
        %v2366 = vadd.f32 %v1664, %v2324
        %v2367 = vadd.f32 %v1667, %v2327
        %v2368 = vadd.f32 %v1672, %v2332
        %v2369 = vadd.f32 %v1675, %v2335
        %v2370 = vadd.f32 %v2338, %v2339
        %v2371 = vadd.f32 %v2370, %v2340
        %v2372 = vadd.f32 %v2371, %v2341
        %v2373 = vadd.f32 %v2372, %v2342
        %v2374 = vadd.f32 %v2373, %v2343
        %v2375 = vadd.f32 %v2374, %v2344
        %v2376 = vadd.f32 %v2375, %v2345
        %v2377 = vadd.f32 %v2376, %v2346
        %v2378 = vadd.f32 %v2377, %v2347
        %v2379 = vadd.f32 %v2378, %v2348
        %v2380 = vadd.f32 %v2379, %v2349
        %v2381 = vadd.f32 %v2380, %v2350
        %v2382 = vadd.f32 %v2381, %v2351
        %v2383 = vadd.f32 %v2382, %v2352
        %v2384 = vadd.f32 %v2383, %v2353
        %v2385 = vadd.f32 %v2384, %v2354
        %v2386 = vadd.f32 %v2385, %v2355
        %v2387 = vadd.f32 %v2386, %v2356
        %v2388 = vadd.f32 %v2387, %v2357
        %v2389 = vadd.f32 %v2388, %v2358
        %v2390 = vadd.f32 %v2389, %v2359
        %v2391 = vadd.f32 %v2390, %v2360
        %v2392 = vadd.f32 %v2391, %v2361
        %v2393 = vadd.f32 %v2392, %v2362
        %v2394 = vadd.f32 %v2393, %v2363
        %v2395 = vadd.f32 %v2394, %v2364
        %v2396 = vadd.f32 %v2395, %v2365
        %v2397 = vadd.f32 %v2396, %v2366
        %v2398 = vadd.f32 %v2397, %v2367
        %v2399 = vadd.f32 %v2398, %v2368
        %v2400 = vadd.f32 %v2399, %v2369
        %v2401 = vrot.slane %v2400, 4
        %v2402 = vadd.f32 %v2400, %v2401
        %v2403 = vrot.slane %v2402, 2
        %v2404 = vadd.f32 %v2402, %v2403
        %v2405 = vrot.slane %v2404, 1
        %v2406 = vadd.f32 %v2404, %v2405
        %v2407 = vrcp.pop 256.0
        %v2408 = vmul.f32 %v2406, %v2407
        %v2409 = vsub.f32 %v2338, %v2408
        %v2410 = vsub.f32 %v2339, %v2408
        %v2411 = vsub.f32 %v2340, %v2408
        %v2412 = vsub.f32 %v2341, %v2408
        %v2413 = vsub.f32 %v2342, %v2408
        %v2414 = vsub.f32 %v2343, %v2408
        %v2415 = vsub.f32 %v2344, %v2408
        %v2416 = vsub.f32 %v2345, %v2408
        %v2417 = vsub.f32 %v2346, %v2408
        %v2418 = vsub.f32 %v2347, %v2408
        %v2419 = vsub.f32 %v2348, %v2408
        %v2420 = vsub.f32 %v2349, %v2408
        %v2421 = vsub.f32 %v2350, %v2408
        %v2422 = vsub.f32 %v2351, %v2408
        %v2423 = vsub.f32 %v2352, %v2408
        %v2424 = vsub.f32 %v2353, %v2408
        %v2425 = vsub.f32 %v2354, %v2408
        %v2426 = vsub.f32 %v2355, %v2408
        %v2427 = vsub.f32 %v2356, %v2408
        %v2428 = vsub.f32 %v2357, %v2408
        %v2429 = vsub.f32 %v2358, %v2408
        %v2430 = vsub.f32 %v2359, %v2408
        %v2431 = vsub.f32 %v2360, %v2408
        %v2432 = vsub.f32 %v2361, %v2408
        %v2433 = vsub.f32 %v2362, %v2408
        %v2434 = vsub.f32 %v2363, %v2408
        %v2435 = vsub.f32 %v2364, %v2408
        %v2436 = vsub.f32 %v2365, %v2408
        %v2437 = vsub.f32 %v2366, %v2408
        %v2438 = vsub.f32 %v2367, %v2408
        %v2439 = vsub.f32 %v2368, %v2408
        %v2440 = vsub.f32 %v2369, %v2408
        %v2441 = vmul.f32 %v2409, %v2409
        %v2442 = vmul.f32 %v2410, %v2410
        %v2443 = vmul.f32 %v2411, %v2411
        %v2444 = vmul.f32 %v2412, %v2412
        %v2445 = vmul.f32 %v2413, %v2413
        %v2446 = vmul.f32 %v2414, %v2414
        %v2447 = vmul.f32 %v2415, %v2415
        %v2448 = vmul.f32 %v2416, %v2416
        %v2449 = vmul.f32 %v2417, %v2417
        %v2450 = vmul.f32 %v2418, %v2418
        %v2451 = vmul.f32 %v2419, %v2419
        %v2452 = vmul.f32 %v2420, %v2420
        %v2453 = vmul.f32 %v2421, %v2421
        %v2454 = vmul.f32 %v2422, %v2422
        %v2455 = vmul.f32 %v2423, %v2423
        %v2456 = vmul.f32 %v2424, %v2424
        %v2457 = vmul.f32 %v2425, %v2425
        %v2458 = vmul.f32 %v2426, %v2426
        %v2459 = vmul.f32 %v2427, %v2427
        %v2460 = vmul.f32 %v2428, %v2428
        %v2461 = vmul.f32 %v2429, %v2429
        %v2462 = vmul.f32 %v2430, %v2430
        %v2463 = vmul.f32 %v2431, %v2431
        %v2464 = vmul.f32 %v2432, %v2432
        %v2465 = vmul.f32 %v2433, %v2433
        %v2466 = vmul.f32 %v2434, %v2434
        %v2467 = vmul.f32 %v2435, %v2435
        %v2468 = vmul.f32 %v2436, %v2436
        %v2469 = vmul.f32 %v2437, %v2437
        %v2470 = vmul.f32 %v2438, %v2438
        %v2471 = vmul.f32 %v2439, %v2439
        %v2472 = vmul.f32 %v2440, %v2440
        %v2473 = vadd.f32 %v2441, %v2442
        %v2474 = vadd.f32 %v2473, %v2443
        %v2475 = vadd.f32 %v2474, %v2444
        %v2476 = vadd.f32 %v2475, %v2445
        %v2477 = vadd.f32 %v2476, %v2446
        %v2478 = vadd.f32 %v2477, %v2447
        %v2479 = vadd.f32 %v2478, %v2448
        %v2480 = vadd.f32 %v2479, %v2449
        %v2481 = vadd.f32 %v2480, %v2450
        %v2482 = vadd.f32 %v2481, %v2451
        %v2483 = vadd.f32 %v2482, %v2452
        %v2484 = vadd.f32 %v2483, %v2453
        %v2485 = vadd.f32 %v2484, %v2454
        %v2486 = vadd.f32 %v2485, %v2455
        %v2487 = vadd.f32 %v2486, %v2456
        %v2488 = vadd.f32 %v2487, %v2457
        %v2489 = vadd.f32 %v2488, %v2458
        %v2490 = vadd.f32 %v2489, %v2459
        %v2491 = vadd.f32 %v2490, %v2460
        %v2492 = vadd.f32 %v2491, %v2461
        %v2493 = vadd.f32 %v2492, %v2462
        %v2494 = vadd.f32 %v2493, %v2463
        %v2495 = vadd.f32 %v2494, %v2464
        %v2496 = vadd.f32 %v2495, %v2465
        %v2497 = vadd.f32 %v2496, %v2466
        %v2498 = vadd.f32 %v2497, %v2467
        %v2499 = vadd.f32 %v2498, %v2468
        %v2500 = vadd.f32 %v2499, %v2469
        %v2501 = vadd.f32 %v2500, %v2470
        %v2502 = vadd.f32 %v2501, %v2471
        %v2503 = vadd.f32 %v2502, %v2472
        %v2504 = vrot.slane %v2503, 4
        %v2505 = vadd.f32 %v2503, %v2504
        %v2506 = vrot.slane %v2505, 2
        %v2507 = vadd.f32 %v2505, %v2506
        %v2508 = vrot.slane %v2507, 1
        %v2509 = vadd.f32 %v2507, %v2508
        %v2510 = vmul.f32 %v2509, %v2407
        %v2511 = vld [vmem:[%s2] sm:$0x1]
        %v2512 = vadd.f32 %v2510, 1e-05
        %v2513 = vrsqrt.pop %v2512
        %v2514 = vmul.f32 %v2511, %v2513
        %v2515 = vld [vmem:[%s2 + $0x1] sm:$0x1]
        %v2516 = vmul.f32 %v2408, %v2514
        %v2517 = vsub.f32 %v2515, %v2516
        %v2518 = vlaneseq
        %v2519 = vshrl.u32 %v2518, 7
        %v2520 = vsub.s32 0, %v2519
        %v2521 = vrot.slane %v2514, %v2520
        %v2522 = vmul.f32 %v2338, %v2521
        %v2523 = vmul.f32 %v2339, %v2521
        %v2524 = vmul.f32 %v2340, %v2521
        %v2525 = vmul.f32 %v2341, %v2521
        %v2526 = vmul.f32 %v2342, %v2521
        %v2527 = vmul.f32 %v2343, %v2521
        %v2528 = vmul.f32 %v2344, %v2521
        %v2529 = vmul.f32 %v2345, %v2521
        %v2530 = vmul.f32 %v2346, %v2521
        %v2531 = vmul.f32 %v2347, %v2521
        %v2532 = vmul.f32 %v2348, %v2521
        %v2533 = vmul.f32 %v2349, %v2521
        %v2534 = vmul.f32 %v2350, %v2521
        %v2535 = vmul.f32 %v2351, %v2521
        %v2536 = vmul.f32 %v2352, %v2521
        %v2537 = vmul.f32 %v2353, %v2521
        %v2538 = vmul.f32 %v2354, %v2521
        %v2539 = vmul.f32 %v2355, %v2521
        %v2540 = vmul.f32 %v2356, %v2521
        %v2541 = vmul.f32 %v2357, %v2521
        %v2542 = vmul.f32 %v2358, %v2521
        %v2543 = vmul.f32 %v2359, %v2521
        %v2544 = vmul.f32 %v2360, %v2521
        %v2545 = vmul.f32 %v2361, %v2521
        %v2546 = vmul.f32 %v2362, %v2521
        %v2547 = vmul.f32 %v2363, %v2521
        %v2548 = vmul.f32 %v2364, %v2521
        %v2549 = vmul.f32 %v2365, %v2521
        %v2550 = vmul.f32 %v2366, %v2521
        %v2551 = vmul.f32 %v2367, %v2521
        %v2552 = vmul.f32 %v2368, %v2521
        %v2553 = vmul.f32 %v2369, %v2521
        %v2554 = vlaneseq
        %v2555 = vshrl.u32 %v2554, 7
        %v2556 = vsub.s32 0, %v2555
        %v2557 = vrot.slane %v2517, %v2556
        %v2558 = vadd.f32 %v2522, %v2557
        %v2559 = vadd.f32 %v2523, %v2557
        %v2560 = vadd.f32 %v2524, %v2557
        %v2561 = vadd.f32 %v2525, %v2557
        %v2562 = vadd.f32 %v2526, %v2557
        %v2563 = vadd.f32 %v2527, %v2557
        %v2564 = vadd.f32 %v2528, %v2557
        %v2565 = vadd.f32 %v2529, %v2557
        %v2566 = vadd.f32 %v2530, %v2557
        %v2567 = vadd.f32 %v2531, %v2557
        %v2568 = vadd.f32 %v2532, %v2557
        %v2569 = vadd.f32 %v2533, %v2557
        %v2570 = vadd.f32 %v2534, %v2557
        %v2571 = vadd.f32 %v2535, %v2557
        %v2572 = vadd.f32 %v2536, %v2557
        %v2573 = vadd.f32 %v2537, %v2557
        %v2574 = vadd.f32 %v2538, %v2557
        %v2575 = vadd.f32 %v2539, %v2557
        %v2576 = vadd.f32 %v2540, %v2557
        %v2577 = vadd.f32 %v2541, %v2557
        %v2578 = vadd.f32 %v2542, %v2557
        %v2579 = vadd.f32 %v2543, %v2557
        %v2580 = vadd.f32 %v2544, %v2557
        %v2581 = vadd.f32 %v2545, %v2557
        %v2582 = vadd.f32 %v2546, %v2557
        %v2583 = vadd.f32 %v2547, %v2557
        %v2584 = vadd.f32 %v2548, %v2557
        %v2585 = vadd.f32 %v2549, %v2557
        %v2586 = vadd.f32 %v2550, %v2557
        %v2587 = vadd.f32 %v2551, %v2557
        %v2588 = vadd.f32 %v2552, %v2557
        %v2589 = vadd.f32 %v2553, %v2557
        %v2590 = vmax.f32 %v2558, 0.0
        %v2591 = vmax.f32 %v2559, 0.0
        %v2592 = vmax.f32 %v2560, 0.0
        %v2593 = vmax.f32 %v2561, 0.0
        %v2594 = vmax.f32 %v2562, 0.0
        %v2595 = vmax.f32 %v2563, 0.0
        %v2596 = vmax.f32 %v2564, 0.0
        %v2597 = vmax.f32 %v2565, 0.0
        %v2598 = vmax.f32 %v2566, 0.0
        %v2599 = vmax.f32 %v2567, 0.0
        %v2600 = vmax.f32 %v2568, 0.0
        %v2601 = vmax.f32 %v2569, 0.0
        %v2602 = vmax.f32 %v2570, 0.0
        %v2603 = vmax.f32 %v2571, 0.0
        %v2604 = vmax.f32 %v2572, 0.0
        %v2605 = vmax.f32 %v2573, 0.0
        %v2606 = vmax.f32 %v2574, 0.0
        %v2607 = vmax.f32 %v2575, 0.0
        %v2608 = vmax.f32 %v2576, 0.0
        %v2609 = vmax.f32 %v2577, 0.0
        %v2610 = vmax.f32 %v2578, 0.0
        %v2611 = vmax.f32 %v2579, 0.0
        %v2612 = vmax.f32 %v2580, 0.0
        %v2613 = vmax.f32 %v2581, 0.0
        %v2614 = vmax.f32 %v2582, 0.0
        %v2615 = vmax.f32 %v2583, 0.0
        %v2616 = vmax.f32 %v2584, 0.0
        %v2617 = vmax.f32 %v2585, 0.0
        %v2618 = vmax.f32 %v2586, 0.0
        %v2619 = vmax.f32 %v2587, 0.0
        %v2620 = vmax.f32 %v2588, 0.0
        %v2621 = vmax.f32 %v2589, 0.0
        %2622 = vst [vmem:[%s328 + $0x8] sm:$0xff] %v2590
        %2623 = vst [vmem:[%s328 + $0x10] sm:$0xff] %v2591
        %2624 = vst [vmem:[%s328 + $0x28] sm:$0xff] %v2592
        %2625 = vst [vmem:[%s328 + $0x30] sm:$0xff] %v2593
        %2626 = vst [vmem:[%s328 + $0x48] sm:$0xff] %v2594
        %2627 = vst [vmem:[%s328 + $0x50] sm:$0xff] %v2595
        %2628 = vst [vmem:[%s328 + $0x68] sm:$0xff] %v2596
        %2629 = vst [vmem:[%s328 + $0x70] sm:$0xff] %v2597
        %2630 = vst [vmem:[%s328 + $0x88] sm:$0xff] %v2598
        %2631 = vst [vmem:[%s328 + $0x90] sm:$0xff] %v2599
        %2632 = vst [vmem:[%s328 + $0xa8] sm:$0xff] %v2600
        %2633 = vst [vmem:[%s328 + $0xb0] sm:$0xff] %v2601
        %2634 = vst [vmem:[%s328 + $0xc8] sm:$0xff] %v2602
        %2635 = vst [vmem:[%s328 + $0xd0] sm:$0xff] %v2603
        %2636 = vst [vmem:[%s328 + $0xe8] sm:$0xff] %v2604
        %2637 = vst [vmem:[%s328 + $0xf0] sm:$0xff] %v2605
        %2638 = vst [vmem:[%s328 + $0x108] sm:$0xff] %v2606
        %2639 = vst [vmem:[%s328 + $0x110] sm:$0xff] %v2607
        %2640 = vst [vmem:[%s328 + $0x128] sm:$0xff] %v2608
        %2641 = vst [vmem:[%s328 + $0x130] sm:$0xff] %v2609
        %2642 = vst [vmem:[%s328 + $0x148] sm:$0xff] %v2610
        %2643 = vst [vmem:[%s328 + $0x150] sm:$0xff] %v2611
        %2644 = vst [vmem:[%s328 + $0x168] sm:$0xff] %v2612
        %2645 = vst [vmem:[%s328 + $0x170] sm:$0xff] %v2613
        %2646 = vst [vmem:[%s328 + $0x188] sm:$0xff] %v2614
        %2647 = vst [vmem:[%s328 + $0x190] sm:$0xff] %v2615
        %2648 = vst [vmem:[%s328 + $0x1a8] sm:$0xff] %v2616
        %2649 = vst [vmem:[%s328 + $0x1b0] sm:$0xff] %v2617
        %2650 = vst [vmem:[%s328 + $0x1c8] sm:$0xff] %v2618
        %2651 = vst [vmem:[%s328 + $0x1d0] sm:$0xff] %v2619
        %2652 = vst [vmem:[%s328 + $0x1e8] sm:$0xff] %v2620
        %2653 = vst [vmem:[%s328 + $0x1f0] sm:$0xff] %v2621
        %v2654 = vld [vmem:[#allocation2 + $0x7] sm:$0xff]
        %v2655 = vld [vmem:[#allocation2 + $0xf] sm:$0xff]
        %v2656 = vld [vmem:[#allocation2 + $0x27] sm:$0xff]
        %v2657 = vld [vmem:[#allocation2 + $0x2f] sm:$0xff]
        %v2658 = vld [vmem:[#allocation2 + $0x47] sm:$0xff]
        %v2659 = vld [vmem:[#allocation2 + $0x4f] sm:$0xff]
        %v2660 = vld [vmem:[#allocation2 + $0x67] sm:$0xff]
        %v2661 = vld [vmem:[#allocation2 + $0x6f] sm:$0xff]
        %v2662 = vld [vmem:[#allocation2 + $0x87] sm:$0xff]
        %v2663 = vld [vmem:[#allocation2 + $0x8f] sm:$0xff]
        %v2664 = vld [vmem:[#allocation2 + $0xa7] sm:$0xff]
        %v2665 = vld [vmem:[#allocation2 + $0xaf] sm:$0xff]
        %v2666 = vld [vmem:[#allocation2 + $0xc7] sm:$0xff]
        %v2667 = vld [vmem:[#allocation2 + $0xcf] sm:$0xff]
        %v2668 = vld [vmem:[#allocation2 + $0xe7] sm:$0xff]
        %v2669 = vld [vmem:[#allocation2 + $0xef] sm:$0xff]
        %v2670 = vld [vmem:[#allocation2 + $0x107] sm:$0xff]
        %v2671 = vld [vmem:[#allocation2 + $0x10f] sm:$0xff]
        %v2672 = vld [vmem:[#allocation2 + $0x127] sm:$0xff]
        %v2673 = vld [vmem:[#allocation2 + $0x12f] sm:$0xff]
        %v2674 = vld [vmem:[#allocation2 + $0x147] sm:$0xff]
        %v2675 = vld [vmem:[#allocation2 + $0x14f] sm:$0xff]
        %v2676 = vld [vmem:[#allocation2 + $0x167] sm:$0xff]
        %v2677 = vld [vmem:[#allocation2 + $0x16f] sm:$0xff]
        %v2678 = vld [vmem:[#allocation2 + $0x187] sm:$0xff]
        %v2679 = vld [vmem:[#allocation2 + $0x18f] sm:$0xff]
        %v2680 = vld [vmem:[#allocation2 + $0x1a7] sm:$0xff]
        %v2681 = vld [vmem:[#allocation2 + $0x1af] sm:$0xff]
        %v2682 = vld [vmem:[#allocation2 + $0x1c7] sm:$0xff]
        %v2683 = vld [vmem:[#allocation2 + $0x1cf] sm:$0xff]
        %v2684 = vld [vmem:[#allocation2 + $0x1e7] sm:$0xff]
        %v2685 = vld [vmem:[#allocation2 + $0x1ef] sm:$0xff]
        %v2686 = vld [vmem:[#allocation2 + $0x8] sm:$0xff]
        %v2687 = vld [vmem:[#allocation2 + $0x10] sm:$0xff]
        %v2688 = vld [vmem:[#allocation2 + $0x28] sm:$0xff]
        %v2689 = vld [vmem:[#allocation2 + $0x30] sm:$0xff]
        %v2690 = vld [vmem:[#allocation2 + $0x48] sm:$0xff]
        %v2691 = vld [vmem:[#allocation2 + $0x50] sm:$0xff]
        %v2692 = vld [vmem:[#allocation2 + $0x68] sm:$0xff]
        %v2693 = vld [vmem:[#allocation2 + $0x70] sm:$0xff]
        %v2694 = vld [vmem:[#allocation2 + $0x88] sm:$0xff]
        %v2695 = vld [vmem:[#allocation2 + $0x90] sm:$0xff]
        %v2696 = vld [vmem:[#allocation2 + $0xa8] sm:$0xff]
        %v2697 = vld [vmem:[#allocation2 + $0xb0] sm:$0xff]
        %v2698 = vld [vmem:[#allocation2 + $0xc8] sm:$0xff]
        %v2699 = vld [vmem:[#allocation2 + $0xd0] sm:$0xff]
        %v2700 = vld [vmem:[#allocation2 + $0xe8] sm:$0xff]
        %v2701 = vld [vmem:[#allocation2 + $0xf0] sm:$0xff]
        %v2702 = vld [vmem:[#allocation2 + $0x108] sm:$0xff]
        %v2703 = vld [vmem:[#allocation2 + $0x110] sm:$0xff]
        %v2704 = vld [vmem:[#allocation2 + $0x128] sm:$0xff]
        %v2705 = vld [vmem:[#allocation2 + $0x130] sm:$0xff]
        %v2706 = vld [vmem:[#allocation2 + $0x148] sm:$0xff]
        %v2707 = vld [vmem:[#allocation2 + $0x150] sm:$0xff]
        %v2708 = vld [vmem:[#allocation2 + $0x168] sm:$0xff]
        %v2709 = vld [vmem:[#allocation2 + $0x170] sm:$0xff]
        %v2710 = vld [vmem:[#allocation2 + $0x188] sm:$0xff]
        %v2711 = vld [vmem:[#allocation2 + $0x190] sm:$0xff]
        %v2712 = vld [vmem:[#allocation2 + $0x1a8] sm:$0xff]
        %v2713 = vld [vmem:[#allocation2 + $0x1b0] sm:$0xff]
        %v2714 = vld [vmem:[#allocation2 + $0x1c8] sm:$0xff]
        %v2715 = vld [vmem:[#allocation2 + $0x1d0] sm:$0xff]
        %v2716 = vld [vmem:[#allocation2 + $0x1e8] sm:$0xff]
        %v2717 = vld [vmem:[#allocation2 + $0x1f0] sm:$0xff]
        %v2718 = vld [vmem:[#allocation2 + $0x9] sm:$0xff]
        %v2719 = vld [vmem:[#allocation2 + $0x11] sm:$0xff]
        %v2720 = vld [vmem:[#allocation2 + $0x29] sm:$0xff]
        %v2721 = vld [vmem:[#allocation2 + $0x31] sm:$0xff]
        %v2722 = vld [vmem:[#allocation2 + $0x49] sm:$0xff]
        %v2723 = vld [vmem:[#allocation2 + $0x51] sm:$0xff]
        %v2724 = vld [vmem:[#allocation2 + $0x69] sm:$0xff]
        %v2725 = vld [vmem:[#allocation2 + $0x71] sm:$0xff]
        %v2726 = vld [vmem:[#allocation2 + $0x89] sm:$0xff]
        %v2727 = vld [vmem:[#allocation2 + $0x91] sm:$0xff]
        %v2728 = vld [vmem:[#allocation2 + $0xa9] sm:$0xff]
        %v2729 = vld [vmem:[#allocation2 + $0xb1] sm:$0xff]
        %v2730 = vld [vmem:[#allocation2 + $0xc9] sm:$0xff]
        %v2731 = vld [vmem:[#allocation2 + $0xd1] sm:$0xff]
        %v2732 = vld [vmem:[#allocation2 + $0xe9] sm:$0xff]
        %v2733 = vld [vmem:[#allocation2 + $0xf1] sm:$0xff]
        %v2734 = vld [vmem:[#allocation2 + $0x109] sm:$0xff]
        %v2735 = vld [vmem:[#allocation2 + $0x111] sm:$0xff]
        %v2736 = vld [vmem:[#allocation2 + $0x129] sm:$0xff]
        %v2737 = vld [vmem:[#allocation2 + $0x131] sm:$0xff]
        %v2738 = vld [vmem:[#allocation2 + $0x149] sm:$0xff]
        %v2739 = vld [vmem:[#allocation2 + $0x151] sm:$0xff]
        %v2740 = vld [vmem:[#allocation2 + $0x169] sm:$0xff]
        %v2741 = vld [vmem:[#allocation2 + $0x171] sm:$0xff]
        %v2742 = vld [vmem:[#allocation2 + $0x189] sm:$0xff]
        %v2743 = vld [vmem:[#allocation2 + $0x191] sm:$0xff]
        %v2744 = vld [vmem:[#allocation2 + $0x1a9] sm:$0xff]
        %v2745 = vld [vmem:[#allocation2 + $0x1b1] sm:$0xff]
        %v2746 = vld [vmem:[#allocation2 + $0x1c9] sm:$0xff]
        %v2747 = vld [vmem:[#allocation2 + $0x1d1] sm:$0xff]
        %v2748 = vld [vmem:[#allocation2 + $0x1e9] sm:$0xff]
        %v2749 = vld [vmem:[#allocation2 + $0x1f1] sm:$0xff]
        %v2750 = vpack.c.bf16 %v2655, %v2654
        %v2751 = vpack.c.bf16 %v2687, %v2686
        %v2752 = vpack.c.bf16 %v2719, %v2718
        %v2753 = vpack.c.bf16 %v2657, %v2656
        %v2754 = vpack.c.bf16 %v2689, %v2688
        %v2755 = vpack.c.bf16 %v2721, %v2720
        %v2756 = vpack.c.bf16 %v2659, %v2658
        %v2757 = vpack.c.bf16 %v2691, %v2690
        %v2758 = vpack.c.bf16 %v2723, %v2722
        %v2759 = vpack.c.bf16 %v2661, %v2660
        %v2760 = vpack.c.bf16 %v2693, %v2692
        %v2761 = vpack.c.bf16 %v2725, %v2724
        %v2762 = vpack.c.bf16 %v2663, %v2662
        %v2763 = vpack.c.bf16 %v2695, %v2694
        %v2764 = vpack.c.bf16 %v2727, %v2726
        %v2765 = vpack.c.bf16 %v2665, %v2664
        %v2766 = vpack.c.bf16 %v2697, %v2696
        %v2767 = vpack.c.bf16 %v2729, %v2728
        %v2768 = vpack.c.bf16 %v2667, %v2666
        %v2769 = vpack.c.bf16 %v2699, %v2698
        %v2770 = vpack.c.bf16 %v2731, %v2730
        %v2771 = vpack.c.bf16 %v2669, %v2668
        %v2772 = vpack.c.bf16 %v2701, %v2700
        %v2773 = vpack.c.bf16 %v2733, %v2732
        %v2774 = vpack.c.bf16 %v2671, %v2670
        %v2775 = vpack.c.bf16 %v2703, %v2702
        %v2776 = vpack.c.bf16 %v2735, %v2734
        %v2777 = vpack.c.bf16 %v2673, %v2672
        %v2778 = vpack.c.bf16 %v2705, %v2704
        %v2779 = vpack.c.bf16 %v2737, %v2736
        %v2780 = vpack.c.bf16 %v2675, %v2674
        %v2781 = vpack.c.bf16 %v2707, %v2706
        %v2782 = vpack.c.bf16 %v2739, %v2738
        %v2783 = vpack.c.bf16 %v2677, %v2676
        %v2784 = vpack.c.bf16 %v2709, %v2708
        %v2785 = vpack.c.bf16 %v2741, %v2740
        %v2786 = vpack.c.bf16 %v2679, %v2678
        %v2787 = vpack.c.bf16 %v2711, %v2710
        %v2788 = vpack.c.bf16 %v2743, %v2742
        %v2789 = vpack.c.bf16 %v2681, %v2680
        %v2790 = vpack.c.bf16 %v2713, %v2712
        %v2791 = vpack.c.bf16 %v2745, %v2744
        %v2792 = vpack.c.bf16 %v2683, %v2682
        %v2793 = vpack.c.bf16 %v2715, %v2714
        %v2794 = vpack.c.bf16 %v2747, %v2746
        %v2795 = vpack.c.bf16 %v2685, %v2684
        %v2796 = vpack.c.bf16 %v2717, %v2716
        %v2797 = vpack.c.bf16 %v2749, %v2748
        %v2798 = vld [vmem:[%s3] sm:$0xf]
        %v2799 = vld [vmem:[%s3 + $0x4] sm:$0xf]
        %v2800 = vld [vmem:[%s3 + $0x8] sm:$0xf]
        %v2801 = vld [vmem:[%s3 + $0xc] sm:$0xf]
        %v2802 = vld [vmem:[%s3 + $0x10] sm:$0xf]
        %v2803 = vld [vmem:[%s3 + $0x14] sm:$0xf]
        %v2804 = vld [vmem:[%s3 + $0x18] sm:$0xf]
        %v2805 = vld [vmem:[%s3 + $0x1c] sm:$0xf]
        %v2806 = vld [vmem:[%s3 + $0x20] sm:$0xf]
        %v2807 = vld [vmem:[%s3 + $0x24] sm:$0xf]
        %v2808 = vld [vmem:[%s3 + $0x28] sm:$0xf]
        %v2809 = vld [vmem:[%s3 + $0x2c] sm:$0xf]
        %v2810 = vld [vmem:[%s3 + $0x30] sm:$0xf]
        %v2811 = vld [vmem:[%s3 + $0x34] sm:$0xf]
        %v2812 = vld [vmem:[%s3 + $0x38] sm:$0xf]
        %v2813 = vld [vmem:[%s3 + $0x3c] sm:$0xf]
        %v2814 = vld [vmem:[%s3 + $0x40] sm:$0xf]
        %v2815 = vld [vmem:[%s3 + $0x44] sm:$0xf]
        %v2816 = vld [vmem:[%s3 + $0x48] sm:$0xf]
        %v2817 = vld [vmem:[%s3 + $0x4c] sm:$0xf]
        %v2818 = vld [vmem:[%s3 + $0x50] sm:$0xf]
        %v2819 = vld [vmem:[%s3 + $0x54] sm:$0xf]
        %v2820 = vld [vmem:[%s3 + $0x58] sm:$0xf]
        %v2821 = vld [vmem:[%s3 + $0x5c] sm:$0xf]
        %v2822 = vld [vmem:[%s3 + $0x60] sm:$0xf]
        %v2823 = vld [vmem:[%s3 + $0x64] sm:$0xf]
        %v2824 = vld [vmem:[%s3 + $0x68] sm:$0xf]
        %v2825 = vld [vmem:[%s3 + $0x6c] sm:$0xf]
        %v2826 = vld [vmem:[%s3 + $0x70] sm:$0xf]
        %v2827 = vld [vmem:[%s3 + $0x74] sm:$0xf]
        %v2828 = vld [vmem:[%s3 + $0x78] sm:$0xf]
        %v2829 = vld [vmem:[%s3 + $0x7c] sm:$0xf]
        %v2830 = vld [vmem:[%s3 + $0x80] sm:$0xf]
        %v2831 = vld [vmem:[%s3 + $0x84] sm:$0xf]
        %v2832 = vld [vmem:[%s3 + $0x88] sm:$0xf]
        %v2833 = vld [vmem:[%s3 + $0x8c] sm:$0xf]
        %v2834 = vld [vmem:[%s3 + $0x90] sm:$0xf]
        %v2835 = vld [vmem:[%s3 + $0x94] sm:$0xf]
        %v2836 = vld [vmem:[%s3 + $0x98] sm:$0xf]
        %v2837 = vld [vmem:[%s3 + $0x9c] sm:$0xf]
        %v2838 = vld [vmem:[%s3 + $0xa0] sm:$0xf]
        %v2839 = vld [vmem:[%s3 + $0xa4] sm:$0xf]
        %v2840 = vld [vmem:[%s3 + $0xa8] sm:$0xf]
        %v2841 = vld [vmem:[%s3 + $0xac] sm:$0xf]
        %v2842 = vld [vmem:[%s3 + $0xb0] sm:$0xf]
        %v2843 = vld [vmem:[%s3 + $0xb4] sm:$0xf]
        %v2844 = vld [vmem:[%s3 + $0xb8] sm:$0xf]
        %v2845 = vld [vmem:[%s3 + $0xbc] sm:$0xf]
        %v2846 = vld [vmem:[%s328 + $0x7] sm:$0xff]
        %v2847 = vld [vmem:[%s328 + $0xf] sm:$0xff]
        %v2848 = vld [vmem:[%s328 + $0x27] sm:$0xff]
        %v2849 = vld [vmem:[%s328 + $0x2f] sm:$0xff]
        %v2850 = vld [vmem:[%s328 + $0x47] sm:$0xff]
        %v2851 = vld [vmem:[%s328 + $0x4f] sm:$0xff]
        %v2852 = vld [vmem:[%s328 + $0x67] sm:$0xff]
        %v2853 = vld [vmem:[%s328 + $0x6f] sm:$0xff]
        %v2854 = vld [vmem:[%s328 + $0x87] sm:$0xff]
        %v2855 = vld [vmem:[%s328 + $0x8f] sm:$0xff]
        %v2856 = vld [vmem:[%s328 + $0xa7] sm:$0xff]
        %v2857 = vld [vmem:[%s328 + $0xaf] sm:$0xff]
        %v2858 = vld [vmem:[%s328 + $0xc7] sm:$0xff]
        %v2859 = vld [vmem:[%s328 + $0xcf] sm:$0xff]
        %v2860 = vld [vmem:[%s328 + $0xe7] sm:$0xff]
        %v2861 = vld [vmem:[%s328 + $0xef] sm:$0xff]
        %v2862 = vld [vmem:[%s328 + $0x107] sm:$0xff]
        %v2863 = vld [vmem:[%s328 + $0x10f] sm:$0xff]
        %v2864 = vld [vmem:[%s328 + $0x127] sm:$0xff]
        %v2865 = vld [vmem:[%s328 + $0x12f] sm:$0xff]
        %v2866 = vld [vmem:[%s328 + $0x147] sm:$0xff]
        %v2867 = vld [vmem:[%s328 + $0x14f] sm:$0xff]
        %v2868 = vld [vmem:[%s328 + $0x167] sm:$0xff]
        %v2869 = vld [vmem:[%s328 + $0x16f] sm:$0xff]
        %v2870 = vld [vmem:[%s328 + $0x187] sm:$0xff]
        %v2871 = vld [vmem:[%s328 + $0x18f] sm:$0xff]
        %v2872 = vld [vmem:[%s328 + $0x1a7] sm:$0xff]
        %v2873 = vld [vmem:[%s328 + $0x1af] sm:$0xff]
        %v2874 = vld [vmem:[%s328 + $0x1c7] sm:$0xff]
        %v2875 = vld [vmem:[%s328 + $0x1cf] sm:$0xff]
        %v2876 = vld [vmem:[%s328 + $0x1e7] sm:$0xff]
        %v2877 = vld [vmem:[%s328 + $0x1ef] sm:$0xff]
        %v2878 = vld [vmem:[%s328 + $0x8] sm:$0xff]
        %v2879 = vld [vmem:[%s328 + $0x10] sm:$0xff]
        %v2880 = vld [vmem:[%s328 + $0x28] sm:$0xff]
        %v2881 = vld [vmem:[%s328 + $0x30] sm:$0xff]
        %v2882 = vld [vmem:[%s328 + $0x48] sm:$0xff]
        %v2883 = vld [vmem:[%s328 + $0x50] sm:$0xff]
        %v2884 = vld [vmem:[%s328 + $0x68] sm:$0xff]
        %v2885 = vld [vmem:[%s328 + $0x70] sm:$0xff]
        %v2886 = vld [vmem:[%s328 + $0x88] sm:$0xff]
        %v2887 = vld [vmem:[%s328 + $0x90] sm:$0xff]
        %v2888 = vld [vmem:[%s328 + $0xa8] sm:$0xff]
        %v2889 = vld [vmem:[%s328 + $0xb0] sm:$0xff]
        %v2890 = vld [vmem:[%s328 + $0xc8] sm:$0xff]
        %v2891 = vld [vmem:[%s328 + $0xd0] sm:$0xff]
        %v2892 = vld [vmem:[%s328 + $0xe8] sm:$0xff]
        %v2893 = vld [vmem:[%s328 + $0xf0] sm:$0xff]
        %v2894 = vld [vmem:[%s328 + $0x108] sm:$0xff]
        %v2895 = vld [vmem:[%s328 + $0x110] sm:$0xff]
        %v2896 = vld [vmem:[%s328 + $0x128] sm:$0xff]
        %v2897 = vld [vmem:[%s328 + $0x130] sm:$0xff]
        %v2898 = vld [vmem:[%s328 + $0x148] sm:$0xff]
        %v2899 = vld [vmem:[%s328 + $0x150] sm:$0xff]
        %v2900 = vld [vmem:[%s328 + $0x168] sm:$0xff]
        %v2901 = vld [vmem:[%s328 + $0x170] sm:$0xff]
        %v2902 = vld [vmem:[%s328 + $0x188] sm:$0xff]
        %v2903 = vld [vmem:[%s328 + $0x190] sm:$0xff]
        %v2904 = vld [vmem:[%s328 + $0x1a8] sm:$0xff]
        %v2905 = vld [vmem:[%s328 + $0x1b0] sm:$0xff]
        %v2906 = vld [vmem:[%s328 + $0x1c8] sm:$0xff]
        %v2907 = vld [vmem:[%s328 + $0x1d0] sm:$0xff]
        %v2908 = vld [vmem:[%s328 + $0x1e8] sm:$0xff]
        %v2909 = vld [vmem:[%s328 + $0x1f0] sm:$0xff]
        %v2910 = vld [vmem:[%s328 + $0x9] sm:$0xff]
        %v2911 = vld [vmem:[%s328 + $0x11] sm:$0xff]
        %v2912 = vld [vmem:[%s328 + $0x29] sm:$0xff]
        %v2913 = vld [vmem:[%s328 + $0x31] sm:$0xff]
        %v2914 = vld [vmem:[%s328 + $0x49] sm:$0xff]
        %v2915 = vld [vmem:[%s328 + $0x51] sm:$0xff]
        %v2916 = vld [vmem:[%s328 + $0x69] sm:$0xff]
        %v2917 = vld [vmem:[%s328 + $0x71] sm:$0xff]
        %v2918 = vld [vmem:[%s328 + $0x89] sm:$0xff]
        %v2919 = vld [vmem:[%s328 + $0x91] sm:$0xff]
        %v2920 = vld [vmem:[%s328 + $0xa9] sm:$0xff]
        %v2921 = vld [vmem:[%s328 + $0xb1] sm:$0xff]
        %v2922 = vld [vmem:[%s328 + $0xc9] sm:$0xff]
        %v2923 = vld [vmem:[%s328 + $0xd1] sm:$0xff]
        %v2924 = vld [vmem:[%s328 + $0xe9] sm:$0xff]
        %v2925 = vld [vmem:[%s328 + $0xf1] sm:$0xff]
        %v2926 = vld [vmem:[%s328 + $0x109] sm:$0xff]
        %v2927 = vld [vmem:[%s328 + $0x111] sm:$0xff]
        %v2928 = vld [vmem:[%s328 + $0x129] sm:$0xff]
        %v2929 = vld [vmem:[%s328 + $0x131] sm:$0xff]
        %v2930 = vld [vmem:[%s328 + $0x149] sm:$0xff]
        %v2931 = vld [vmem:[%s328 + $0x151] sm:$0xff]
        %v2932 = vld [vmem:[%s328 + $0x169] sm:$0xff]
        %v2933 = vld [vmem:[%s328 + $0x171] sm:$0xff]
        %v2934 = vld [vmem:[%s328 + $0x189] sm:$0xff]
        %v2935 = vld [vmem:[%s328 + $0x191] sm:$0xff]
        %v2936 = vld [vmem:[%s328 + $0x1a9] sm:$0xff]
        %v2937 = vld [vmem:[%s328 + $0x1b1] sm:$0xff]
        %v2938 = vld [vmem:[%s328 + $0x1c9] sm:$0xff]
        %v2939 = vld [vmem:[%s328 + $0x1d1] sm:$0xff]
        %v2940 = vld [vmem:[%s328 + $0x1e9] sm:$0xff]
        %v2941 = vld [vmem:[%s328 + $0x1f1] sm:$0xff]
        %v2942 = vpack.c.bf16 %v2847, %v2846
        %v2943 = vpack.c.bf16 %v2879, %v2878
        %v2944 = vpack.c.bf16 %v2911, %v2910
        %v2945 = vpack.c.bf16 %v2849, %v2848
        %v2946 = vpack.c.bf16 %v2881, %v2880
        %v2947 = vpack.c.bf16 %v2913, %v2912
        %v2948 = vpack.c.bf16 %v2851, %v2850
        %v2949 = vpack.c.bf16 %v2883, %v2882
        %v2950 = vpack.c.bf16 %v2915, %v2914
        %v2951 = vpack.c.bf16 %v2853, %v2852
        %v2952 = vpack.c.bf16 %v2885, %v2884
        %v2953 = vpack.c.bf16 %v2917, %v2916
        %v2954 = vpack.c.bf16 %v2855, %v2854
        %v2955 = vpack.c.bf16 %v2887, %v2886
        %v2956 = vpack.c.bf16 %v2919, %v2918
        %v2957 = vpack.c.bf16 %v2857, %v2856
        %v2958 = vpack.c.bf16 %v2889, %v2888
        %v2959 = vpack.c.bf16 %v2921, %v2920
        %v2960 = vpack.c.bf16 %v2859, %v2858
        %v2961 = vpack.c.bf16 %v2891, %v2890
        %v2962 = vpack.c.bf16 %v2923, %v2922
        %v2963 = vpack.c.bf16 %v2861, %v2860
        %v2964 = vpack.c.bf16 %v2893, %v2892
        %v2965 = vpack.c.bf16 %v2925, %v2924
        %v2966 = vpack.c.bf16 %v2863, %v2862
        %v2967 = vpack.c.bf16 %v2895, %v2894
        %v2968 = vpack.c.bf16 %v2927, %v2926
        %v2969 = vpack.c.bf16 %v2865, %v2864
        %v2970 = vpack.c.bf16 %v2897, %v2896
        %v2971 = vpack.c.bf16 %v2929, %v2928
        %v2972 = vpack.c.bf16 %v2867, %v2866
        %v2973 = vpack.c.bf16 %v2899, %v2898
        %v2974 = vpack.c.bf16 %v2931, %v2930
        %v2975 = vpack.c.bf16 %v2869, %v2868
        %v2976 = vpack.c.bf16 %v2901, %v2900
        %v2977 = vpack.c.bf16 %v2933, %v2932
        %v2978 = vpack.c.bf16 %v2871, %v2870
        %v2979 = vpack.c.bf16 %v2903, %v2902
        %v2980 = vpack.c.bf16 %v2935, %v2934
        %v2981 = vpack.c.bf16 %v2873, %v2872
        %v2982 = vpack.c.bf16 %v2905, %v2904
        %v2983 = vpack.c.bf16 %v2937, %v2936
        %v2984 = vpack.c.bf16 %v2875, %v2874
        %v2985 = vpack.c.bf16 %v2907, %v2906
        %v2986 = vpack.c.bf16 %v2939, %v2938
        %v2987 = vpack.c.bf16 %v2877, %v2876
        %v2988 = vpack.c.bf16 %v2909, %v2908
        %v2989 = vpack.c.bf16 %v2941, %v2940
        %s2990 = scalar_lea.vmem %s3, 192
        %v2991 = vld [vmem:[%s2990] sm:$0xf]
        %v2992 = vld [vmem:[%s2990 + $0x4] sm:$0xf]
        %v2993 = vld [vmem:[%s2990 + $0x8] sm:$0xf]
        %v2994 = vld [vmem:[%s2990 + $0xc] sm:$0xf]
        %v2995 = vld [vmem:[%s2990 + $0x10] sm:$0xf]
        %v2996 = vld [vmem:[%s2990 + $0x14] sm:$0xf]
        %v2997 = vld [vmem:[%s2990 + $0x18] sm:$0xf]
        %v2998 = vld [vmem:[%s2990 + $0x1c] sm:$0xf]
        %v2999 = vld [vmem:[%s2990 + $0x20] sm:$0xf]
        %v3000 = vld [vmem:[%s2990 + $0x24] sm:$0xf]
        %v3001 = vld [vmem:[%s2990 + $0x28] sm:$0xf]
        %v3002 = vld [vmem:[%s2990 + $0x2c] sm:$0xf]
        %v3003 = vld [vmem:[%s2990 + $0x30] sm:$0xf]
        %v3004 = vld [vmem:[%s2990 + $0x34] sm:$0xf]
        %v3005 = vld [vmem:[%s2990 + $0x38] sm:$0xf]
        %v3006 = vld [vmem:[%s2990 + $0x3c] sm:$0xf]
        %v3007 = vld [vmem:[%s2990 + $0x40] sm:$0xf]
        %v3008 = vld [vmem:[%s2990 + $0x44] sm:$0xf]
        %v3009 = vld [vmem:[%s2990 + $0x48] sm:$0xf]
        %v3010 = vld [vmem:[%s2990 + $0x4c] sm:$0xf]
        %v3011 = vld [vmem:[%s2990 + $0x50] sm:$0xf]
        %v3012 = vld [vmem:[%s2990 + $0x54] sm:$0xf]
        %v3013 = vld [vmem:[%s2990 + $0x58] sm:$0xf]
        %v3014 = vld [vmem:[%s2990 + $0x5c] sm:$0xf]
        %v3015 = vld [vmem:[%s2990 + $0x60] sm:$0xf]
        %v3016 = vld [vmem:[%s2990 + $0x64] sm:$0xf]
        %v3017 = vld [vmem:[%s2990 + $0x68] sm:$0xf]
        %v3018 = vld [vmem:[%s2990 + $0x6c] sm:$0xf]
        %v3019 = vld [vmem:[%s2990 + $0x70] sm:$0xf]
        %v3020 = vld [vmem:[%s2990 + $0x74] sm:$0xf]
        %v3021 = vld [vmem:[%s2990 + $0x78] sm:$0xf]
        %v3022 = vld [vmem:[%s2990 + $0x7c] sm:$0xf]
        %v3023 = vld [vmem:[%s2990 + $0x80] sm:$0xf]
        %v3024 = vld [vmem:[%s2990 + $0x84] sm:$0xf]
        %v3025 = vld [vmem:[%s2990 + $0x88] sm:$0xf]
        %v3026 = vld [vmem:[%s2990 + $0x8c] sm:$0xf]
        %v3027 = vld [vmem:[%s2990 + $0x90] sm:$0xf]
        %v3028 = vld [vmem:[%s2990 + $0x94] sm:$0xf]
        %v3029 = vld [vmem:[%s2990 + $0x98] sm:$0xf]
        %v3030 = vld [vmem:[%s2990 + $0x9c] sm:$0xf]
        %v3031 = vld [vmem:[%s2990 + $0xa0] sm:$0xf]
        %v3032 = vld [vmem:[%s2990 + $0xa4] sm:$0xf]
        %v3033 = vld [vmem:[%s2990 + $0xa8] sm:$0xf]
        %v3034 = vld [vmem:[%s2990 + $0xac] sm:$0xf]
        %v3035 = vld [vmem:[%s2990 + $0xb0] sm:$0xf]
        %v3036 = vld [vmem:[%s2990 + $0xb4] sm:$0xf]
        %v3037 = vld [vmem:[%s2990 + $0xb8] sm:$0xf]
        %v3038 = vld [vmem:[%s2990 + $0xbc] sm:$0xf]
        %v3087 = vunpack.c.l.b16 %v2991
        %v3088 = vunpack.c.l.b16 %v2992
        %v3089 = vunpack.c.l.b16 %v2993
        %v3090 = vunpack.c.l.b16 %v2994
        %v3091 = vunpack.c.l.b16 %v2995
        %v3092 = vunpack.c.l.b16 %v2996
        %v3093 = vunpack.c.l.b16 %v2997
        %v3094 = vunpack.c.l.b16 %v2998
        %v3095 = vunpack.c.l.b16 %v2999
        %v3096 = vunpack.c.l.b16 %v3000
        %v3097 = vunpack.c.l.b16 %v3001
        %v3098 = vunpack.c.l.b16 %v3002
        %v3099 = vunpack.c.l.b16 %v3003
        %v3100 = vunpack.c.l.b16 %v3004
        %v3101 = vunpack.c.l.b16 %v3005
        %v3102 = vunpack.c.l.b16 %v3006
        %v3103 = vunpack.c.l.b16 %v3007
        %v3104 = vunpack.c.l.b16 %v3008
        %v3105 = vunpack.c.l.b16 %v3009
        %v3106 = vunpack.c.l.b16 %v3010
        %v3107 = vunpack.c.l.b16 %v3011
        %v3108 = vunpack.c.l.b16 %v3012
        %v3109 = vunpack.c.l.b16 %v3013
        %v3110 = vunpack.c.l.b16 %v3014
        %v3111 = vunpack.c.l.b16 %v3015
        %v3112 = vunpack.c.l.b16 %v3016
        %v3113 = vunpack.c.l.b16 %v3017
        %v3114 = vunpack.c.l.b16 %v3018
        %v3115 = vunpack.c.l.b16 %v3019
        %v3116 = vunpack.c.l.b16 %v3020
        %v3117 = vunpack.c.l.b16 %v3021
        %v3118 = vunpack.c.l.b16 %v3022
        %v3119 = vunpack.c.l.b16 %v3023
        %v3120 = vunpack.c.l.b16 %v3024
        %v3121 = vunpack.c.l.b16 %v3025
        %v3122 = vunpack.c.l.b16 %v3026
        %v3123 = vunpack.c.l.b16 %v3027
        %v3124 = vunpack.c.l.b16 %v3028
        %v3125 = vunpack.c.l.b16 %v3029
        %v3126 = vunpack.c.l.b16 %v3030
        %v3127 = vunpack.c.l.b16 %v3031
        %v3128 = vunpack.c.l.b16 %v3032
        %v3129 = vunpack.c.l.b16 %v3033
        %v3130 = vunpack.c.l.b16 %v3034
        %v3131 = vunpack.c.l.b16 %v3035
        %v3132 = vunpack.c.l.b16 %v3036
        %v3133 = vunpack.c.l.b16 %v3037
        %v3134 = vunpack.c.l.b16 %v3038
        %v3135 = vpack.c.b16 %v3088, %v3087
        %v3136 = vpack.c.b16 %v3090, %v3089
        %v3137 = vpack.c.b16 %v3092, %v3091
        %v3138 = vpack.c.b16 %v3094, %v3093
        %v3139 = vpack.c.b16 %v3096, %v3095
        %v3140 = vpack.c.b16 %v3098, %v3097
        %v3141 = vpack.c.b16 %v3100, %v3099
        %v3142 = vpack.c.b16 %v3102, %v3101
        %v3143 = vpack.c.b16 %v3104, %v3103
        %v3144 = vpack.c.b16 %v3106, %v3105
        %v3145 = vpack.c.b16 %v3108, %v3107
        %v3146 = vpack.c.b16 %v3110, %v3109
        %v3147 = vpack.c.b16 %v3112, %v3111
        %v3148 = vpack.c.b16 %v3114, %v3113
        %v3149 = vpack.c.b16 %v3116, %v3115
        %v3150 = vpack.c.b16 %v3118, %v3117
        %v3151 = vpack.c.b16 %v3120, %v3119
        %v3152 = vpack.c.b16 %v3122, %v3121
        %v3153 = vpack.c.b16 %v3124, %v3123
        %v3154 = vpack.c.b16 %v3126, %v3125
        %v3155 = vpack.c.b16 %v3128, %v3127
        %v3156 = vpack.c.b16 %v3130, %v3129
        %v3157 = vpack.c.b16 %v3132, %v3131
        %v3158 = vpack.c.b16 %v3134, %v3133
        %3183 = vmatprep.subr.bf16.mxu0 0
        %3184 = vmatpush1.bf16.msra.mxu0 %v3142
        %3185 = vmatprep.subr.bf16.mxu0 0
        %3186 = vmatpush1.bf16.msra.mxu0 %v3141
        %3187 = vmatprep.subr.bf16.mxu0 0
        %3188 = vmatpush1.bf16.msra.mxu0 %v3140
        %3189 = vmatprep.subr.bf16.mxu0 0
        %3190 = vmatpush1.bf16.msra.mxu0 %v3139
        %3191 = vmatprep.subr.bf16.mxu0 0
        %3192 = vmatpush1.bf16.msra.mxu0 %v3138
        %3193 = vmatprep.subr.bf16.mxu0 0
        %3194 = vmatpush1.bf16.msra.mxu0 %v3137
        %3195 = vmatprep.subr.bf16.mxu0 0
        %3196 = vmatpush1.bf16.msra.mxu0 %v3136
        %3197 = vmatprep.subr.bf16.mxu0 0
        %3198 = vmatpush1.bf16.msra.mxu0 %v3135
        %3199 = vmatprep.subr.bf16.mxu0 0
        %3200 = vmatpush2.bf16.msra.mxu0 %v3150
        %3201 = vmatprep.subr.bf16.mxu0 0
        %3202 = vmatpush2.bf16.msra.mxu0 %v3149
        %3203 = vmatprep.subr.bf16.mxu0 0
        %3204 = vmatpush2.bf16.msra.mxu0 %v3148
        %3205 = vmatprep.subr.bf16.mxu0 0
        %3206 = vmatpush2.bf16.msra.mxu0 %v3147
        %3207 = vmatprep.subr.bf16.mxu0 0
        %3208 = vmatpush2.bf16.msra.mxu0 %v3146
        %3209 = vmatprep.subr.bf16.mxu0 0
        %3210 = vmatpush2.bf16.msra.mxu0 %v3145
        %3211 = vmatprep.subr.bf16.mxu0 0
        %3212 = vmatpush2.bf16.msra.mxu0 %v3144
        %3213 = vmatprep.subr.bf16.mxu0 0
        %3214 = vmatpush2.bf16.msra.mxu0 %v3143
        %3215 = vmatprep.mubr.bf16.mxu0 %v2943
        %3216 = vmatmul.mubr.bf16.gmra.mxu0 %v2942
        %v3217 = vpop.f32.mrf.mxu0
        %v3218 = vadd.f32 0.0, %v3217
        %v3219 = vpop.f32.mrf.mxu0
        %v3220 = vpop.f32.mrf.mxu0
        %v3221 = vadd.f32 0.0, %v3220
        %v3222 = vpop.f32.mrf.mxu0
        %3223 = vmatprep.mubr.bf16.mxu0 %v2946
        %3224 = vmatmul.mubr.bf16.gmra.mxu0 %v2945
        %v3225 = vpop.f32.mrf.mxu0
        %v3226 = vadd.f32 0.0, %v3225
        %v3227 = vpop.f32.mrf.mxu0
        %v3228 = vpop.f32.mrf.mxu0
        %v3229 = vadd.f32 0.0, %v3228
        %v3230 = vpop.f32.mrf.mxu0
        %3231 = vmatprep.mubr.bf16.mxu0 %v2949
        %3232 = vmatmul.mubr.bf16.gmra.mxu0 %v2948
        %v3233 = vpop.f32.mrf.mxu0
        %v3234 = vadd.f32 0.0, %v3233
        %v3235 = vpop.f32.mrf.mxu0
        %v3236 = vpop.f32.mrf.mxu0
        %v3237 = vadd.f32 0.0, %v3236
        %v3238 = vpop.f32.mrf.mxu0
        %3239 = vmatprep.mubr.bf16.mxu0 %v2952
        %3240 = vmatmul.mubr.bf16.gmra.mxu0 %v2951
        %v3241 = vpop.f32.mrf.mxu0
        %v3242 = vadd.f32 0.0, %v3241
        %v3243 = vpop.f32.mrf.mxu0
        %v3244 = vpop.f32.mrf.mxu0
        %v3245 = vadd.f32 0.0, %v3244
        %v3246 = vpop.f32.mrf.mxu0
        %3247 = vmatprep.mubr.bf16.mxu0 %v2955
        %3248 = vmatmul.mubr.bf16.gmra.mxu0 %v2954
        %v3249 = vpop.f32.mrf.mxu0
        %v3250 = vadd.f32 0.0, %v3249
        %v3251 = vpop.f32.mrf.mxu0
        %v3252 = vpop.f32.mrf.mxu0
        %v3253 = vadd.f32 0.0, %v3252
        %v3254 = vpop.f32.mrf.mxu0
        %3255 = vmatprep.mubr.bf16.mxu0 %v2958
        %3256 = vmatmul.mubr.bf16.gmra.mxu0 %v2957
        %v3257 = vpop.f32.mrf.mxu0
        %v3258 = vadd.f32 0.0, %v3257
        %v3259 = vpop.f32.mrf.mxu0
        %v3260 = vpop.f32.mrf.mxu0
        %v3261 = vadd.f32 0.0, %v3260
        %v3262 = vpop.f32.mrf.mxu0
        %3263 = vmatprep.mubr.bf16.mxu0 %v2961
        %3264 = vmatmul.mubr.bf16.gmra.mxu0 %v2960
        %v3265 = vpop.f32.mrf.mxu0
        %v3266 = vadd.f32 0.0, %v3265
        %v3267 = vpop.f32.mrf.mxu0
        %v3268 = vpop.f32.mrf.mxu0
        %v3269 = vadd.f32 0.0, %v3268
        %v3270 = vpop.f32.mrf.mxu0
        %3271 = vmatprep.mubr.bf16.mxu0 %v2964
        %3272 = vmatmul.mubr.bf16.gmra.mxu0 %v2963
        %v3273 = vpop.f32.mrf.mxu0
        %v3274 = vadd.f32 0.0, %v3273
        %v3275 = vpop.f32.mrf.mxu0
        %v3276 = vpop.f32.mrf.mxu0
        %v3277 = vadd.f32 0.0, %v3276
        %v3278 = vpop.f32.mrf.mxu0
        %3279 = vmatprep.mubr.bf16.mxu0 %v2967
        %3280 = vmatmul.mubr.bf16.gmra.mxu0 %v2966
        %v3281 = vpop.f32.mrf.mxu0
        %v3282 = vadd.f32 0.0, %v3281
        %v3283 = vpop.f32.mrf.mxu0
        %v3284 = vpop.f32.mrf.mxu0
        %v3285 = vadd.f32 0.0, %v3284
        %v3286 = vpop.f32.mrf.mxu0
        %3287 = vmatprep.mubr.bf16.mxu0 %v2970
        %3288 = vmatmul.mubr.bf16.gmra.mxu0 %v2969
        %v3289 = vpop.f32.mrf.mxu0
        %v3290 = vadd.f32 0.0, %v3289
        %v3291 = vpop.f32.mrf.mxu0
        %v3292 = vpop.f32.mrf.mxu0
        %v3293 = vadd.f32 0.0, %v3292
        %v3294 = vpop.f32.mrf.mxu0
        %3295 = vmatprep.mubr.bf16.mxu0 %v2973
        %3296 = vmatmul.mubr.bf16.gmra.mxu0 %v2972
        %v3297 = vpop.f32.mrf.mxu0
        %v3298 = vadd.f32 0.0, %v3297
        %v3299 = vpop.f32.mrf.mxu0
        %v3300 = vpop.f32.mrf.mxu0
        %v3301 = vadd.f32 0.0, %v3300
        %v3302 = vpop.f32.mrf.mxu0
        %3303 = vmatprep.mubr.bf16.mxu0 %v2976
        %3304 = vmatmul.mubr.bf16.gmra.mxu0 %v2975
        %v3305 = vpop.f32.mrf.mxu0
        %v3306 = vadd.f32 0.0, %v3305
        %v3307 = vpop.f32.mrf.mxu0
        %v3308 = vpop.f32.mrf.mxu0
        %v3309 = vadd.f32 0.0, %v3308
        %v3310 = vpop.f32.mrf.mxu0
        %3311 = vmatprep.mubr.bf16.mxu0 %v2979
        %3312 = vmatmul.mubr.bf16.gmra.mxu0 %v2978
        %v3313 = vpop.f32.mrf.mxu0
        %v3314 = vadd.f32 0.0, %v3313
        %v3315 = vpop.f32.mrf.mxu0
        %v3316 = vpop.f32.mrf.mxu0
        %v3317 = vadd.f32 0.0, %v3316
        %v3318 = vpop.f32.mrf.mxu0
        %3319 = vmatprep.mubr.bf16.mxu0 %v2982
        %3320 = vmatmul.mubr.bf16.gmra.mxu0 %v2981
        %v3321 = vpop.f32.mrf.mxu0
        %v3322 = vadd.f32 0.0, %v3321
        %v3323 = vpop.f32.mrf.mxu0
        %v3324 = vpop.f32.mrf.mxu0
        %v3325 = vadd.f32 0.0, %v3324
        %v3326 = vpop.f32.mrf.mxu0
        %3327 = vmatprep.mubr.bf16.mxu0 %v2985
        %3328 = vmatmul.mubr.bf16.gmra.mxu0 %v2984
        %v3329 = vpop.f32.mrf.mxu0
        %v3330 = vadd.f32 0.0, %v3329
        %v3331 = vpop.f32.mrf.mxu0
        %v3332 = vpop.f32.mrf.mxu0
        %v3333 = vadd.f32 0.0, %v3332
        %v3334 = vpop.f32.mrf.mxu0
        %3335 = vmatprep.mubr.bf16.mxu0 %v2988
        %3336 = vmatmul.mubr.bf16.gmra.mxu0 %v2987
        %v3337 = vpop.f32.mrf.mxu0
        %v3338 = vadd.f32 0.0, %v3337
        %v3339 = vpop.f32.mrf.mxu0
        %v3340 = vpop.f32.mrf.mxu0
        %v3341 = vadd.f32 0.0, %v3340
        %v3342 = vpop.f32.mrf.mxu0
        %3343 = vdwg.mxu0
        %3344 = vmatprep.subr.bf16.mxu0 0
        %3345 = vmatpush1.bf16.msra.mxu0 %v3158
        %3346 = vmatprep.subr.bf16.mxu0 0
        %3347 = vmatpush1.bf16.msra.mxu0 %v3157
        %3348 = vmatprep.subr.bf16.mxu0 0
        %3349 = vmatpush1.bf16.msra.mxu0 %v3156
        %3350 = vmatprep.subr.bf16.mxu0 0
        %3351 = vmatpush1.bf16.msra.mxu0 %v3155
        %3352 = vmatprep.subr.bf16.mxu0 0
        %3353 = vmatpush1.bf16.msra.mxu0 %v3154
        %3354 = vmatprep.subr.bf16.mxu0 0
        %3355 = vmatpush1.bf16.msra.mxu0 %v3153
        %3356 = vmatprep.subr.bf16.mxu0 0
        %3357 = vmatpush1.bf16.msra.mxu0 %v3152
        %3358 = vmatprep.subr.bf16.mxu0 0
        %3359 = vmatpush1.bf16.msra.mxu0 %v3151
        %3360 = vmatprep.subr.bf16.mxu0 0
        %3361 = vmatpush2.bf16.msra.mxu0 0
        %3362 = vmatprep.subr.bf16.mxu0 0
        %3363 = vmatpush2.bf16.msra.mxu0 0
        %3364 = vmatprep.subr.bf16.mxu0 0
        %3365 = vmatpush2.bf16.msra.mxu0 0
        %3366 = vmatprep.subr.bf16.mxu0 0
        %3367 = vmatpush2.bf16.msra.mxu0 0
        %3368 = vmatprep.subr.bf16.mxu0 0
        %3369 = vmatpush2.bf16.msra.mxu0 0
        %3370 = vmatprep.subr.bf16.mxu0 0
        %3371 = vmatpush2.bf16.msra.mxu0 0
        %3372 = vmatprep.subr.bf16.mxu0 0
        %3373 = vmatpush2.bf16.msra.mxu0 0
        %3374 = vmatprep.subr.bf16.mxu0 0
        %3375 = vmatpush2.bf16.msra.mxu0 0
        %3376 = vmatprep.mubr.bf16.mxu0 0
        %3377 = vmatmul.mubr.bf16.gmra.mxu0 %v2944
        %v3378 = vpop.f32.mrf.mxu0
        %v3379 = vadd.f32 %v3218, %v3378
        %v3380 = vpop.f32.mrf.mxu0
        %v3381 = vpop.f32.mrf.mxu0
        %v3382 = vadd.f32 %v3221, %v3381
        %v3383 = vpop.f32.mrf.mxu0
        %3384 = vmatprep.mubr.bf16.mxu0 0
        %3385 = vmatmul.mubr.bf16.gmra.mxu0 %v2947
        %v3386 = vpop.f32.mrf.mxu0
        %v3387 = vadd.f32 %v3226, %v3386
        %v3388 = vpop.f32.mrf.mxu0
        %v3389 = vpop.f32.mrf.mxu0
        %v3390 = vadd.f32 %v3229, %v3389
        %v3391 = vpop.f32.mrf.mxu0
        %3392 = vmatprep.mubr.bf16.mxu0 0
        %3393 = vmatmul.mubr.bf16.gmra.mxu0 %v2950
        %v3394 = vpop.f32.mrf.mxu0
        %v3395 = vadd.f32 %v3234, %v3394
        %v3396 = vpop.f32.mrf.mxu0
        %v3397 = vpop.f32.mrf.mxu0
        %v3398 = vadd.f32 %v3237, %v3397
        %v3399 = vpop.f32.mrf.mxu0
        %3400 = vmatprep.mubr.bf16.mxu0 0
        %3401 = vmatmul.mubr.bf16.gmra.mxu0 %v2953
        %v3402 = vpop.f32.mrf.mxu0
        %v3403 = vadd.f32 %v3242, %v3402
        %v3404 = vpop.f32.mrf.mxu0
        %v3405 = vpop.f32.mrf.mxu0
        %v3406 = vadd.f32 %v3245, %v3405
        %v3407 = vpop.f32.mrf.mxu0
        %3408 = vmatprep.mubr.bf16.mxu0 0
        %3409 = vmatmul.mubr.bf16.gmra.mxu0 %v2956
        %v3410 = vpop.f32.mrf.mxu0
        %v3411 = vadd.f32 %v3250, %v3410
        %v3412 = vpop.f32.mrf.mxu0
        %v3413 = vpop.f32.mrf.mxu0
        %v3414 = vadd.f32 %v3253, %v3413
        %v3415 = vpop.f32.mrf.mxu0
        %3416 = vmatprep.mubr.bf16.mxu0 0
        %3417 = vmatmul.mubr.bf16.gmra.mxu0 %v2959
        %v3418 = vpop.f32.mrf.mxu0
        %v3419 = vadd.f32 %v3258, %v3418
        %v3420 = vpop.f32.mrf.mxu0
        %v3421 = vpop.f32.mrf.mxu0
        %v3422 = vadd.f32 %v3261, %v3421
        %v3423 = vpop.f32.mrf.mxu0
        %3424 = vmatprep.mubr.bf16.mxu0 0
        %3425 = vmatmul.mubr.bf16.gmra.mxu0 %v2962
        %v3426 = vpop.f32.mrf.mxu0
        %v3427 = vadd.f32 %v3266, %v3426
        %v3428 = vpop.f32.mrf.mxu0
        %v3429 = vpop.f32.mrf.mxu0
        %v3430 = vadd.f32 %v3269, %v3429
        %v3431 = vpop.f32.mrf.mxu0
        %3432 = vmatprep.mubr.bf16.mxu0 0
        %3433 = vmatmul.mubr.bf16.gmra.mxu0 %v2965
        %v3434 = vpop.f32.mrf.mxu0
        %v3435 = vadd.f32 %v3274, %v3434
        %v3436 = vpop.f32.mrf.mxu0
        %v3437 = vpop.f32.mrf.mxu0
        %v3438 = vadd.f32 %v3277, %v3437
        %v3439 = vpop.f32.mrf.mxu0
        %3440 = vmatprep.mubr.bf16.mxu0 0
        %3441 = vmatmul.mubr.bf16.gmra.mxu0 %v2968
        %v3442 = vpop.f32.mrf.mxu0
        %v3443 = vadd.f32 %v3282, %v3442
        %v3444 = vpop.f32.mrf.mxu0
        %v3445 = vpop.f32.mrf.mxu0
        %v3446 = vadd.f32 %v3285, %v3445
        %v3447 = vpop.f32.mrf.mxu0
        %3448 = vmatprep.mubr.bf16.mxu0 0
        %3449 = vmatmul.mubr.bf16.gmra.mxu0 %v2971
        %v3450 = vpop.f32.mrf.mxu0
        %v3451 = vadd.f32 %v3290, %v3450
        %v3452 = vpop.f32.mrf.mxu0
        %v3453 = vpop.f32.mrf.mxu0
        %v3454 = vadd.f32 %v3293, %v3453
        %v3455 = vpop.f32.mrf.mxu0
        %3456 = vmatprep.mubr.bf16.mxu0 0
        %3457 = vmatmul.mubr.bf16.gmra.mxu0 %v2974
        %v3458 = vpop.f32.mrf.mxu0
        %v3459 = vadd.f32 %v3298, %v3458
        %v3460 = vpop.f32.mrf.mxu0
        %v3461 = vpop.f32.mrf.mxu0
        %v3462 = vadd.f32 %v3301, %v3461
        %v3463 = vpop.f32.mrf.mxu0
        %3464 = vmatprep.mubr.bf16.mxu0 0
        %3465 = vmatmul.mubr.bf16.gmra.mxu0 %v2977
        %v3466 = vpop.f32.mrf.mxu0
        %v3467 = vadd.f32 %v3306, %v3466
        %v3468 = vpop.f32.mrf.mxu0
        %v3469 = vpop.f32.mrf.mxu0
        %v3470 = vadd.f32 %v3309, %v3469
        %v3471 = vpop.f32.mrf.mxu0
        %3472 = vmatprep.mubr.bf16.mxu0 0
        %3473 = vmatmul.mubr.bf16.gmra.mxu0 %v2980
        %v3474 = vpop.f32.mrf.mxu0
        %v3475 = vadd.f32 %v3314, %v3474
        %v3476 = vpop.f32.mrf.mxu0
        %v3477 = vpop.f32.mrf.mxu0
        %v3478 = vadd.f32 %v3317, %v3477
        %v3479 = vpop.f32.mrf.mxu0
        %3480 = vmatprep.mubr.bf16.mxu0 0
        %3481 = vmatmul.mubr.bf16.gmra.mxu0 %v2983
        %v3482 = vpop.f32.mrf.mxu0
        %v3483 = vadd.f32 %v3322, %v3482
        %v3484 = vpop.f32.mrf.mxu0
        %v3485 = vpop.f32.mrf.mxu0
        %v3486 = vadd.f32 %v3325, %v3485
        %v3487 = vpop.f32.mrf.mxu0
        %3488 = vmatprep.mubr.bf16.mxu0 0
        %3489 = vmatmul.mubr.bf16.gmra.mxu0 %v2986
        %v3490 = vpop.f32.mrf.mxu0
        %v3491 = vadd.f32 %v3330, %v3490
        %v3492 = vpop.f32.mrf.mxu0
        %v3493 = vpop.f32.mrf.mxu0
        %v3494 = vadd.f32 %v3333, %v3493
        %v3495 = vpop.f32.mrf.mxu0
        %3496 = vmatprep.mubr.bf16.mxu0 0
        %3497 = vmatmul.mubr.bf16.gmra.mxu0 %v2989
        %v3498 = vpop.f32.mrf.mxu0
        %v3499 = vadd.f32 %v3338, %v3498
        %v3500 = vpop.f32.mrf.mxu0
        %v3501 = vpop.f32.mrf.mxu0
        %v3502 = vadd.f32 %v3341, %v3501
        %v3503 = vpop.f32.mrf.mxu0
        %3504 = vdwg.mxu0
        %v3553 = vunpack.c.l.b16 %v2798
        %v3554 = vunpack.c.l.b16 %v2799
        %v3555 = vunpack.c.l.b16 %v2800
        %v3556 = vunpack.c.l.b16 %v2801
        %v3557 = vunpack.c.l.b16 %v2802
        %v3558 = vunpack.c.l.b16 %v2803
        %v3559 = vunpack.c.l.b16 %v2804
        %v3560 = vunpack.c.l.b16 %v2805
        %v3561 = vunpack.c.l.b16 %v2806
        %v3562 = vunpack.c.l.b16 %v2807
        %v3563 = vunpack.c.l.b16 %v2808
        %v3564 = vunpack.c.l.b16 %v2809
        %v3565 = vunpack.c.l.b16 %v2810
        %v3566 = vunpack.c.l.b16 %v2811
        %v3567 = vunpack.c.l.b16 %v2812
        %v3568 = vunpack.c.l.b16 %v2813
        %v3569 = vunpack.c.l.b16 %v2814
        %v3570 = vunpack.c.l.b16 %v2815
        %v3571 = vunpack.c.l.b16 %v2816
        %v3572 = vunpack.c.l.b16 %v2817
        %v3573 = vunpack.c.l.b16 %v2818
        %v3574 = vunpack.c.l.b16 %v2819
        %v3575 = vunpack.c.l.b16 %v2820
        %v3576 = vunpack.c.l.b16 %v2821
        %v3577 = vunpack.c.l.b16 %v2822
        %v3578 = vunpack.c.l.b16 %v2823
        %v3579 = vunpack.c.l.b16 %v2824
        %v3580 = vunpack.c.l.b16 %v2825
        %v3581 = vunpack.c.l.b16 %v2826
        %v3582 = vunpack.c.l.b16 %v2827
        %v3583 = vunpack.c.l.b16 %v2828
        %v3584 = vunpack.c.l.b16 %v2829
        %v3585 = vunpack.c.l.b16 %v2830
        %v3586 = vunpack.c.l.b16 %v2831
        %v3587 = vunpack.c.l.b16 %v2832
        %v3588 = vunpack.c.l.b16 %v2833
        %v3589 = vunpack.c.l.b16 %v2834
        %v3590 = vunpack.c.l.b16 %v2835
        %v3591 = vunpack.c.l.b16 %v2836
        %v3592 = vunpack.c.l.b16 %v2837
        %v3593 = vunpack.c.l.b16 %v2838
        %v3594 = vunpack.c.l.b16 %v2839
        %v3595 = vunpack.c.l.b16 %v2840
        %v3596 = vunpack.c.l.b16 %v2841
        %v3597 = vunpack.c.l.b16 %v2842
        %v3598 = vunpack.c.l.b16 %v2843
        %v3599 = vunpack.c.l.b16 %v2844
        %v3600 = vunpack.c.l.b16 %v2845
        %v3601 = vpack.c.b16 %v3554, %v3553
        %v3602 = vpack.c.b16 %v3556, %v3555
        %v3603 = vpack.c.b16 %v3558, %v3557
        %v3604 = vpack.c.b16 %v3560, %v3559
        %v3605 = vpack.c.b16 %v3562, %v3561
        %v3606 = vpack.c.b16 %v3564, %v3563
        %v3607 = vpack.c.b16 %v3566, %v3565
        %v3608 = vpack.c.b16 %v3568, %v3567
        %v3609 = vpack.c.b16 %v3570, %v3569
        %v3610 = vpack.c.b16 %v3572, %v3571
        %v3611 = vpack.c.b16 %v3574, %v3573
        %v3612 = vpack.c.b16 %v3576, %v3575
        %v3613 = vpack.c.b16 %v3578, %v3577
        %v3614 = vpack.c.b16 %v3580, %v3579
        %v3615 = vpack.c.b16 %v3582, %v3581
        %v3616 = vpack.c.b16 %v3584, %v3583
        %v3617 = vpack.c.b16 %v3586, %v3585
        %v3618 = vpack.c.b16 %v3588, %v3587
        %v3619 = vpack.c.b16 %v3590, %v3589
        %v3620 = vpack.c.b16 %v3592, %v3591
        %v3621 = vpack.c.b16 %v3594, %v3593
        %v3622 = vpack.c.b16 %v3596, %v3595
        %v3623 = vpack.c.b16 %v3598, %v3597
        %v3624 = vpack.c.b16 %v3600, %v3599
        %3649 = vmatprep.subr.bf16.mxu0 0
        %3650 = vmatpush1.bf16.msra.mxu0 %v3608
        %3651 = vmatprep.subr.bf16.mxu0 0
        %3652 = vmatpush1.bf16.msra.mxu0 %v3607
        %3653 = vmatprep.subr.bf16.mxu0 0
        %3654 = vmatpush1.bf16.msra.mxu0 %v3606
        %3655 = vmatprep.subr.bf16.mxu0 0
        %3656 = vmatpush1.bf16.msra.mxu0 %v3605
        %3657 = vmatprep.subr.bf16.mxu0 0
        %3658 = vmatpush1.bf16.msra.mxu0 %v3604
        %3659 = vmatprep.subr.bf16.mxu0 0
        %3660 = vmatpush1.bf16.msra.mxu0 %v3603
        %3661 = vmatprep.subr.bf16.mxu0 0
        %3662 = vmatpush1.bf16.msra.mxu0 %v3602
        %3663 = vmatprep.subr.bf16.mxu0 0
        %3664 = vmatpush1.bf16.msra.mxu0 %v3601
        %3665 = vmatprep.subr.bf16.mxu0 0
        %3666 = vmatpush2.bf16.msra.mxu0 %v3616
        %3667 = vmatprep.subr.bf16.mxu0 0
        %3668 = vmatpush2.bf16.msra.mxu0 %v3615
        %3669 = vmatprep.subr.bf16.mxu0 0
        %3670 = vmatpush2.bf16.msra.mxu0 %v3614
        %3671 = vmatprep.subr.bf16.mxu0 0
        %3672 = vmatpush2.bf16.msra.mxu0 %v3613
        %3673 = vmatprep.subr.bf16.mxu0 0
        %3674 = vmatpush2.bf16.msra.mxu0 %v3612
        %3675 = vmatprep.subr.bf16.mxu0 0
        %3676 = vmatpush2.bf16.msra.mxu0 %v3611
        %3677 = vmatprep.subr.bf16.mxu0 0
        %3678 = vmatpush2.bf16.msra.mxu0 %v3610
        %3679 = vmatprep.subr.bf16.mxu0 0
        %3680 = vmatpush2.bf16.msra.mxu0 %v3609
        %3681 = vmatprep.mubr.bf16.mxu0 %v2751
        %3682 = vmatmul.mubr.bf16.gmra.mxu0 %v2750
        %v3683 = vpop.f32.mrf.mxu0
        %v3684 = vadd.f32 %v3379, %v3683
        %v3685 = vpop.f32.mrf.mxu0
        %v3686 = vpop.f32.mrf.mxu0
        %v3687 = vadd.f32 %v3382, %v3686
        %v3688 = vpop.f32.mrf.mxu0
        %3689 = vmatprep.mubr.bf16.mxu0 %v2754
        %3690 = vmatmul.mubr.bf16.gmra.mxu0 %v2753
        %v3691 = vpop.f32.mrf.mxu0
        %v3692 = vadd.f32 %v3387, %v3691
        %v3693 = vpop.f32.mrf.mxu0
        %v3694 = vpop.f32.mrf.mxu0
        %v3695 = vadd.f32 %v3390, %v3694
        %v3696 = vpop.f32.mrf.mxu0
        %3697 = vmatprep.mubr.bf16.mxu0 %v2757
        %3698 = vmatmul.mubr.bf16.gmra.mxu0 %v2756
        %v3699 = vpop.f32.mrf.mxu0
        %v3700 = vadd.f32 %v3395, %v3699
        %v3701 = vpop.f32.mrf.mxu0
        %v3702 = vpop.f32.mrf.mxu0
        %v3703 = vadd.f32 %v3398, %v3702
        %v3704 = vpop.f32.mrf.mxu0
        %3705 = vmatprep.mubr.bf16.mxu0 %v2760
        %3706 = vmatmul.mubr.bf16.gmra.mxu0 %v2759
        %v3707 = vpop.f32.mrf.mxu0
        %v3708 = vadd.f32 %v3403, %v3707
        %v3709 = vpop.f32.mrf.mxu0
        %v3710 = vpop.f32.mrf.mxu0
        %v3711 = vadd.f32 %v3406, %v3710
        %v3712 = vpop.f32.mrf.mxu0
        %3713 = vmatprep.mubr.bf16.mxu0 %v2763
        %3714 = vmatmul.mubr.bf16.gmra.mxu0 %v2762
        %v3715 = vpop.f32.mrf.mxu0
        %v3716 = vadd.f32 %v3411, %v3715
        %v3717 = vpop.f32.mrf.mxu0
        %v3718 = vpop.f32.mrf.mxu0
        %v3719 = vadd.f32 %v3414, %v3718
        %v3720 = vpop.f32.mrf.mxu0
        %3721 = vmatprep.mubr.bf16.mxu0 %v2766
        %3722 = vmatmul.mubr.bf16.gmra.mxu0 %v2765
        %v3723 = vpop.f32.mrf.mxu0
        %v3724 = vadd.f32 %v3419, %v3723
        %v3725 = vpop.f32.mrf.mxu0
        %v3726 = vpop.f32.mrf.mxu0
        %v3727 = vadd.f32 %v3422, %v3726
        %v3728 = vpop.f32.mrf.mxu0
        %3729 = vmatprep.mubr.bf16.mxu0 %v2769
        %3730 = vmatmul.mubr.bf16.gmra.mxu0 %v2768
        %v3731 = vpop.f32.mrf.mxu0
        %v3732 = vadd.f32 %v3427, %v3731
        %v3733 = vpop.f32.mrf.mxu0
        %v3734 = vpop.f32.mrf.mxu0
        %v3735 = vadd.f32 %v3430, %v3734
        %v3736 = vpop.f32.mrf.mxu0
        %3737 = vmatprep.mubr.bf16.mxu0 %v2772
        %3738 = vmatmul.mubr.bf16.gmra.mxu0 %v2771
        %v3739 = vpop.f32.mrf.mxu0
        %v3740 = vadd.f32 %v3435, %v3739
        %v3741 = vpop.f32.mrf.mxu0
        %v3742 = vpop.f32.mrf.mxu0
        %v3743 = vadd.f32 %v3438, %v3742
        %v3744 = vpop.f32.mrf.mxu0
        %3745 = vmatprep.mubr.bf16.mxu0 %v2775
        %3746 = vmatmul.mubr.bf16.gmra.mxu0 %v2774
        %v3747 = vpop.f32.mrf.mxu0
        %v3748 = vadd.f32 %v3443, %v3747
        %v3749 = vpop.f32.mrf.mxu0
        %v3750 = vpop.f32.mrf.mxu0
        %v3751 = vadd.f32 %v3446, %v3750
        %v3752 = vpop.f32.mrf.mxu0
        %3753 = vmatprep.mubr.bf16.mxu0 %v2778
        %3754 = vmatmul.mubr.bf16.gmra.mxu0 %v2777
        %v3755 = vpop.f32.mrf.mxu0
        %v3756 = vadd.f32 %v3451, %v3755
        %v3757 = vpop.f32.mrf.mxu0
        %v3758 = vpop.f32.mrf.mxu0
        %v3759 = vadd.f32 %v3454, %v3758
        %v3760 = vpop.f32.mrf.mxu0
        %3761 = vmatprep.mubr.bf16.mxu0 %v2781
        %3762 = vmatmul.mubr.bf16.gmra.mxu0 %v2780
        %v3763 = vpop.f32.mrf.mxu0
        %v3764 = vadd.f32 %v3459, %v3763
        %v3765 = vpop.f32.mrf.mxu0
        %v3766 = vpop.f32.mrf.mxu0
        %v3767 = vadd.f32 %v3462, %v3766
        %v3768 = vpop.f32.mrf.mxu0
        %3769 = vmatprep.mubr.bf16.mxu0 %v2784
        %3770 = vmatmul.mubr.bf16.gmra.mxu0 %v2783
        %v3771 = vpop.f32.mrf.mxu0
        %v3772 = vadd.f32 %v3467, %v3771
        %v3773 = vpop.f32.mrf.mxu0
        %v3774 = vpop.f32.mrf.mxu0
        %v3775 = vadd.f32 %v3470, %v3774
        %v3776 = vpop.f32.mrf.mxu0
        %3777 = vmatprep.mubr.bf16.mxu0 %v2787
        %3778 = vmatmul.mubr.bf16.gmra.mxu0 %v2786
        %v3779 = vpop.f32.mrf.mxu0
        %v3780 = vadd.f32 %v3475, %v3779
        %v3781 = vpop.f32.mrf.mxu0
        %v3782 = vpop.f32.mrf.mxu0
        %v3783 = vadd.f32 %v3478, %v3782
        %v3784 = vpop.f32.mrf.mxu0
        %3785 = vmatprep.mubr.bf16.mxu0 %v2790
        %3786 = vmatmul.mubr.bf16.gmra.mxu0 %v2789
        %v3787 = vpop.f32.mrf.mxu0
        %v3788 = vadd.f32 %v3483, %v3787
        %v3789 = vpop.f32.mrf.mxu0
        %v3790 = vpop.f32.mrf.mxu0
        %v3791 = vadd.f32 %v3486, %v3790
        %v3792 = vpop.f32.mrf.mxu0
        %3793 = vmatprep.mubr.bf16.mxu0 %v2793
        %3794 = vmatmul.mubr.bf16.gmra.mxu0 %v2792
        %v3795 = vpop.f32.mrf.mxu0
        %v3796 = vadd.f32 %v3491, %v3795
        %v3797 = vpop.f32.mrf.mxu0
        %v3798 = vpop.f32.mrf.mxu0
        %v3799 = vadd.f32 %v3494, %v3798
        %v3800 = vpop.f32.mrf.mxu0
        %3801 = vmatprep.mubr.bf16.mxu0 %v2796
        %3802 = vmatmul.mubr.bf16.gmra.mxu0 %v2795
        %v3803 = vpop.f32.mrf.mxu0
        %v3804 = vadd.f32 %v3499, %v3803
        %v3805 = vpop.f32.mrf.mxu0
        %v3806 = vpop.f32.mrf.mxu0
        %v3807 = vadd.f32 %v3502, %v3806
        %v3808 = vpop.f32.mrf.mxu0
        %3809 = vdwg.mxu0
        %3810 = vmatprep.subr.bf16.mxu0 0
        %3811 = vmatpush1.bf16.msra.mxu0 %v3624
        %3812 = vmatprep.subr.bf16.mxu0 0
        %3813 = vmatpush1.bf16.msra.mxu0 %v3623
        %3814 = vmatprep.subr.bf16.mxu0 0
        %3815 = vmatpush1.bf16.msra.mxu0 %v3622
        %3816 = vmatprep.subr.bf16.mxu0 0
        %3817 = vmatpush1.bf16.msra.mxu0 %v3621
        %3818 = vmatprep.subr.bf16.mxu0 0
        %3819 = vmatpush1.bf16.msra.mxu0 %v3620
        %3820 = vmatprep.subr.bf16.mxu0 0
        %3821 = vmatpush1.bf16.msra.mxu0 %v3619
        %3822 = vmatprep.subr.bf16.mxu0 0
        %3823 = vmatpush1.bf16.msra.mxu0 %v3618
        %3824 = vmatprep.subr.bf16.mxu0 0
        %3825 = vmatpush1.bf16.msra.mxu0 %v3617
        %3826 = vmatprep.subr.bf16.mxu0 0
        %3827 = vmatpush2.bf16.msra.mxu0 0
        %3828 = vmatprep.subr.bf16.mxu0 0
        %3829 = vmatpush2.bf16.msra.mxu0 0
        %3830 = vmatprep.subr.bf16.mxu0 0
        %3831 = vmatpush2.bf16.msra.mxu0 0
        %3832 = vmatprep.subr.bf16.mxu0 0
        %3833 = vmatpush2.bf16.msra.mxu0 0
        %3834 = vmatprep.subr.bf16.mxu0 0
        %3835 = vmatpush2.bf16.msra.mxu0 0
        %3836 = vmatprep.subr.bf16.mxu0 0
        %3837 = vmatpush2.bf16.msra.mxu0 0
        %3838 = vmatprep.subr.bf16.mxu0 0
        %3839 = vmatpush2.bf16.msra.mxu0 0
        %3840 = vmatprep.subr.bf16.mxu0 0
        %3841 = vmatpush2.bf16.msra.mxu0 0
        %3842 = vmatprep.mubr.bf16.mxu0 0
        %3843 = vmatmul.mubr.bf16.gmra.mxu0 %v2752
        %v3844 = vpop.f32.mrf.mxu0
        %v3845 = vadd.f32 %v3684, %v3844
        %v3846 = vpop.f32.mrf.mxu0
        %v3847 = vpop.f32.mrf.mxu0
        %v3848 = vadd.f32 %v3687, %v3847
        %v3849 = vpop.f32.mrf.mxu0
        %3850 = vmatprep.mubr.bf16.mxu0 0
        %3851 = vmatmul.mubr.bf16.gmra.mxu0 %v2755
        %v3852 = vpop.f32.mrf.mxu0
        %v3853 = vadd.f32 %v3692, %v3852
        %v3854 = vpop.f32.mrf.mxu0
        %v3855 = vpop.f32.mrf.mxu0
        %v3856 = vadd.f32 %v3695, %v3855
        %v3857 = vpop.f32.mrf.mxu0
        %3858 = vmatprep.mubr.bf16.mxu0 0
        %3859 = vmatmul.mubr.bf16.gmra.mxu0 %v2758
        %v3860 = vpop.f32.mrf.mxu0
        %v3861 = vadd.f32 %v3700, %v3860
        %v3862 = vpop.f32.mrf.mxu0
        %v3863 = vpop.f32.mrf.mxu0
        %v3864 = vadd.f32 %v3703, %v3863
        %v3865 = vpop.f32.mrf.mxu0
        %3866 = vmatprep.mubr.bf16.mxu0 0
        %3867 = vmatmul.mubr.bf16.gmra.mxu0 %v2761
        %v3868 = vpop.f32.mrf.mxu0
        %v3869 = vadd.f32 %v3708, %v3868
        %v3870 = vpop.f32.mrf.mxu0
        %v3871 = vpop.f32.mrf.mxu0
        %v3872 = vadd.f32 %v3711, %v3871
        %v3873 = vpop.f32.mrf.mxu0
        %3874 = vmatprep.mubr.bf16.mxu0 0
        %3875 = vmatmul.mubr.bf16.gmra.mxu0 %v2764
        %v3876 = vpop.f32.mrf.mxu0
        %v3877 = vadd.f32 %v3716, %v3876
        %v3878 = vpop.f32.mrf.mxu0
        %v3879 = vpop.f32.mrf.mxu0
        %v3880 = vadd.f32 %v3719, %v3879
        %v3881 = vpop.f32.mrf.mxu0
        %3882 = vmatprep.mubr.bf16.mxu0 0
        %3883 = vmatmul.mubr.bf16.gmra.mxu0 %v2767
        %v3884 = vpop.f32.mrf.mxu0
        %v3885 = vadd.f32 %v3724, %v3884
        %v3886 = vpop.f32.mrf.mxu0
        %v3887 = vpop.f32.mrf.mxu0
        %v3888 = vadd.f32 %v3727, %v3887
        %v3889 = vpop.f32.mrf.mxu0
        %3890 = vmatprep.mubr.bf16.mxu0 0
        %3891 = vmatmul.mubr.bf16.gmra.mxu0 %v2770
        %v3892 = vpop.f32.mrf.mxu0
        %v3893 = vadd.f32 %v3732, %v3892
        %v3894 = vpop.f32.mrf.mxu0
        %v3895 = vpop.f32.mrf.mxu0
        %v3896 = vadd.f32 %v3735, %v3895
        %v3897 = vpop.f32.mrf.mxu0
        %3898 = vmatprep.mubr.bf16.mxu0 0
        %3899 = vmatmul.mubr.bf16.gmra.mxu0 %v2773
        %v3900 = vpop.f32.mrf.mxu0
        %v3901 = vadd.f32 %v3740, %v3900
        %v3902 = vpop.f32.mrf.mxu0
        %v3903 = vpop.f32.mrf.mxu0
        %v3904 = vadd.f32 %v3743, %v3903
        %v3905 = vpop.f32.mrf.mxu0
        %3906 = vmatprep.mubr.bf16.mxu0 0
        %3907 = vmatmul.mubr.bf16.gmra.mxu0 %v2776
        %v3908 = vpop.f32.mrf.mxu0
        %v3909 = vadd.f32 %v3748, %v3908
        %v3910 = vpop.f32.mrf.mxu0
        %v3911 = vpop.f32.mrf.mxu0
        %v3912 = vadd.f32 %v3751, %v3911
        %v3913 = vpop.f32.mrf.mxu0
        %3914 = vmatprep.mubr.bf16.mxu0 0
        %3915 = vmatmul.mubr.bf16.gmra.mxu0 %v2779
        %v3916 = vpop.f32.mrf.mxu0
        %v3917 = vadd.f32 %v3756, %v3916
        %v3918 = vpop.f32.mrf.mxu0
        %v3919 = vpop.f32.mrf.mxu0
        %v3920 = vadd.f32 %v3759, %v3919
        %v3921 = vpop.f32.mrf.mxu0
        %3922 = vmatprep.mubr.bf16.mxu0 0
        %3923 = vmatmul.mubr.bf16.gmra.mxu0 %v2782
        %v3924 = vpop.f32.mrf.mxu0
        %v3925 = vadd.f32 %v3764, %v3924
        %v3926 = vpop.f32.mrf.mxu0
        %v3927 = vpop.f32.mrf.mxu0
        %v3928 = vadd.f32 %v3767, %v3927
        %v3929 = vpop.f32.mrf.mxu0
        %3930 = vmatprep.mubr.bf16.mxu0 0
        %3931 = vmatmul.mubr.bf16.gmra.mxu0 %v2785
        %v3932 = vpop.f32.mrf.mxu0
        %v3933 = vadd.f32 %v3772, %v3932
        %v3934 = vpop.f32.mrf.mxu0
        %v3935 = vpop.f32.mrf.mxu0
        %v3936 = vadd.f32 %v3775, %v3935
        %v3937 = vpop.f32.mrf.mxu0
        %3938 = vmatprep.mubr.bf16.mxu0 0
        %3939 = vmatmul.mubr.bf16.gmra.mxu0 %v2788
        %v3940 = vpop.f32.mrf.mxu0
        %v3941 = vadd.f32 %v3780, %v3940
        %v3942 = vpop.f32.mrf.mxu0
        %v3943 = vpop.f32.mrf.mxu0
        %v3944 = vadd.f32 %v3783, %v3943
        %v3945 = vpop.f32.mrf.mxu0
        %3946 = vmatprep.mubr.bf16.mxu0 0
        %3947 = vmatmul.mubr.bf16.gmra.mxu0 %v2791
        %v3948 = vpop.f32.mrf.mxu0
        %v3949 = vadd.f32 %v3788, %v3948
        %v3950 = vpop.f32.mrf.mxu0
        %v3951 = vpop.f32.mrf.mxu0
        %v3952 = vadd.f32 %v3791, %v3951
        %v3953 = vpop.f32.mrf.mxu0
        %3954 = vmatprep.mubr.bf16.mxu0 0
        %3955 = vmatmul.mubr.bf16.gmra.mxu0 %v2794
        %v3956 = vpop.f32.mrf.mxu0
        %v3957 = vadd.f32 %v3796, %v3956
        %v3958 = vpop.f32.mrf.mxu0
        %v3959 = vpop.f32.mrf.mxu0
        %v3960 = vadd.f32 %v3799, %v3959
        %v3961 = vpop.f32.mrf.mxu0
        %3962 = vmatprep.mubr.bf16.mxu0 0
        %3963 = vmatmul.mubr.bf16.gmra.mxu0 %v2797
        %v3964 = vpop.f32.mrf.mxu0
        %v3965 = vadd.f32 %v3804, %v3964
        %v3966 = vpop.f32.mrf.mxu0
        %v3967 = vpop.f32.mrf.mxu0
        %v3968 = vadd.f32 %v3807, %v3967
        %v3969 = vpop.f32.mrf.mxu0
        %3970 = vdwg.mxu0
        %v3971 = vld [vmem:[%s1678 + $0x7] sm:$0xff]
        %v3972 = vld [vmem:[%s1678 + $0xf] sm:$0xff]
        %v3973 = vld [vmem:[%s1678 + $0x27] sm:$0xff]
        %v3974 = vld [vmem:[%s1678 + $0x2f] sm:$0xff]
        %v3975 = vld [vmem:[%s1678 + $0x47] sm:$0xff]
        %v3976 = vld [vmem:[%s1678 + $0x4f] sm:$0xff]
        %v3977 = vld [vmem:[%s1678 + $0x67] sm:$0xff]
        %v3978 = vld [vmem:[%s1678 + $0x6f] sm:$0xff]
        %v3979 = vld [vmem:[%s1678 + $0x87] sm:$0xff]
        %v3980 = vld [vmem:[%s1678 + $0x8f] sm:$0xff]
        %v3981 = vld [vmem:[%s1678 + $0xa7] sm:$0xff]
        %v3982 = vld [vmem:[%s1678 + $0xaf] sm:$0xff]
        %v3983 = vld [vmem:[%s1678 + $0xc7] sm:$0xff]
        %v3984 = vld [vmem:[%s1678 + $0xcf] sm:$0xff]
        %v3985 = vld [vmem:[%s1678 + $0xe7] sm:$0xff]
        %v3986 = vld [vmem:[%s1678 + $0xef] sm:$0xff]
        %v3987 = vld [vmem:[%s1678 + $0x107] sm:$0xff]
        %v3988 = vld [vmem:[%s1678 + $0x10f] sm:$0xff]
        %v3989 = vld [vmem:[%s1678 + $0x127] sm:$0xff]
        %v3990 = vld [vmem:[%s1678 + $0x12f] sm:$0xff]
        %v3991 = vld [vmem:[%s1678 + $0x147] sm:$0xff]
        %v3992 = vld [vmem:[%s1678 + $0x14f] sm:$0xff]
        %v3993 = vld [vmem:[%s1678 + $0x167] sm:$0xff]
        %v3994 = vld [vmem:[%s1678 + $0x16f] sm:$0xff]
        %v3995 = vld [vmem:[%s1678 + $0x187] sm:$0xff]
        %v3996 = vld [vmem:[%s1678 + $0x18f] sm:$0xff]
        %v3997 = vld [vmem:[%s1678 + $0x1a7] sm:$0xff]
        %v3998 = vld [vmem:[%s1678 + $0x1af] sm:$0xff]
        %v3999 = vld [vmem:[%s1678 + $0x1c7] sm:$0xff]
        %v4000 = vld [vmem:[%s1678 + $0x1cf] sm:$0xff]
        %v4001 = vld [vmem:[%s1678 + $0x1e7] sm:$0xff]
        %v4002 = vld [vmem:[%s1678 + $0x1ef] sm:$0xff]
        %v4003 = vld [vmem:[%s1678 + $0x8] sm:$0xff]
        %v4004 = vld [vmem:[%s1678 + $0x10] sm:$0xff]
        %v4005 = vld [vmem:[%s1678 + $0x28] sm:$0xff]
        %v4006 = vld [vmem:[%s1678 + $0x30] sm:$0xff]
        %v4007 = vld [vmem:[%s1678 + $0x48] sm:$0xff]
        %v4008 = vld [vmem:[%s1678 + $0x50] sm:$0xff]
        %v4009 = vld [vmem:[%s1678 + $0x68] sm:$0xff]
        %v4010 = vld [vmem:[%s1678 + $0x70] sm:$0xff]
        %v4011 = vld [vmem:[%s1678 + $0x88] sm:$0xff]
        %v4012 = vld [vmem:[%s1678 + $0x90] sm:$0xff]
        %v4013 = vld [vmem:[%s1678 + $0xa8] sm:$0xff]
        %v4014 = vld [vmem:[%s1678 + $0xb0] sm:$0xff]
        %v4015 = vld [vmem:[%s1678 + $0xc8] sm:$0xff]
        %v4016 = vld [vmem:[%s1678 + $0xd0] sm:$0xff]
        %v4017 = vld [vmem:[%s1678 + $0xe8] sm:$0xff]
        %v4018 = vld [vmem:[%s1678 + $0xf0] sm:$0xff]
        %v4019 = vld [vmem:[%s1678 + $0x108] sm:$0xff]
        %v4020 = vld [vmem:[%s1678 + $0x110] sm:$0xff]
        %v4021 = vld [vmem:[%s1678 + $0x128] sm:$0xff]
        %v4022 = vld [vmem:[%s1678 + $0x130] sm:$0xff]
        %v4023 = vld [vmem:[%s1678 + $0x148] sm:$0xff]
        %v4024 = vld [vmem:[%s1678 + $0x150] sm:$0xff]
        %v4025 = vld [vmem:[%s1678 + $0x168] sm:$0xff]
        %v4026 = vld [vmem:[%s1678 + $0x170] sm:$0xff]
        %v4027 = vld [vmem:[%s1678 + $0x188] sm:$0xff]
        %v4028 = vld [vmem:[%s1678 + $0x190] sm:$0xff]
        %v4029 = vld [vmem:[%s1678 + $0x1a8] sm:$0xff]
        %v4030 = vld [vmem:[%s1678 + $0x1b0] sm:$0xff]
        %v4031 = vld [vmem:[%s1678 + $0x1c8] sm:$0xff]
        %v4032 = vld [vmem:[%s1678 + $0x1d0] sm:$0xff]
        %v4033 = vld [vmem:[%s1678 + $0x1e8] sm:$0xff]
        %v4034 = vld [vmem:[%s1678 + $0x1f0] sm:$0xff]
        %v4035 = vld [vmem:[%s1678 + $0x9] sm:$0xff]
        %v4036 = vld [vmem:[%s1678 + $0x11] sm:$0xff]
        %v4037 = vld [vmem:[%s1678 + $0x29] sm:$0xff]
        %v4038 = vld [vmem:[%s1678 + $0x31] sm:$0xff]
        %v4039 = vld [vmem:[%s1678 + $0x49] sm:$0xff]
        %v4040 = vld [vmem:[%s1678 + $0x51] sm:$0xff]
        %v4041 = vld [vmem:[%s1678 + $0x69] sm:$0xff]
        %v4042 = vld [vmem:[%s1678 + $0x71] sm:$0xff]
        %v4043 = vld [vmem:[%s1678 + $0x89] sm:$0xff]
        %v4044 = vld [vmem:[%s1678 + $0x91] sm:$0xff]
        %v4045 = vld [vmem:[%s1678 + $0xa9] sm:$0xff]
        %v4046 = vld [vmem:[%s1678 + $0xb1] sm:$0xff]
        %v4047 = vld [vmem:[%s1678 + $0xc9] sm:$0xff]
        %v4048 = vld [vmem:[%s1678 + $0xd1] sm:$0xff]
        %v4049 = vld [vmem:[%s1678 + $0xe9] sm:$0xff]
        %v4050 = vld [vmem:[%s1678 + $0xf1] sm:$0xff]
        %v4051 = vld [vmem:[%s1678 + $0x109] sm:$0xff]
        %v4052 = vld [vmem:[%s1678 + $0x111] sm:$0xff]
        %v4053 = vld [vmem:[%s1678 + $0x129] sm:$0xff]
        %v4054 = vld [vmem:[%s1678 + $0x131] sm:$0xff]
        %v4055 = vld [vmem:[%s1678 + $0x149] sm:$0xff]
        %v4056 = vld [vmem:[%s1678 + $0x151] sm:$0xff]
        %v4057 = vld [vmem:[%s1678 + $0x169] sm:$0xff]
        %v4058 = vld [vmem:[%s1678 + $0x171] sm:$0xff]
        %v4059 = vld [vmem:[%s1678 + $0x189] sm:$0xff]
        %v4060 = vld [vmem:[%s1678 + $0x191] sm:$0xff]
        %v4061 = vld [vmem:[%s1678 + $0x1a9] sm:$0xff]
        %v4062 = vld [vmem:[%s1678 + $0x1b1] sm:$0xff]
        %v4063 = vld [vmem:[%s1678 + $0x1c9] sm:$0xff]
        %v4064 = vld [vmem:[%s1678 + $0x1d1] sm:$0xff]
        %v4065 = vld [vmem:[%s1678 + $0x1e9] sm:$0xff]
        %v4066 = vld [vmem:[%s1678 + $0x1f1] sm:$0xff]
        %v4067 = vpack.c.bf16 %v3972, %v3971
        %v4068 = vpack.c.bf16 %v4004, %v4003
        %v4069 = vpack.c.bf16 %v4036, %v4035
        %v4070 = vpack.c.bf16 %v3974, %v3973
        %v4071 = vpack.c.bf16 %v4006, %v4005
        %v4072 = vpack.c.bf16 %v4038, %v4037
        %v4073 = vpack.c.bf16 %v3976, %v3975
        %v4074 = vpack.c.bf16 %v4008, %v4007
        %v4075 = vpack.c.bf16 %v4040, %v4039
        %v4076 = vpack.c.bf16 %v3978, %v3977
        %v4077 = vpack.c.bf16 %v4010, %v4009
        %v4078 = vpack.c.bf16 %v4042, %v4041
        %v4079 = vpack.c.bf16 %v3980, %v3979
        %v4080 = vpack.c.bf16 %v4012, %v4011
        %v4081 = vpack.c.bf16 %v4044, %v4043
        %v4082 = vpack.c.bf16 %v3982, %v3981
        %v4083 = vpack.c.bf16 %v4014, %v4013
        %v4084 = vpack.c.bf16 %v4046, %v4045
        %v4085 = vpack.c.bf16 %v3984, %v3983
        %v4086 = vpack.c.bf16 %v4016, %v4015
        %v4087 = vpack.c.bf16 %v4048, %v4047
        %v4088 = vpack.c.bf16 %v3986, %v3985
        %v4089 = vpack.c.bf16 %v4018, %v4017
        %v4090 = vpack.c.bf16 %v4050, %v4049
        %v4091 = vpack.c.bf16 %v3988, %v3987
        %v4092 = vpack.c.bf16 %v4020, %v4019
        %v4093 = vpack.c.bf16 %v4052, %v4051
        %v4094 = vpack.c.bf16 %v3990, %v3989
        %v4095 = vpack.c.bf16 %v4022, %v4021
        %v4096 = vpack.c.bf16 %v4054, %v4053
        %v4097 = vpack.c.bf16 %v3992, %v3991
        %v4098 = vpack.c.bf16 %v4024, %v4023
        %v4099 = vpack.c.bf16 %v4056, %v4055
        %v4100 = vpack.c.bf16 %v3994, %v3993
        %v4101 = vpack.c.bf16 %v4026, %v4025
        %v4102 = vpack.c.bf16 %v4058, %v4057
        %v4103 = vpack.c.bf16 %v3996, %v3995
        %v4104 = vpack.c.bf16 %v4028, %v4027
        %v4105 = vpack.c.bf16 %v4060, %v4059
        %v4106 = vpack.c.bf16 %v3998, %v3997
        %v4107 = vpack.c.bf16 %v4030, %v4029
        %v4108 = vpack.c.bf16 %v4062, %v4061
        %v4109 = vpack.c.bf16 %v4000, %v3999
        %v4110 = vpack.c.bf16 %v4032, %v4031
        %v4111 = vpack.c.bf16 %v4064, %v4063
        %v4112 = vpack.c.bf16 %v4002, %v4001
        %v4113 = vpack.c.bf16 %v4034, %v4033
        %v4114 = vpack.c.bf16 %v4066, %v4065
        %s4115 = scalar_lea.vmem %s3, 384
        %v4116 = vld [vmem:[%s4115] sm:$0xf]
        %v4117 = vld [vmem:[%s4115 + $0x4] sm:$0xf]
        %v4118 = vld [vmem:[%s4115 + $0x8] sm:$0xf]
        %v4119 = vld [vmem:[%s4115 + $0xc] sm:$0xf]
        %v4120 = vld [vmem:[%s4115 + $0x10] sm:$0xf]
        %v4121 = vld [vmem:[%s4115 + $0x14] sm:$0xf]
        %v4122 = vld [vmem:[%s4115 + $0x18] sm:$0xf]
        %v4123 = vld [vmem:[%s4115 + $0x1c] sm:$0xf]
        %v4124 = vld [vmem:[%s4115 + $0x20] sm:$0xf]
        %v4125 = vld [vmem:[%s4115 + $0x24] sm:$0xf]
        %v4126 = vld [vmem:[%s4115 + $0x28] sm:$0xf]
        %v4127 = vld [vmem:[%s4115 + $0x2c] sm:$0xf]
        %v4128 = vld [vmem:[%s4115 + $0x30] sm:$0xf]
        %v4129 = vld [vmem:[%s4115 + $0x34] sm:$0xf]
        %v4130 = vld [vmem:[%s4115 + $0x38] sm:$0xf]
        %v4131 = vld [vmem:[%s4115 + $0x3c] sm:$0xf]
        %v4132 = vld [vmem:[%s4115 + $0x40] sm:$0xf]
        %v4133 = vld [vmem:[%s4115 + $0x44] sm:$0xf]
        %v4134 = vld [vmem:[%s4115 + $0x48] sm:$0xf]
        %v4135 = vld [vmem:[%s4115 + $0x4c] sm:$0xf]
        %v4136 = vld [vmem:[%s4115 + $0x50] sm:$0xf]
        %v4137 = vld [vmem:[%s4115 + $0x54] sm:$0xf]
        %v4138 = vld [vmem:[%s4115 + $0x58] sm:$0xf]
        %v4139 = vld [vmem:[%s4115 + $0x5c] sm:$0xf]
        %v4140 = vld [vmem:[%s4115 + $0x60] sm:$0xf]
        %v4141 = vld [vmem:[%s4115 + $0x64] sm:$0xf]
        %v4142 = vld [vmem:[%s4115 + $0x68] sm:$0xf]
        %v4143 = vld [vmem:[%s4115 + $0x6c] sm:$0xf]
        %v4144 = vld [vmem:[%s4115 + $0x70] sm:$0xf]
        %v4145 = vld [vmem:[%s4115 + $0x74] sm:$0xf]
        %v4146 = vld [vmem:[%s4115 + $0x78] sm:$0xf]
        %v4147 = vld [vmem:[%s4115 + $0x7c] sm:$0xf]
        %v4148 = vld [vmem:[%s4115 + $0x80] sm:$0xf]
        %v4149 = vld [vmem:[%s4115 + $0x84] sm:$0xf]
        %v4150 = vld [vmem:[%s4115 + $0x88] sm:$0xf]
        %v4151 = vld [vmem:[%s4115 + $0x8c] sm:$0xf]
        %v4152 = vld [vmem:[%s4115 + $0x90] sm:$0xf]
        %v4153 = vld [vmem:[%s4115 + $0x94] sm:$0xf]
        %v4154 = vld [vmem:[%s4115 + $0x98] sm:$0xf]
        %v4155 = vld [vmem:[%s4115 + $0x9c] sm:$0xf]
        %v4156 = vld [vmem:[%s4115 + $0xa0] sm:$0xf]
        %v4157 = vld [vmem:[%s4115 + $0xa4] sm:$0xf]
        %v4158 = vld [vmem:[%s4115 + $0xa8] sm:$0xf]
        %v4159 = vld [vmem:[%s4115 + $0xac] sm:$0xf]
        %v4160 = vld [vmem:[%s4115 + $0xb0] sm:$0xf]
        %v4161 = vld [vmem:[%s4115 + $0xb4] sm:$0xf]
        %v4162 = vld [vmem:[%s4115 + $0xb8] sm:$0xf]
        %v4163 = vld [vmem:[%s4115 + $0xbc] sm:$0xf]
        %v4212 = vunpack.c.l.b16 %v4116
        %v4213 = vunpack.c.l.b16 %v4117
        %v4214 = vunpack.c.l.b16 %v4118
        %v4215 = vunpack.c.l.b16 %v4119
        %v4216 = vunpack.c.l.b16 %v4120
        %v4217 = vunpack.c.l.b16 %v4121
        %v4218 = vunpack.c.l.b16 %v4122
        %v4219 = vunpack.c.l.b16 %v4123
        %v4220 = vunpack.c.l.b16 %v4124
        %v4221 = vunpack.c.l.b16 %v4125
        %v4222 = vunpack.c.l.b16 %v4126
        %v4223 = vunpack.c.l.b16 %v4127
        %v4224 = vunpack.c.l.b16 %v4128
        %v4225 = vunpack.c.l.b16 %v4129
        %v4226 = vunpack.c.l.b16 %v4130
        %v4227 = vunpack.c.l.b16 %v4131
        %v4228 = vunpack.c.l.b16 %v4132
        %v4229 = vunpack.c.l.b16 %v4133
        %v4230 = vunpack.c.l.b16 %v4134
        %v4231 = vunpack.c.l.b16 %v4135
        %v4232 = vunpack.c.l.b16 %v4136
        %v4233 = vunpack.c.l.b16 %v4137
        %v4234 = vunpack.c.l.b16 %v4138
        %v4235 = vunpack.c.l.b16 %v4139
        %v4236 = vunpack.c.l.b16 %v4140
        %v4237 = vunpack.c.l.b16 %v4141
        %v4238 = vunpack.c.l.b16 %v4142
        %v4239 = vunpack.c.l.b16 %v4143
        %v4240 = vunpack.c.l.b16 %v4144
        %v4241 = vunpack.c.l.b16 %v4145
        %v4242 = vunpack.c.l.b16 %v4146
        %v4243 = vunpack.c.l.b16 %v4147
        %v4244 = vunpack.c.l.b16 %v4148
        %v4245 = vunpack.c.l.b16 %v4149
        %v4246 = vunpack.c.l.b16 %v4150
        %v4247 = vunpack.c.l.b16 %v4151
        %v4248 = vunpack.c.l.b16 %v4152
        %v4249 = vunpack.c.l.b16 %v4153
        %v4250 = vunpack.c.l.b16 %v4154
        %v4251 = vunpack.c.l.b16 %v4155
        %v4252 = vunpack.c.l.b16 %v4156
        %v4253 = vunpack.c.l.b16 %v4157
        %v4254 = vunpack.c.l.b16 %v4158
        %v4255 = vunpack.c.l.b16 %v4159
        %v4256 = vunpack.c.l.b16 %v4160
        %v4257 = vunpack.c.l.b16 %v4161
        %v4258 = vunpack.c.l.b16 %v4162
        %v4259 = vunpack.c.l.b16 %v4163
        %v4260 = vpack.c.b16 %v4213, %v4212
        %v4261 = vpack.c.b16 %v4215, %v4214
        %v4262 = vpack.c.b16 %v4217, %v4216
        %v4263 = vpack.c.b16 %v4219, %v4218
        %v4264 = vpack.c.b16 %v4221, %v4220
        %v4265 = vpack.c.b16 %v4223, %v4222
        %v4266 = vpack.c.b16 %v4225, %v4224
        %v4267 = vpack.c.b16 %v4227, %v4226
        %v4268 = vpack.c.b16 %v4229, %v4228
        %v4269 = vpack.c.b16 %v4231, %v4230
        %v4270 = vpack.c.b16 %v4233, %v4232
        %v4271 = vpack.c.b16 %v4235, %v4234
        %v4272 = vpack.c.b16 %v4237, %v4236
        %v4273 = vpack.c.b16 %v4239, %v4238
        %v4274 = vpack.c.b16 %v4241, %v4240
        %v4275 = vpack.c.b16 %v4243, %v4242
        %v4276 = vpack.c.b16 %v4245, %v4244
        %v4277 = vpack.c.b16 %v4247, %v4246
        %v4278 = vpack.c.b16 %v4249, %v4248
        %v4279 = vpack.c.b16 %v4251, %v4250
        %v4280 = vpack.c.b16 %v4253, %v4252
        %v4281 = vpack.c.b16 %v4255, %v4254
        %v4282 = vpack.c.b16 %v4257, %v4256
        %v4283 = vpack.c.b16 %v4259, %v4258
        %4308 = vmatprep.subr.bf16.mxu0 0
        %4309 = vmatpush1.bf16.msra.mxu0 %v4267
        %4310 = vmatprep.subr.bf16.mxu0 0
        %4311 = vmatpush1.bf16.msra.mxu0 %v4266
        %4312 = vmatprep.subr.bf16.mxu0 0
        %4313 = vmatpush1.bf16.msra.mxu0 %v4265
        %4314 = vmatprep.subr.bf16.mxu0 0
        %4315 = vmatpush1.bf16.msra.mxu0 %v4264
        %4316 = vmatprep.subr.bf16.mxu0 0
        %4317 = vmatpush1.bf16.msra.mxu0 %v4263
        %4318 = vmatprep.subr.bf16.mxu0 0
        %4319 = vmatpush1.bf16.msra.mxu0 %v4262
        %4320 = vmatprep.subr.bf16.mxu0 0
        %4321 = vmatpush1.bf16.msra.mxu0 %v4261
        %4322 = vmatprep.subr.bf16.mxu0 0
        %4323 = vmatpush1.bf16.msra.mxu0 %v4260
        %4324 = vmatprep.subr.bf16.mxu0 0
        %4325 = vmatpush2.bf16.msra.mxu0 %v4275
        %4326 = vmatprep.subr.bf16.mxu0 0
        %4327 = vmatpush2.bf16.msra.mxu0 %v4274
        %4328 = vmatprep.subr.bf16.mxu0 0
        %4329 = vmatpush2.bf16.msra.mxu0 %v4273
        %4330 = vmatprep.subr.bf16.mxu0 0
        %4331 = vmatpush2.bf16.msra.mxu0 %v4272
        %4332 = vmatprep.subr.bf16.mxu0 0
        %4333 = vmatpush2.bf16.msra.mxu0 %v4271
        %4334 = vmatprep.subr.bf16.mxu0 0
        %4335 = vmatpush2.bf16.msra.mxu0 %v4270
        %4336 = vmatprep.subr.bf16.mxu0 0
        %4337 = vmatpush2.bf16.msra.mxu0 %v4269
        %4338 = vmatprep.subr.bf16.mxu0 0
        %4339 = vmatpush2.bf16.msra.mxu0 %v4268
        %4340 = vmatprep.mubr.bf16.mxu0 %v4068
        %4341 = vmatmul.mubr.bf16.gmra.mxu0 %v4067
        %v4342 = vpop.f32.mrf.mxu0
        %v4343 = vadd.f32 0.0, %v4342
        %v4344 = vpop.f32.mrf.mxu0
        %v4345 = vpop.f32.mrf.mxu0
        %v4346 = vadd.f32 0.0, %v4345
        %v4347 = vpop.f32.mrf.mxu0
        %4348 = vmatprep.mubr.bf16.mxu0 %v4071
        %4349 = vmatmul.mubr.bf16.gmra.mxu0 %v4070
        %v4350 = vpop.f32.mrf.mxu0
        %v4351 = vadd.f32 0.0, %v4350
        %v4352 = vpop.f32.mrf.mxu0
        %v4353 = vpop.f32.mrf.mxu0
        %v4354 = vadd.f32 0.0, %v4353
        %v4355 = vpop.f32.mrf.mxu0
        %4356 = vmatprep.mubr.bf16.mxu0 %v4074
        %4357 = vmatmul.mubr.bf16.gmra.mxu0 %v4073
        %v4358 = vpop.f32.mrf.mxu0
        %v4359 = vadd.f32 0.0, %v4358
        %v4360 = vpop.f32.mrf.mxu0
        %v4361 = vpop.f32.mrf.mxu0
        %v4362 = vadd.f32 0.0, %v4361
        %v4363 = vpop.f32.mrf.mxu0
        %4364 = vmatprep.mubr.bf16.mxu0 %v4077
        %4365 = vmatmul.mubr.bf16.gmra.mxu0 %v4076
        %v4366 = vpop.f32.mrf.mxu0
        %v4367 = vadd.f32 0.0, %v4366
        %v4368 = vpop.f32.mrf.mxu0
        %v4369 = vpop.f32.mrf.mxu0
        %v4370 = vadd.f32 0.0, %v4369
        %v4371 = vpop.f32.mrf.mxu0
        %4372 = vmatprep.mubr.bf16.mxu0 %v4080
        %4373 = vmatmul.mubr.bf16.gmra.mxu0 %v4079
        %v4374 = vpop.f32.mrf.mxu0
        %v4375 = vadd.f32 0.0, %v4374
        %v4376 = vpop.f32.mrf.mxu0
        %v4377 = vpop.f32.mrf.mxu0
        %v4378 = vadd.f32 0.0, %v4377
        %v4379 = vpop.f32.mrf.mxu0
        %4380 = vmatprep.mubr.bf16.mxu0 %v4083
        %4381 = vmatmul.mubr.bf16.gmra.mxu0 %v4082
        %v4382 = vpop.f32.mrf.mxu0
        %v4383 = vadd.f32 0.0, %v4382
        %v4384 = vpop.f32.mrf.mxu0
        %v4385 = vpop.f32.mrf.mxu0
        %v4386 = vadd.f32 0.0, %v4385
        %v4387 = vpop.f32.mrf.mxu0
        %4388 = vmatprep.mubr.bf16.mxu0 %v4086
        %4389 = vmatmul.mubr.bf16.gmra.mxu0 %v4085
        %v4390 = vpop.f32.mrf.mxu0
        %v4391 = vadd.f32 0.0, %v4390
        %v4392 = vpop.f32.mrf.mxu0
        %v4393 = vpop.f32.mrf.mxu0
        %v4394 = vadd.f32 0.0, %v4393
        %v4395 = vpop.f32.mrf.mxu0
        %4396 = vmatprep.mubr.bf16.mxu0 %v4089
        %4397 = vmatmul.mubr.bf16.gmra.mxu0 %v4088
        %v4398 = vpop.f32.mrf.mxu0
        %v4399 = vadd.f32 0.0, %v4398
        %v4400 = vpop.f32.mrf.mxu0
        %v4401 = vpop.f32.mrf.mxu0
        %v4402 = vadd.f32 0.0, %v4401
        %v4403 = vpop.f32.mrf.mxu0
        %4404 = vmatprep.mubr.bf16.mxu0 %v4092
        %4405 = vmatmul.mubr.bf16.gmra.mxu0 %v4091
        %v4406 = vpop.f32.mrf.mxu0
        %v4407 = vadd.f32 0.0, %v4406
        %v4408 = vpop.f32.mrf.mxu0
        %v4409 = vpop.f32.mrf.mxu0
        %v4410 = vadd.f32 0.0, %v4409
        %v4411 = vpop.f32.mrf.mxu0
        %4412 = vmatprep.mubr.bf16.mxu0 %v4095
        %4413 = vmatmul.mubr.bf16.gmra.mxu0 %v4094
        %v4414 = vpop.f32.mrf.mxu0
        %v4415 = vadd.f32 0.0, %v4414
        %v4416 = vpop.f32.mrf.mxu0
        %v4417 = vpop.f32.mrf.mxu0
        %v4418 = vadd.f32 0.0, %v4417
        %v4419 = vpop.f32.mrf.mxu0
        %4420 = vmatprep.mubr.bf16.mxu0 %v4098
        %4421 = vmatmul.mubr.bf16.gmra.mxu0 %v4097
        %v4422 = vpop.f32.mrf.mxu0
        %v4423 = vadd.f32 0.0, %v4422
        %v4424 = vpop.f32.mrf.mxu0
        %v4425 = vpop.f32.mrf.mxu0
        %v4426 = vadd.f32 0.0, %v4425
        %v4427 = vpop.f32.mrf.mxu0
        %4428 = vmatprep.mubr.bf16.mxu0 %v4101
        %4429 = vmatmul.mubr.bf16.gmra.mxu0 %v4100
        %v4430 = vpop.f32.mrf.mxu0
        %v4431 = vadd.f32 0.0, %v4430
        %v4432 = vpop.f32.mrf.mxu0
        %v4433 = vpop.f32.mrf.mxu0
        %v4434 = vadd.f32 0.0, %v4433
        %v4435 = vpop.f32.mrf.mxu0
        %4436 = vmatprep.mubr.bf16.mxu0 %v4104
        %4437 = vmatmul.mubr.bf16.gmra.mxu0 %v4103
        %v4438 = vpop.f32.mrf.mxu0
        %v4439 = vadd.f32 0.0, %v4438
        %v4440 = vpop.f32.mrf.mxu0
        %v4441 = vpop.f32.mrf.mxu0
        %v4442 = vadd.f32 0.0, %v4441
        %v4443 = vpop.f32.mrf.mxu0
        %4444 = vmatprep.mubr.bf16.mxu0 %v4107
        %4445 = vmatmul.mubr.bf16.gmra.mxu0 %v4106
        %v4446 = vpop.f32.mrf.mxu0
        %v4447 = vadd.f32 0.0, %v4446
        %v4448 = vpop.f32.mrf.mxu0
        %v4449 = vpop.f32.mrf.mxu0
        %v4450 = vadd.f32 0.0, %v4449
        %v4451 = vpop.f32.mrf.mxu0
        %4452 = vmatprep.mubr.bf16.mxu0 %v4110
        %4453 = vmatmul.mubr.bf16.gmra.mxu0 %v4109
        %v4454 = vpop.f32.mrf.mxu0
        %v4455 = vadd.f32 0.0, %v4454
        %v4456 = vpop.f32.mrf.mxu0
        %v4457 = vpop.f32.mrf.mxu0
        %v4458 = vadd.f32 0.0, %v4457
        %v4459 = vpop.f32.mrf.mxu0
        %4460 = vmatprep.mubr.bf16.mxu0 %v4113
        %4461 = vmatmul.mubr.bf16.gmra.mxu0 %v4112
        %v4462 = vpop.f32.mrf.mxu0
        %v4463 = vadd.f32 0.0, %v4462
        %v4464 = vpop.f32.mrf.mxu0
        %v4465 = vpop.f32.mrf.mxu0
        %v4466 = vadd.f32 0.0, %v4465
        %v4467 = vpop.f32.mrf.mxu0
        %4468 = vdwg.mxu0
        %4469 = vmatprep.subr.bf16.mxu0 0
        %4470 = vmatpush1.bf16.msra.mxu0 %v4283
        %4471 = vmatprep.subr.bf16.mxu0 0
        %4472 = vmatpush1.bf16.msra.mxu0 %v4282
        %4473 = vmatprep.subr.bf16.mxu0 0
        %4474 = vmatpush1.bf16.msra.mxu0 %v4281
        %4475 = vmatprep.subr.bf16.mxu0 0
        %4476 = vmatpush1.bf16.msra.mxu0 %v4280
        %4477 = vmatprep.subr.bf16.mxu0 0
        %4478 = vmatpush1.bf16.msra.mxu0 %v4279
        %4479 = vmatprep.subr.bf16.mxu0 0
        %4480 = vmatpush1.bf16.msra.mxu0 %v4278
        %4481 = vmatprep.subr.bf16.mxu0 0
        %4482 = vmatpush1.bf16.msra.mxu0 %v4277
        %4483 = vmatprep.subr.bf16.mxu0 0
        %4484 = vmatpush1.bf16.msra.mxu0 %v4276
        %4485 = vmatprep.subr.bf16.mxu0 0
        %4486 = vmatpush2.bf16.msra.mxu0 0
        %4487 = vmatprep.subr.bf16.mxu0 0
        %4488 = vmatpush2.bf16.msra.mxu0 0
        %4489 = vmatprep.subr.bf16.mxu0 0
        %4490 = vmatpush2.bf16.msra.mxu0 0
        %4491 = vmatprep.subr.bf16.mxu0 0
        %4492 = vmatpush2.bf16.msra.mxu0 0
        %4493 = vmatprep.subr.bf16.mxu0 0
        %4494 = vmatpush2.bf16.msra.mxu0 0
        %4495 = vmatprep.subr.bf16.mxu0 0
        %4496 = vmatpush2.bf16.msra.mxu0 0
        %4497 = vmatprep.subr.bf16.mxu0 0
        %4498 = vmatpush2.bf16.msra.mxu0 0
        %4499 = vmatprep.subr.bf16.mxu0 0
        %4500 = vmatpush2.bf16.msra.mxu0 0
        %4501 = vmatprep.mubr.bf16.mxu0 0
        %4502 = vmatmul.mubr.bf16.gmra.mxu0 %v4069
        %v4503 = vpop.f32.mrf.mxu0
        %v4504 = vadd.f32 %v4343, %v4503
        %v4505 = vpop.f32.mrf.mxu0
        %v4506 = vpop.f32.mrf.mxu0
        %v4507 = vadd.f32 %v4346, %v4506
        %v4508 = vpop.f32.mrf.mxu0
        %4509 = vmatprep.mubr.bf16.mxu0 0
        %4510 = vmatmul.mubr.bf16.gmra.mxu0 %v4072
        %v4511 = vpop.f32.mrf.mxu0
        %v4512 = vadd.f32 %v4351, %v4511
        %v4513 = vpop.f32.mrf.mxu0
        %v4514 = vpop.f32.mrf.mxu0
        %v4515 = vadd.f32 %v4354, %v4514
        %v4516 = vpop.f32.mrf.mxu0
        %4517 = vmatprep.mubr.bf16.mxu0 0
        %4518 = vmatmul.mubr.bf16.gmra.mxu0 %v4075
        %v4519 = vpop.f32.mrf.mxu0
        %v4520 = vadd.f32 %v4359, %v4519
        %v4521 = vpop.f32.mrf.mxu0
        %v4522 = vpop.f32.mrf.mxu0
        %v4523 = vadd.f32 %v4362, %v4522
        %v4524 = vpop.f32.mrf.mxu0
        %4525 = vmatprep.mubr.bf16.mxu0 0
        %4526 = vmatmul.mubr.bf16.gmra.mxu0 %v4078
        %v4527 = vpop.f32.mrf.mxu0
        %v4528 = vadd.f32 %v4367, %v4527
        %v4529 = vpop.f32.mrf.mxu0
        %v4530 = vpop.f32.mrf.mxu0
        %v4531 = vadd.f32 %v4370, %v4530
        %v4532 = vpop.f32.mrf.mxu0
        %4533 = vmatprep.mubr.bf16.mxu0 0
        %4534 = vmatmul.mubr.bf16.gmra.mxu0 %v4081
        %v4535 = vpop.f32.mrf.mxu0
        %v4536 = vadd.f32 %v4375, %v4535
        %v4537 = vpop.f32.mrf.mxu0
        %v4538 = vpop.f32.mrf.mxu0
        %v4539 = vadd.f32 %v4378, %v4538
        %v4540 = vpop.f32.mrf.mxu0
        %4541 = vmatprep.mubr.bf16.mxu0 0
        %4542 = vmatmul.mubr.bf16.gmra.mxu0 %v4084
        %v4543 = vpop.f32.mrf.mxu0
        %v4544 = vadd.f32 %v4383, %v4543
        %v4545 = vpop.f32.mrf.mxu0
        %v4546 = vpop.f32.mrf.mxu0
        %v4547 = vadd.f32 %v4386, %v4546
        %v4548 = vpop.f32.mrf.mxu0
        %4549 = vmatprep.mubr.bf16.mxu0 0
        %4550 = vmatmul.mubr.bf16.gmra.mxu0 %v4087
        %v4551 = vpop.f32.mrf.mxu0
        %v4552 = vadd.f32 %v4391, %v4551
        %v4553 = vpop.f32.mrf.mxu0
        %v4554 = vpop.f32.mrf.mxu0
        %v4555 = vadd.f32 %v4394, %v4554
        %v4556 = vpop.f32.mrf.mxu0
        %4557 = vmatprep.mubr.bf16.mxu0 0
        %4558 = vmatmul.mubr.bf16.gmra.mxu0 %v4090
        %v4559 = vpop.f32.mrf.mxu0
        %v4560 = vadd.f32 %v4399, %v4559
        %v4561 = vpop.f32.mrf.mxu0
        %v4562 = vpop.f32.mrf.mxu0
        %v4563 = vadd.f32 %v4402, %v4562
        %v4564 = vpop.f32.mrf.mxu0
        %4565 = vmatprep.mubr.bf16.mxu0 0
        %4566 = vmatmul.mubr.bf16.gmra.mxu0 %v4093
        %v4567 = vpop.f32.mrf.mxu0
        %v4568 = vadd.f32 %v4407, %v4567
        %v4569 = vpop.f32.mrf.mxu0
        %v4570 = vpop.f32.mrf.mxu0
        %v4571 = vadd.f32 %v4410, %v4570
        %v4572 = vpop.f32.mrf.mxu0
        %4573 = vmatprep.mubr.bf16.mxu0 0
        %4574 = vmatmul.mubr.bf16.gmra.mxu0 %v4096
        %v4575 = vpop.f32.mrf.mxu0
        %v4576 = vadd.f32 %v4415, %v4575
        %v4577 = vpop.f32.mrf.mxu0
        %v4578 = vpop.f32.mrf.mxu0
        %v4579 = vadd.f32 %v4418, %v4578
        %v4580 = vpop.f32.mrf.mxu0
        %4581 = vmatprep.mubr.bf16.mxu0 0
        %4582 = vmatmul.mubr.bf16.gmra.mxu0 %v4099
        %v4583 = vpop.f32.mrf.mxu0
        %v4584 = vadd.f32 %v4423, %v4583
        %v4585 = vpop.f32.mrf.mxu0
        %v4586 = vpop.f32.mrf.mxu0
        %v4587 = vadd.f32 %v4426, %v4586
        %v4588 = vpop.f32.mrf.mxu0
        %4589 = vmatprep.mubr.bf16.mxu0 0
        %4590 = vmatmul.mubr.bf16.gmra.mxu0 %v4102
        %v4591 = vpop.f32.mrf.mxu0
        %v4592 = vadd.f32 %v4431, %v4591
        %v4593 = vpop.f32.mrf.mxu0
        %v4594 = vpop.f32.mrf.mxu0
        %v4595 = vadd.f32 %v4434, %v4594
        %v4596 = vpop.f32.mrf.mxu0
        %4597 = vmatprep.mubr.bf16.mxu0 0
        %4598 = vmatmul.mubr.bf16.gmra.mxu0 %v4105
        %v4599 = vpop.f32.mrf.mxu0
        %v4600 = vadd.f32 %v4439, %v4599
        %v4601 = vpop.f32.mrf.mxu0
        %v4602 = vpop.f32.mrf.mxu0
        %v4603 = vadd.f32 %v4442, %v4602
        %v4604 = vpop.f32.mrf.mxu0
        %4605 = vmatprep.mubr.bf16.mxu0 0
        %4606 = vmatmul.mubr.bf16.gmra.mxu0 %v4108
        %v4607 = vpop.f32.mrf.mxu0
        %v4608 = vadd.f32 %v4447, %v4607
        %v4609 = vpop.f32.mrf.mxu0
        %v4610 = vpop.f32.mrf.mxu0
        %v4611 = vadd.f32 %v4450, %v4610
        %v4612 = vpop.f32.mrf.mxu0
        %4613 = vmatprep.mubr.bf16.mxu0 0
        %4614 = vmatmul.mubr.bf16.gmra.mxu0 %v4111
        %v4615 = vpop.f32.mrf.mxu0
        %v4616 = vadd.f32 %v4455, %v4615
        %v4617 = vpop.f32.mrf.mxu0
        %v4618 = vpop.f32.mrf.mxu0
        %v4619 = vadd.f32 %v4458, %v4618
        %v4620 = vpop.f32.mrf.mxu0
        %4621 = vmatprep.mubr.bf16.mxu0 0
        %4622 = vmatmul.mubr.bf16.gmra.mxu0 %v4114
        %v4623 = vpop.f32.mrf.mxu0
        %v4624 = vadd.f32 %v4463, %v4623
        %v4625 = vpop.f32.mrf.mxu0
        %v4626 = vpop.f32.mrf.mxu0
        %v4627 = vadd.f32 %v4466, %v4626
        %v4628 = vpop.f32.mrf.mxu0
        %4629 = vdwg.mxu0
        %v4630 = vadd.f32 %v3845, %v4504
        %v4631 = vadd.f32 %v3848, %v4507
        %v4632 = vadd.f32 %v3853, %v4512
        %v4633 = vadd.f32 %v3856, %v4515
        %v4634 = vadd.f32 %v3861, %v4520
        %v4635 = vadd.f32 %v3864, %v4523
        %v4636 = vadd.f32 %v3869, %v4528
        %v4637 = vadd.f32 %v3872, %v4531
        %v4638 = vadd.f32 %v3877, %v4536
        %v4639 = vadd.f32 %v3880, %v4539
        %v4640 = vadd.f32 %v3885, %v4544
        %v4641 = vadd.f32 %v3888, %v4547
        %v4642 = vadd.f32 %v3893, %v4552
        %v4643 = vadd.f32 %v3896, %v4555
        %v4644 = vadd.f32 %v3901, %v4560
        %v4645 = vadd.f32 %v3904, %v4563
        %v4646 = vadd.f32 %v3909, %v4568
        %v4647 = vadd.f32 %v3912, %v4571
        %v4648 = vadd.f32 %v3917, %v4576
        %v4649 = vadd.f32 %v3920, %v4579
        %v4650 = vadd.f32 %v3925, %v4584
        %v4651 = vadd.f32 %v3928, %v4587
        %v4652 = vadd.f32 %v3933, %v4592
        %v4653 = vadd.f32 %v3936, %v4595
        %v4654 = vadd.f32 %v3941, %v4600
        %v4655 = vadd.f32 %v3944, %v4603
        %v4656 = vadd.f32 %v3949, %v4608
        %v4657 = vadd.f32 %v3952, %v4611
        %v4658 = vadd.f32 %v3957, %v4616
        %v4659 = vadd.f32 %v3960, %v4619
        %v4660 = vadd.f32 %v3965, %v4624
        %v4661 = vadd.f32 %v3968, %v4627
        %v4662 = vadd.f32 %v4630, %v4631
        %v4663 = vadd.f32 %v4662, %v4632
        %v4664 = vadd.f32 %v4663, %v4633
        %v4665 = vadd.f32 %v4664, %v4634
        %v4666 = vadd.f32 %v4665, %v4635
        %v4667 = vadd.f32 %v4666, %v4636
        %v4668 = vadd.f32 %v4667, %v4637
        %v4669 = vadd.f32 %v4668, %v4638
        %v4670 = vadd.f32 %v4669, %v4639
        %v4671 = vadd.f32 %v4670, %v4640
        %v4672 = vadd.f32 %v4671, %v4641
        %v4673 = vadd.f32 %v4672, %v4642
        %v4674 = vadd.f32 %v4673, %v4643
        %v4675 = vadd.f32 %v4674, %v4644
        %v4676 = vadd.f32 %v4675, %v4645
        %v4677 = vadd.f32 %v4676, %v4646
        %v4678 = vadd.f32 %v4677, %v4647
        %v4679 = vadd.f32 %v4678, %v4648
        %v4680 = vadd.f32 %v4679, %v4649
        %v4681 = vadd.f32 %v4680, %v4650
        %v4682 = vadd.f32 %v4681, %v4651
        %v4683 = vadd.f32 %v4682, %v4652
        %v4684 = vadd.f32 %v4683, %v4653
        %v4685 = vadd.f32 %v4684, %v4654
        %v4686 = vadd.f32 %v4685, %v4655
        %v4687 = vadd.f32 %v4686, %v4656
        %v4688 = vadd.f32 %v4687, %v4657
        %v4689 = vadd.f32 %v4688, %v4658
        %v4690 = vadd.f32 %v4689, %v4659
        %v4691 = vadd.f32 %v4690, %v4660
        %v4692 = vadd.f32 %v4691, %v4661
        %v4693 = vrot.slane %v4692, 4
        %v4694 = vadd.f32 %v4692, %v4693
        %v4695 = vrot.slane %v4694, 2
        %v4696 = vadd.f32 %v4694, %v4695
        %v4697 = vrot.slane %v4696, 1
        %v4698 = vadd.f32 %v4696, %v4697
        %v4699 = vmul.f32 %v4698, %v2407
        %v4700 = vsub.f32 %v4630, %v4699
        %v4701 = vsub.f32 %v4631, %v4699
        %v4702 = vsub.f32 %v4632, %v4699
        %v4703 = vsub.f32 %v4633, %v4699
        %v4704 = vsub.f32 %v4634, %v4699
        %v4705 = vsub.f32 %v4635, %v4699
        %v4706 = vsub.f32 %v4636, %v4699
        %v4707 = vsub.f32 %v4637, %v4699
        %v4708 = vsub.f32 %v4638, %v4699
        %v4709 = vsub.f32 %v4639, %v4699
        %v4710 = vsub.f32 %v4640, %v4699
        %v4711 = vsub.f32 %v4641, %v4699
        %v4712 = vsub.f32 %v4642, %v4699
        %v4713 = vsub.f32 %v4643, %v4699
        %v4714 = vsub.f32 %v4644, %v4699
        %v4715 = vsub.f32 %v4645, %v4699
        %v4716 = vsub.f32 %v4646, %v4699
        %v4717 = vsub.f32 %v4647, %v4699
        %v4718 = vsub.f32 %v4648, %v4699
        %v4719 = vsub.f32 %v4649, %v4699
        %v4720 = vsub.f32 %v4650, %v4699
        %v4721 = vsub.f32 %v4651, %v4699
        %v4722 = vsub.f32 %v4652, %v4699
        %v4723 = vsub.f32 %v4653, %v4699
        %v4724 = vsub.f32 %v4654, %v4699
        %v4725 = vsub.f32 %v4655, %v4699
        %v4726 = vsub.f32 %v4656, %v4699
        %v4727 = vsub.f32 %v4657, %v4699
        %v4728 = vsub.f32 %v4658, %v4699
        %v4729 = vsub.f32 %v4659, %v4699
        %v4730 = vsub.f32 %v4660, %v4699
        %v4731 = vsub.f32 %v4661, %v4699
        %v4732 = vmul.f32 %v4700, %v4700
        %v4733 = vmul.f32 %v4701, %v4701
        %v4734 = vmul.f32 %v4702, %v4702
        %v4735 = vmul.f32 %v4703, %v4703
        %v4736 = vmul.f32 %v4704, %v4704
        %v4737 = vmul.f32 %v4705, %v4705
        %v4738 = vmul.f32 %v4706, %v4706
        %v4739 = vmul.f32 %v4707, %v4707
        %v4740 = vmul.f32 %v4708, %v4708
        %v4741 = vmul.f32 %v4709, %v4709
        %v4742 = vmul.f32 %v4710, %v4710
        %v4743 = vmul.f32 %v4711, %v4711
        %v4744 = vmul.f32 %v4712, %v4712
        %v4745 = vmul.f32 %v4713, %v4713
        %v4746 = vmul.f32 %v4714, %v4714
        %v4747 = vmul.f32 %v4715, %v4715
        %v4748 = vmul.f32 %v4716, %v4716
        %v4749 = vmul.f32 %v4717, %v4717
        %v4750 = vmul.f32 %v4718, %v4718
        %v4751 = vmul.f32 %v4719, %v4719
        %v4752 = vmul.f32 %v4720, %v4720
        %v4753 = vmul.f32 %v4721, %v4721
        %v4754 = vmul.f32 %v4722, %v4722
        %v4755 = vmul.f32 %v4723, %v4723
        %v4756 = vmul.f32 %v4724, %v4724
        %v4757 = vmul.f32 %v4725, %v4725
        %v4758 = vmul.f32 %v4726, %v4726
        %v4759 = vmul.f32 %v4727, %v4727
        %v4760 = vmul.f32 %v4728, %v4728
        %v4761 = vmul.f32 %v4729, %v4729
        %v4762 = vmul.f32 %v4730, %v4730
        %v4763 = vmul.f32 %v4731, %v4731
        %v4764 = vadd.f32 %v4732, %v4733
        %v4765 = vadd.f32 %v4764, %v4734
        %v4766 = vadd.f32 %v4765, %v4735
        %v4767 = vadd.f32 %v4766, %v4736
        %v4768 = vadd.f32 %v4767, %v4737
        %v4769 = vadd.f32 %v4768, %v4738
        %v4770 = vadd.f32 %v4769, %v4739
        %v4771 = vadd.f32 %v4770, %v4740
        %v4772 = vadd.f32 %v4771, %v4741
        %v4773 = vadd.f32 %v4772, %v4742
        %v4774 = vadd.f32 %v4773, %v4743
        %v4775 = vadd.f32 %v4774, %v4744
        %v4776 = vadd.f32 %v4775, %v4745
        %v4777 = vadd.f32 %v4776, %v4746
        %v4778 = vadd.f32 %v4777, %v4747
        %v4779 = vadd.f32 %v4778, %v4748
        %v4780 = vadd.f32 %v4779, %v4749
        %v4781 = vadd.f32 %v4780, %v4750
        %v4782 = vadd.f32 %v4781, %v4751
        %v4783 = vadd.f32 %v4782, %v4752
        %v4784 = vadd.f32 %v4783, %v4753
        %v4785 = vadd.f32 %v4784, %v4754
        %v4786 = vadd.f32 %v4785, %v4755
        %v4787 = vadd.f32 %v4786, %v4756
        %v4788 = vadd.f32 %v4787, %v4757
        %v4789 = vadd.f32 %v4788, %v4758
        %v4790 = vadd.f32 %v4789, %v4759
        %v4791 = vadd.f32 %v4790, %v4760
        %v4792 = vadd.f32 %v4791, %v4761
        %v4793 = vadd.f32 %v4792, %v4762
        %v4794 = vadd.f32 %v4793, %v4763
        %v4795 = vrot.slane %v4794, 4
        %v4796 = vadd.f32 %v4794, %v4795
        %v4797 = vrot.slane %v4796, 2
        %v4798 = vadd.f32 %v4796, %v4797
        %v4799 = vrot.slane %v4798, 1
        %v4800 = vadd.f32 %v4798, %v4799
        %v4801 = vmul.f32 %v4800, %v2407
        %v4802 = vld [vmem:[%s4] sm:$0x1]
        %v4803 = vadd.f32 %v4801, 1e-05
        %v4804 = vrsqrt.pop %v4803
        %v4805 = vmul.f32 %v4802, %v4804
        %v4806 = vld [vmem:[%s4 + $0x1] sm:$0x1]
        %v4807 = vmul.f32 %v4699, %v4805
        %v4808 = vsub.f32 %v4806, %v4807
        %v4809 = vlaneseq
        %v4810 = vshrl.u32 %v4809, 7
        %v4811 = vsub.s32 0, %v4810
        %v4812 = vrot.slane %v4805, %v4811
        %v4813 = vmul.f32 %v4630, %v4812
        %v4814 = vmul.f32 %v4631, %v4812
        %v4815 = vmul.f32 %v4632, %v4812
        %v4816 = vmul.f32 %v4633, %v4812
        %v4817 = vmul.f32 %v4634, %v4812
        %v4818 = vmul.f32 %v4635, %v4812
        %v4819 = vmul.f32 %v4636, %v4812
        %v4820 = vmul.f32 %v4637, %v4812
        %v4821 = vmul.f32 %v4638, %v4812
        %v4822 = vmul.f32 %v4639, %v4812
        %v4823 = vmul.f32 %v4640, %v4812
        %v4824 = vmul.f32 %v4641, %v4812
        %v4825 = vmul.f32 %v4642, %v4812
        %v4826 = vmul.f32 %v4643, %v4812
        %v4827 = vmul.f32 %v4644, %v4812
        %v4828 = vmul.f32 %v4645, %v4812
        %v4829 = vmul.f32 %v4646, %v4812
        %v4830 = vmul.f32 %v4647, %v4812
        %v4831 = vmul.f32 %v4648, %v4812
        %v4832 = vmul.f32 %v4649, %v4812
        %v4833 = vmul.f32 %v4650, %v4812
        %v4834 = vmul.f32 %v4651, %v4812
        %v4835 = vmul.f32 %v4652, %v4812
        %v4836 = vmul.f32 %v4653, %v4812
        %v4837 = vmul.f32 %v4654, %v4812
        %v4838 = vmul.f32 %v4655, %v4812
        %v4839 = vmul.f32 %v4656, %v4812
        %v4840 = vmul.f32 %v4657, %v4812
        %v4841 = vmul.f32 %v4658, %v4812
        %v4842 = vmul.f32 %v4659, %v4812
        %v4843 = vmul.f32 %v4660, %v4812
        %v4844 = vmul.f32 %v4661, %v4812
        %v4845 = vlaneseq
        %v4846 = vshrl.u32 %v4845, 7
        %v4847 = vsub.s32 0, %v4846
        %v4848 = vrot.slane %v4808, %v4847
        %v4849 = vadd.f32 %v4813, %v4848
        %v4850 = vadd.f32 %v4814, %v4848
        %v4851 = vadd.f32 %v4815, %v4848
        %v4852 = vadd.f32 %v4816, %v4848
        %v4853 = vadd.f32 %v4817, %v4848
        %v4854 = vadd.f32 %v4818, %v4848
        %v4855 = vadd.f32 %v4819, %v4848
        %v4856 = vadd.f32 %v4820, %v4848
        %v4857 = vadd.f32 %v4821, %v4848
        %v4858 = vadd.f32 %v4822, %v4848
        %v4859 = vadd.f32 %v4823, %v4848
        %v4860 = vadd.f32 %v4824, %v4848
        %v4861 = vadd.f32 %v4825, %v4848
        %v4862 = vadd.f32 %v4826, %v4848
        %v4863 = vadd.f32 %v4827, %v4848
        %v4864 = vadd.f32 %v4828, %v4848
        %v4865 = vadd.f32 %v4829, %v4848
        %v4866 = vadd.f32 %v4830, %v4848
        %v4867 = vadd.f32 %v4831, %v4848
        %v4868 = vadd.f32 %v4832, %v4848
        %v4869 = vadd.f32 %v4833, %v4848
        %v4870 = vadd.f32 %v4834, %v4848
        %v4871 = vadd.f32 %v4835, %v4848
        %v4872 = vadd.f32 %v4836, %v4848
        %v4873 = vadd.f32 %v4837, %v4848
        %v4874 = vadd.f32 %v4838, %v4848
        %v4875 = vadd.f32 %v4839, %v4848
        %v4876 = vadd.f32 %v4840, %v4848
        %v4877 = vadd.f32 %v4841, %v4848
        %v4878 = vadd.f32 %v4842, %v4848
        %v4879 = vadd.f32 %v4843, %v4848
        %v4880 = vadd.f32 %v4844, %v4848
        %v4881 = vadd.f32 %v4849, %v296
        %v4882 = vadd.f32 %v4850, %v297
        %v4883 = vadd.f32 %v4851, %v298
        %v4884 = vadd.f32 %v4852, %v299
        %v4885 = vadd.f32 %v4853, %v300
        %v4886 = vadd.f32 %v4854, %v301
        %v4887 = vadd.f32 %v4855, %v302
        %v4888 = vadd.f32 %v4856, %v303
        %v4889 = vadd.f32 %v4857, %v304
        %v4890 = vadd.f32 %v4858, %v305
        %v4891 = vadd.f32 %v4859, %v306
        %v4892 = vadd.f32 %v4860, %v307
        %v4893 = vadd.f32 %v4861, %v308
        %v4894 = vadd.f32 %v4862, %v309
        %v4895 = vadd.f32 %v4863, %v310
        %v4896 = vadd.f32 %v4864, %v311
        %v4897 = vadd.f32 %v4865, %v312
        %v4898 = vadd.f32 %v4866, %v313
        %v4899 = vadd.f32 %v4867, %v314
        %v4900 = vadd.f32 %v4868, %v315
        %v4901 = vadd.f32 %v4869, %v316
        %v4902 = vadd.f32 %v4870, %v317
        %v4903 = vadd.f32 %v4871, %v318
        %v4904 = vadd.f32 %v4872, %v319
        %v4905 = vadd.f32 %v4873, %v320
        %v4906 = vadd.f32 %v4874, %v321
        %v4907 = vadd.f32 %v4875, %v322
        %v4908 = vadd.f32 %v4876, %v323
        %v4909 = vadd.f32 %v4877, %v324
        %v4910 = vadd.f32 %v4878, %v325
        %v4911 = vadd.f32 %v4879, %v326
        %v4912 = vadd.f32 %v4880, %v327
        %4913 = vst [vmem:[%s217] sm:$0xff] %v4881
        %4914 = vst [vmem:[%s217 + $0x8] sm:$0xff] %v4882
        %4915 = vst [vmem:[%s217 + $0x10] sm:$0xff] %v4883
        %4916 = vst [vmem:[%s217 + $0x18] sm:$0xff] %v4884
        %4917 = vst [vmem:[%s217 + $0x20] sm:$0xff] %v4885
        %4918 = vst [vmem:[%s217 + $0x28] sm:$0xff] %v4886
        %4919 = vst [vmem:[%s217 + $0x30] sm:$0xff] %v4887
        %4920 = vst [vmem:[%s217 + $0x38] sm:$0xff] %v4888
        %4921 = vst [vmem:[%s217 + $0x40] sm:$0xff] %v4889
        %4922 = vst [vmem:[%s217 + $0x48] sm:$0xff] %v4890
        %4923 = vst [vmem:[%s217 + $0x50] sm:$0xff] %v4891
        %4924 = vst [vmem:[%s217 + $0x58] sm:$0xff] %v4892
        %4925 = vst [vmem:[%s217 + $0x60] sm:$0xff] %v4893
        %4926 = vst [vmem:[%s217 + $0x68] sm:$0xff] %v4894
        %4927 = vst [vmem:[%s217 + $0x70] sm:$0xff] %v4895
        %4928 = vst [vmem:[%s217 + $0x78] sm:$0xff] %v4896
        %4929 = vst [vmem:[%s217 + $0x80] sm:$0xff] %v4897
        %4930 = vst [vmem:[%s217 + $0x88] sm:$0xff] %v4898
        %4931 = vst [vmem:[%s217 + $0x90] sm:$0xff] %v4899
        %4932 = vst [vmem:[%s217 + $0x98] sm:$0xff] %v4900
        %4933 = vst [vmem:[%s217 + $0xa0] sm:$0xff] %v4901
        %4934 = vst [vmem:[%s217 + $0xa8] sm:$0xff] %v4902
        %4935 = vst [vmem:[%s217 + $0xb0] sm:$0xff] %v4903
        %4936 = vst [vmem:[%s217 + $0xb8] sm:$0xff] %v4904
        %4937 = vst [vmem:[%s217 + $0xc0] sm:$0xff] %v4905
        %4938 = vst [vmem:[%s217 + $0xc8] sm:$0xff] %v4906
        %4939 = vst [vmem:[%s217 + $0xd0] sm:$0xff] %v4907
        %4940 = vst [vmem:[%s217 + $0xd8] sm:$0xff] %v4908
        %4941 = vst [vmem:[%s217 + $0xe0] sm:$0xff] %v4909
        %4942 = vst [vmem:[%s217 + $0xe8] sm:$0xff] %v4910
        %4943 = vst [vmem:[%s217 + $0xf0] sm:$0xff] %v4911
        %4944 = vst [vmem:[%s217 + $0xf8] sm:$0xff] %v4912
        %s4945 = sand.u32 %s137, 1
        %s4946 = scalar_lea.sflag [#allocation4], %s4945
        %s4947 = sand.u32 %s137, 1
        %s4948 = smul.addr %s4947, 256
        %s4949 = scalar_lea.vmem [#allocation3], %s4948
        // Predicated region
        $region41: #{residual_block.1} parent=39 // pred_check
          %p4950 = pneg %p147
        $region42: #{residual_block.1} parent=39 // pred_check_branch
          %4952 = sbr.rel (%p4950) target = $region44
        $region43: #{residual_block.1} parent=39 // pred_region
          %s4954 = ssub.s32 4096, 4096
          %4955 = vsyncadd %s4946, %s4954
          %s4956 = smul.addr %s19, 32
          %s4957 = smul.addr %s4956, 128
          %s4958 = scalar_lea.hbm %s5, %s4957
          %s4959 = sshll.u32 %s4949, 4
          %s4960 = int_to_ptr.vmem [resolvable:$true] %s4959
          %4965 = dma.vmem_to_hbm [thread:$0]  %s4960, 4096, %s4958, %s4946, 128, 128, 8
        $region44: #{residual_block.1} parent=39 // pred_fallthru
          _
      $region40: #{residual_block.1} parent=5 // pred_fallthru
        _
      %p4966 = scmp.le.s32.totalorder 2, %s14
      // Predicated region
      $region45: #{residual_block.1} parent=5 // pred_check
        %p4967 = pneg %p4966
      $region46: #{residual_block.1} parent=5 // pred_check_branch
        %4969 = sbr.rel (%p4967) target = $region48
      $region47: #{residual_block.1} parent=5 // pred_region
        %s4970 = ssub.s32 %s14, 2
        // Predicated region
        $region49: #{residual_block.1} parent=47 // pred_check
          %p4971 = pneg %p153
        $region50: #{residual_block.1} parent=47 // pred_check_branch
          %4973 = sbr.rel (%p4971) target = $region52
        $region51: #{residual_block.1} parent=47 // pred_region
          %s4974 = sand.u32 %s138, 1
          %s4975 = scalar_lea.sflag [#allocation4], %s4974
          %s4976 = sand.u32 %s138, 1
          %s4977 = smul.addr %s4976, 256
          %s4978 = scalar_lea.vmem [#allocation3], %s4977
          %4979 = dma.done %s4975, 4096
        $region52: #{residual_block.1} parent=47 // pred_fallthru
          _
      $region48: #{residual_block.1} parent=5 // pred_fallthru
        _
    $region6: #{residual_block.1} parent=1 // loop_footer
      %s18 = sadd.s32 1, %s14
    $region7: #{residual_block.1} parent=1 // loop_footer_branch
      %13 = sbr.rel target = $region3
    $region8: #{residual_block.1} parent=1 // loop_exit
      _
    %4980 = vsyncpa [#allocation4], 1
    %s4981 = scalar_lea.sflag [#allocation4], 1
    %4982 = vsyncpa %s4981, 1

</llo_original>
